<compile_context>
chip_gen: v7x
topology: tpu7x:2x2x1
jax: 0.10.0
libtpu: 0.0.40
codegen_flags: <defaults>
</compile_context>

<pallas_src>
import functools

import jax
import jax.numpy as jnp
import numpy as np
from jax import lax
from jax.experimental import pallas as pl
from jax.experimental.pallas import tpu as pltpu


def _round_up(x, m):
    return (x + m - 1) // m * m


def _gru_kernel(gx_ref, whh_ref, bhn_ref, y_ref, h_scratch, *, t_chunk, hp, unroll):
    """One grid step = t_chunk recurrence steps for one batch tile.

    gx_ref : (t_chunk, Bt, 3*Hp)  x@W_ih^T + [b_ir+b_hr | b_iz+b_hz | b_in], gate-wise lane-padded
    whh_ref: (Hp, 3*Hp)           fused, lane-padded [W_hr^T | W_hz^T | W_hn^T] (resident)
    bhn_ref: (1, Hp)              b_hn, lane-padded (resident)
    y_ref  : (t_chunk, Bt, Hp)    hidden states for this chunk
    h_scratch: (Bt, Hp) f32       recurrent carry across the time ("arbitrary") grid axis
    """
    c = pl.program_id(1)
    Hp = hp
    bt = h_scratch.shape[0]

    # h0 = zeros (nn.GRU default when no initial hidden state is given).
    @pl.when(c == 0)
    def _():
        h_scratch[...] = jnp.zeros_like(h_scratch)

    whh = whh_ref[...]                                    # (Hp, 3*Hp), VMEM-resident
    cdt = whh.dtype
    # Hoisted: JAX does not CSE broadcast_in_dim, a per-step "+ bhn" would re-emit
    # the (1,Hp)->(Bt,Hp) broadcast every timestep.
    bhn = jnp.broadcast_to(bhn_ref[...].astype(jnp.float32), (bt, Hp))

    def step(t, h):
        gx = gx_ref[t].astype(jnp.float32)                # (Bt, 3*Hp)
        gh = jnp.dot(h.astype(cdt), whh,
                     preferred_element_type=jnp.float32)  # one fused MXU op per step
        # All slices below are at multiples of Hp (Hp % 128 == 0) -> lane-aligned.
        # PyTorch GRU (gate order r, z, n):
        #   r = sigmoid(gx_r + gh_r); z = sigmoid(gx_z + gh_z)
        #   n = tanh(gx_n + r*(gh_n + b_hn)); h' = (1-z)*n + z*h
        # sigmoid(x) = 0.5*tanh(0.5*x)+0.5 : one EUP op instead of exp + reciprocal.
        rz = 0.5 * jnp.tanh(0.5 * (gx[:, :2 * Hp] + gh[:, :2 * Hp])) + 0.5
        r = rz[:, :Hp]
        z = rz[:, Hp:]
        n = jnp.tanh(gx[:, 2 * Hp:] + r * (gh[:, 2 * Hp:] + bhn))
        h_new = n + z * (h - n)                           # == (1-z)*n + z*h
        y_ref[t] = h_new.astype(y_ref.dtype)
        return h_new

    h_scratch[...] = lax.fori_loop(0, t_chunk, step, h_scratch[...], unroll=unroll)


def gru_forward(x, params, *, t_chunk=None, use_bf16=False):
    """x: (B, T, D_in). Returns (output (B, T, H), h_n (1, B, H)) in float32."""
    B, T, D_in = x.shape
    w_ih, w_hh, b_ih, b_hh = params          # (3H, D_in), (3H, H), (3H,), (3H,)
    H = w_hh.shape[1]
    f32 = jnp.float32
    x = x.astype(f32)

    # ---- Layout padding: lane-aligned gates, sublane-filled batch ----
    Hp = _round_up(H, 128)                   # per-gate lane width (multiple of 128)
    B8 = _round_up(B, 8)                     # fill all 8 f32 sublanes per vreg
    if B8 >= 16:
        bt = _round_up((B8 + 1) // 2, 8)     # 2 batch tiles -> parallel axis for v7x's 2 TCs
        n_b = 2
    else:
        bt = B8
        n_b = 1
    B_pad = n_b * bt

    stream_dtype = jnp.bfloat16 if use_bf16 else f32
    es = 2 if use_bf16 else 4

    # ---- VMEM-derived time chunk and scoped-VMEM limit ----
    try:
        vmem_cap = int(pltpu.get_tpu_info().vmem_capacity_bytes)
    except Exception:                        # pragma: no cover - conservative fallback
        vmem_cap = 64 << 20                  # v7x lower bound
    fixed = Hp * 3 * Hp * es + Hp * 4 + bt * Hp * 4            # weights + bias + h scratch
    per_t = 2 * bt * 3 * Hp * es + 2 * bt * Hp * 4             # gx + y, double-buffered
    if t_chunk is None:
        budget = max(4 << 20, vmem_cap - fixed - (16 << 20))   # compiler-scratch headroom
        t_chunk = int(np.clip(budget // per_t, 8, 512))
    t_chunk = max(1, min(int(t_chunk), T))
    n_chunks = -(-T // t_chunk)
    T_pad = n_chunks * t_chunk
    unroll = min(8, t_chunk)
    vmem_limit = int(min(max(fixed + per_t * t_chunk + (8 << 20), 32 << 20), vmem_cap))

    # ---- Hoisted input projection: one big matmul, time-major directly ----
    bias_x = jnp.concatenate([
        b_ih[0 * H:1 * H] + b_hh[0 * H:1 * H],   # r: both biases folded
        b_ih[1 * H:2 * H] + b_hh[1 * H:2 * H],   # z: both biases folded
        b_ih[2 * H:3 * H],                       # n: input side only; b_hn stays under r*(...)
    ]).astype(f32)
    gx = jnp.einsum('btd,gd->tbg', x, w_ih.astype(f32),
                    preferred_element_type=f32) + bias_x       # (T, B, 3H), time-major
    gx = gx.reshape(T, B, 3, H)
    gx = jnp.pad(gx, ((0, T_pad - T), (0, B_pad - B), (0, 0), (0, Hp - H)))
    gx = gx.reshape(T_pad, B_pad, 3 * Hp).astype(stream_dtype)

    # ---- Fused, lane-padded recurrent weights / hidden-side bias ----
    whh_t = (jnp.zeros((Hp, 3, Hp), f32)
             .at[:H, :, :H].set(w_hh.astype(f32).T.reshape(H, 3, H))
             .reshape(Hp, 3 * Hp).astype(stream_dtype))
    bhn = jnp.zeros((1, Hp), f32).at[0, :H].set(b_hh[2 * H:3 * H].astype(f32))

    kernel = functools.partial(_gru_kernel, t_chunk=t_chunk, hp=Hp, unroll=unroll)

    def _call(weight_pipeline_mode):
        grid_spec = pltpu.PrefetchScalarGridSpec(
            num_scalar_prefetch=0,
            grid=(n_b, n_chunks),
            in_specs=[
                pl.BlockSpec((t_chunk, bt, 3 * Hp), lambda b, c: (c, b, 0)),
                pl.BlockSpec((Hp, 3 * Hp), lambda b, c: (0, 0),
                             pipeline_mode=weight_pipeline_mode),
                pl.BlockSpec((1, Hp), lambda b, c: (0, 0),
                             pipeline_mode=weight_pipeline_mode),
            ],
            out_specs=pl.BlockSpec((t_chunk, bt, Hp), lambda b, c: (c, b, 0)),
            scratch_shapes=[pltpu.VMEM((bt, Hp), jnp.float32)],
        )
        return pl.pallas_call(
            kernel,
            grid_spec=grid_spec,
            out_shape=jax.ShapeDtypeStruct((T_pad, B_pad, Hp), jnp.float32),
            compiler_params=pltpu.CompilerParams(
                dimension_semantics=("parallel", "arbitrary"),
                vmem_limit_bytes=vmem_limit),
        )(gx, whh_t, bhn)

    try:
        # Grid-invariant weights: single-buffered (no second VMEM copy of W_hh^T).
        y_tm = _call(pl.Buffered(1))
    except Exception:
        # Fallback to default double-buffering if the runtime rejects Buffered(1).
        y_tm = _call(None)

    y = jnp.transpose(y_tm[:T, :B, :H], (1, 0, 2))   # (B, T, H), batch_first
    h_n = y[:, T - 1, :][None]                       # final hidden == last output step
    return y, h_n


def init_gru_params(key, input_size, hidden_size):
    """Mimics nn.GRU.reset_parameters: U(-1/sqrt(H), 1/sqrt(H))."""
    k = 1.0 / np.sqrt(hidden_size)
    ks = jax.random.split(key, 4)
    w_ih = jax.random.uniform(ks[0], (3 * hidden_size, input_size), jnp.float32, -k, k)
    w_hh = jax.random.uniform(ks[1], (3 * hidden_size, hidden_size), jnp.float32, -k, k)
    b_ih = jax.random.uniform(ks[2], (3 * hidden_size,), jnp.float32, -k, k)
    b_hh = jax.random.uniform(ks[3], (3 * hidden_size,), jnp.float32, -k, k)
    return w_ih, w_hh, b_ih, b_hh


def gru_reference(x, params):
    """Pure-JAX reference (lax.scan) with identical math."""
    w_ih, w_hh, b_ih, b_hh = params
    H = w_hh.shape[1]
    wir, wiz, win = w_ih[:H].T, w_ih[H:2 * H].T, w_ih[2 * H:].T
    whr, whz, whn = w_hh[:H].T, w_hh[H:2 * H].T, w_hh[2 * H:].T

    def step(h, x_t):
        r = jax.nn.sigmoid(x_t @ wir + b_ih[:H] + h @ whr + b_hh[:H])
        z = jax.nn.sigmoid(x_t @ wiz + b_ih[H:2 * H] + h @ whz + b_hh[H:2 * H])
        n = jnp.tanh(x_t @ win + b_ih[2 * H:] + r * (h @ whn + b_hh[2 * H:]))
        h_new = (1.0 - z) * n + z * h
        return h_new, h_new

    B = x.shape[0]
    h0 = jnp.zeros((B, H), jnp.float32)
    h_last, ys = jax.lax.scan(step, h0, jnp.transpose(x, (1, 0, 2)))
    return jnp.transpose(ys, (1, 0, 2)), h_last[None]


if __name__ == "__main__":
    B, T, D_in, H = 2, 8, 4, 32

    key = jax.random.PRNGKey(0)
    kx, kp = jax.random.split(key)
    x = jax.random.normal(kx, (B, T, D_in), jnp.float32)
    params = init_gru_params(kp, D_in, H)

    y, h_n = jax.block_until_ready(gru_forward(x, params))
    y_ref, h_ref = gru_reference(x, params)

    assert y.shape == (B, T, H) and h_n.shape == (1, B, H)
    np.testing.assert_allclose(np.asarray(y), np.asarray(y_ref), rtol=1e-3, atol=1e-3)
    np.testing.assert_allclose(np.asarray(h_n), np.asarray(h_ref), rtol=1e-3, atol=1e-3)
    print("KERNEL_OK")
</pallas_src>

<mosaic_0001>
module attributes {stable_mosaic.version = 11 : i64} {
  func.func @_gru_kernel(%arg0: i32, %arg1: i32, %arg2: memref<8x8x384xf32, #tpu.memory_space<vmem>>, %arg3: memref<128x384xf32, #tpu.memory_space<vmem>>, %arg4: memref<1x128xf32, #tpu.memory_space<vmem>>, %arg5: memref<8x8x128xf32, #tpu.memory_space<vmem>>, %arg6: memref<8x128xf32, #tpu.memory_space<vmem>>) attributes {dimension_semantics = [#tpu.dimension_semantics<parallel>, #tpu.dimension_semantics<arbitrary>], iteration_bounds = array<i64: 1, 1>, scalar_prefetch = 0 : i64, scratch_operands = 1 : i64, tpu.core_type = #tpu.core_type<tc>, window_params = [{transform_indices = @transform_0, window_bounds = array<i64: 8, 8, 384>}, {pipeline_mode = #tpu.pipeline_mode<synchronous>, transform_indices = @transform_1, window_bounds = array<i64: 128, 384>}, {pipeline_mode = #tpu.pipeline_mode<synchronous>, transform_indices = @transform_2, window_bounds = array<i64: 1, 128>}, {transform_indices = @transform_3, window_bounds = array<i64: 8, 8, 128>}]} {
    %c0_i32 = arith.constant 0 : i32
    %0 = arith.cmpi eq, %arg1, %c0_i32 : i32
    %1 = arith.extui %0 : i1 to i32
    %c0_i32_0 = arith.constant 0 : i32
    %2 = arith.cmpi ne, %1, %c0_i32_0 : i32
    scf.if %2 {
      %cst_72 = arith.constant 0.000000e+00 : f32
      %241 = vector.broadcast %cst_72 : f32 to vector<8x128xf32>
      %c0_73 = arith.constant 0 : index
      %c0_74 = arith.constant 0 : index
      %242 = vector.load %arg6[%c0_73, %c0_74] : memref<8x128xf32, #tpu.memory_space<vmem>>, vector<8x128xf32>
      tpu.vector_store %arg6[%c0_73, %c0_74], %241 {strides = array<i32>} : memref<8x128xf32, #tpu.memory_space<vmem>>, vector<8x128xf32>,
    } else {
    }
    %c0 = arith.constant 0 : index
    %c0_1 = arith.constant 0 : index
    %3 = vector.load %arg3[%c0, %c0_1] : memref<128x384xf32, #tpu.memory_space<vmem>>, vector<128x384xf32>
    %c0_2 = arith.constant 0 : index
    %c0_3 = arith.constant 0 : index
    %4 = vector.load %arg4[%c0_2, %c0_3] : memref<1x128xf32, #tpu.memory_space<vmem>>, vector<1x128xf32>
    %5 = vector.shape_cast %4 : vector<1x128xf32> to vector<1x128xf32>
    %6 = vector.broadcast %5 : vector<1x128xf32> to vector<8x128xf32>
    %c0_4 = arith.constant 0 : index
    %c0_5 = arith.constant 0 : index
    %7 = vector.load %arg6[%c0_4, %c0_5] : memref<8x128xf32, #tpu.memory_space<vmem>>, vector<8x128xf32>
    %c0_i32_6 = arith.constant 0 : i32
    %8 = arith.index_cast %c0_i32_6 : i32 to index
    %c0_7 = arith.constant 0 : index
    %c0_8 = arith.constant 0 : index
    %9 = vector.load %arg2[%8, %c0_7, %c0_8] : memref<8x8x384xf32, #tpu.memory_space<vmem>>, vector<1x8x384xf32>
    %10 = vector.shape_cast %9 : vector<1x8x384xf32> to vector<8x384xf32>
    %cst = arith.constant dense<0.000000e+00> : vector<8x384xf32>
    %11 = tpu.matmul %7, %3, %cst {dimension_numbers = #tpu.dot_dimension_numbers<[1], [0], [0], [1], [0, 0, 1, 1], [], []>} : vector<8x128xf32>, vector<128x384xf32>, vector<8x384xf32> -> vector<8x384xf32>
    %12 = vector.extract_strided_slice %10 {offsets = [0, 0], sizes = [8, 256], strides = [1, 1]} : vector<8x384xf32> to vector<8x256xf32>
    %13 = vector.extract_strided_slice %11 {offsets = [0, 0], sizes = [8, 256], strides = [1, 1]} : vector<8x384xf32> to vector<8x256xf32>
    %14 = arith.addf %12, %13 : vector<8x256xf32>
    %cst_9 = arith.constant 5.000000e-01 : f32
    %15 = vector.broadcast %cst_9 : f32 to vector<8x256xf32>
    %16 = arith.mulf %15, %14 : vector<8x256xf32>
    %17 = math.tanh %16 : vector<8x256xf32>
    %cst_10 = arith.constant 5.000000e-01 : f32
    %18 = vector.broadcast %cst_10 : f32 to vector<8x256xf32>
    %19 = arith.mulf %18, %17 : vector<8x256xf32>
    %cst_11 = arith.constant 5.000000e-01 : f32
    %20 = vector.broadcast %cst_11 : f32 to vector<8x256xf32>
    %21 = arith.addf %19, %20 : vector<8x256xf32>
    %22 = vector.extract_strided_slice %21 {offsets = [0, 0], sizes = [8, 128], strides = [1, 1]} : vector<8x256xf32> to vector<8x128xf32>
    %23 = vector.extract_strided_slice %21 {offsets = [0, 128], sizes = [8, 128], strides = [1, 1]} : vector<8x256xf32> to vector<8x128xf32>
    %24 = vector.extract_strided_slice %10 {offsets = [0, 256], sizes = [8, 128], strides = [1, 1]} : vector<8x384xf32> to vector<8x128xf32>
    %25 = vector.extract_strided_slice %11 {offsets = [0, 256], sizes = [8, 128], strides = [1, 1]} : vector<8x384xf32> to vector<8x128xf32>
    %26 = arith.addf %25, %6 : vector<8x128xf32>
    %27 = arith.mulf %22, %26 : vector<8x128xf32>
    %28 = arith.addf %24, %27 : vector<8x128xf32>
    %29 = math.tanh %28 : vector<8x128xf32>
    %30 = arith.subf %7, %29 : vector<8x128xf32>
    %31 = arith.mulf %23, %30 : vector<8x128xf32>
    %32 = arith.addf %29, %31 : vector<8x128xf32>
    %33 = arith.index_cast %c0_i32_6 : i32 to index
    %c0_12 = arith.constant 0 : index
    %c0_13 = arith.constant 0 : index
    %34 = vector.load %arg5[%33, %c0_12, %c0_13] : memref<8x8x128xf32, #tpu.memory_space<vmem>>, vector<1x8x128xf32>
    %35 = vector.shape_cast %34 : vector<1x8x128xf32> to vector<8x128xf32>
    %36 = vector.shape_cast %32 : vector<8x128xf32> to vector<1x8x128xf32>
    tpu.vector_store %arg5[%33, %c0_12, %c0_13], %36 {strides = array<i32>} : memref<8x8x128xf32, #tpu.memory_space<vmem>>, vector<1x8x128xf32>,
    %c1_i32 = arith.constant 1 : i32
    %37 = arith.index_cast %c1_i32 : i32 to index
    %c0_14 = arith.constant 0 : index
    %c0_15 = arith.constant 0 : index
    %38 = vector.load %arg2[%37, %c0_14, %c0_15] : memref<8x8x384xf32, #tpu.memory_space<vmem>>, vector<1x8x384xf32>
    %39 = vector.shape_cast %38 : vector<1x8x384xf32> to vector<8x384xf32>
    %cst_16 = arith.constant dense<0.000000e+00> : vector<8x384xf32>
    %40 = tpu.matmul %32, %3, %cst_16 {dimension_numbers = #tpu.dot_dimension_numbers<[1], [0], [0], [1], [0, 0, 1, 1], [], []>} : vector<8x128xf32>, vector<128x384xf32>, vector<8x384xf32> -> vector<8x384xf32>
    %41 = vector.extract_strided_slice %39 {offsets = [0, 0], sizes = [8, 256], strides = [1, 1]} : vector<8x384xf32> to vector<8x256xf32>
    %42 = vector.extract_strided_slice %40 {offsets = [0, 0], sizes = [8, 256], strides = [1, 1]} : vector<8x384xf32> to vector<8x256xf32>
    %43 = arith.addf %41, %42 : vector<8x256xf32>
    %cst_17 = arith.constant 5.000000e-01 : f32
    %44 = vector.broadcast %cst_17 : f32 to vector<8x256xf32>
    %45 = arith.mulf %44, %43 : vector<8x256xf32>
    %46 = math.tanh %45 : vector<8x256xf32>
    %cst_18 = arith.constant 5.000000e-01 : f32
    %47 = vector.broadcast %cst_18 : f32 to vector<8x256xf32>
    %48 = arith.mulf %47, %46 : vector<8x256xf32>
    %cst_19 = arith.constant 5.000000e-01 : f32
    %49 = vector.broadcast %cst_19 : f32 to vector<8x256xf32>
    %50 = arith.addf %48, %49 : vector<8x256xf32>
    %51 = vector.extract_strided_slice %50 {offsets = [0, 0], sizes = [8, 128], strides = [1, 1]} : vector<8x256xf32> to vector<8x128xf32>
    %52 = vector.extract_strided_slice %50 {offsets = [0, 128], sizes = [8, 128], strides = [1, 1]} : vector<8x256xf32> to vector<8x128xf32>
    %53 = vector.extract_strided_slice %39 {offsets = [0, 256], sizes = [8, 128], strides = [1, 1]} : vector<8x384xf32> to vector<8x128xf32>
    %54 = vector.extract_strided_slice %40 {offsets = [0, 256], sizes = [8, 128], strides = [1, 1]} : vector<8x384xf32> to vector<8x128xf32>
    %55 = arith.addf %54, %6 : vector<8x128xf32>
    %56 = arith.mulf %51, %55 : vector<8x128xf32>
    %57 = arith.addf %53, %56 : vector<8x128xf32>
    %58 = math.tanh %57 : vector<8x128xf32>
    %59 = arith.subf %32, %58 : vector<8x128xf32>
    %60 = arith.mulf %52, %59 : vector<8x128xf32>
    %61 = arith.addf %58, %60 : vector<8x128xf32>
    %62 = arith.index_cast %c1_i32 : i32 to index
    %c0_20 = arith.constant 0 : index
    %c0_21 = arith.constant 0 : index
    %63 = vector.load %arg5[%62, %c0_20, %c0_21] : memref<8x8x128xf32, #tpu.memory_space<vmem>>, vector<1x8x128xf32>
    %64 = vector.shape_cast %63 : vector<1x8x128xf32> to vector<8x128xf32>
    %65 = vector.shape_cast %61 : vector<8x128xf32> to vector<1x8x128xf32>
    tpu.vector_store %arg5[%62, %c0_20, %c0_21], %65 {strides = array<i32>} : memref<8x8x128xf32, #tpu.memory_space<vmem>>, vector<1x8x128xf32>,
    %c2_i32 = arith.constant 2 : i32
    %66 = arith.index_cast %c2_i32 : i32 to index
    %c0_22 = arith.constant 0 : index
    %c0_23 = arith.constant 0 : index
    %67 = vector.load %arg2[%66, %c0_22, %c0_23] : memref<8x8x384xf32, #tpu.memory_space<vmem>>, vector<1x8x384xf32>
    %68 = vector.shape_cast %67 : vector<1x8x384xf32> to vector<8x384xf32>
    %cst_24 = arith.constant dense<0.000000e+00> : vector<8x384xf32>
    %69 = tpu.matmul %61, %3, %cst_24 {dimension_numbers = #tpu.dot_dimension_numbers<[1], [0], [0], [1], [0, 0, 1, 1], [], []>} : vector<8x128xf32>, vector<128x384xf32>, vector<8x384xf32> -> vector<8x384xf32>
    %70 = vector.extract_strided_slice %68 {offsets = [0, 0], sizes = [8, 256], strides = [1, 1]} : vector<8x384xf32> to vector<8x256xf32>
    %71 = vector.extract_strided_slice %69 {offsets = [0, 0], sizes = [8, 256], strides = [1, 1]} : vector<8x384xf32> to vector<8x256xf32>
    %72 = arith.addf %70, %71 : vector<8x256xf32>
    %cst_25 = arith.constant 5.000000e-01 : f32
    %73 = vector.broadcast %cst_25 : f32 to vector<8x256xf32>
    %74 = arith.mulf %73, %72 : vector<8x256xf32>
    %75 = math.tanh %74 : vector<8x256xf32>
    %cst_26 = arith.constant 5.000000e-01 : f32
    %76 = vector.broadcast %cst_26 : f32 to vector<8x256xf32>
    %77 = arith.mulf %76, %75 : vector<8x256xf32>
    %cst_27 = arith.constant 5.000000e-01 : f32
    %78 = vector.broadcast %cst_27 : f32 to vector<8x256xf32>
    %79 = arith.addf %77, %78 : vector<8x256xf32>
    %80 = vector.extract_strided_slice %79 {offsets = [0, 0], sizes = [8, 128], strides = [1, 1]} : vector<8x256xf32> to vector<8x128xf32>
    %81 = vector.extract_strided_slice %79 {offsets = [0, 128], sizes = [8, 128], strides = [1, 1]} : vector<8x256xf32> to vector<8x128xf32>
    %82 = vector.extract_strided_slice %68 {offsets = [0, 256], sizes = [8, 128], strides = [1, 1]} : vector<8x384xf32> to vector<8x128xf32>
    %83 = vector.extract_strided_slice %69 {offsets = [0, 256], sizes = [8, 128], strides = [1, 1]} : vector<8x384xf32> to vector<8x128xf32>
    %84 = arith.addf %83, %6 : vector<8x128xf32>
    %85 = arith.mulf %80, %84 : vector<8x128xf32>
    %86 = arith.addf %82, %85 : vector<8x128xf32>
    %87 = math.tanh %86 : vector<8x128xf32>
    %88 = arith.subf %61, %87 : vector<8x128xf32>
    %89 = arith.mulf %81, %88 : vector<8x128xf32>
    %90 = arith.addf %87, %89 : vector<8x128xf32>
    %91 = arith.index_cast %c2_i32 : i32 to index
    %c0_28 = arith.constant 0 : index
    %c0_29 = arith.constant 0 : index
    %92 = vector.load %arg5[%91, %c0_28, %c0_29] : memref<8x8x128xf32, #tpu.memory_space<vmem>>, vector<1x8x128xf32>
    %93 = vector.shape_cast %92 : vector<1x8x128xf32> to vector<8x128xf32>
    %94 = vector.shape_cast %90 : vector<8x128xf32> to vector<1x8x128xf32>
    tpu.vector_store %arg5[%91, %c0_28, %c0_29], %94 {strides = array<i32>} : memref<8x8x128xf32, #tpu.memory_space<vmem>>, vector<1x8x128xf32>,
    %c3_i32 = arith.constant 3 : i32
    %95 = arith.index_cast %c3_i32 : i32 to index
    %c0_30 = arith.constant 0 : index
    %c0_31 = arith.constant 0 : index
    %96 = vector.load %arg2[%95, %c0_30, %c0_31] : memref<8x8x384xf32, #tpu.memory_space<vmem>>, vector<1x8x384xf32>
    %97 = vector.shape_cast %96 : vector<1x8x384xf32> to vector<8x384xf32>
    %cst_32 = arith.constant dense<0.000000e+00> : vector<8x384xf32>
    %98 = tpu.matmul %90, %3, %cst_32 {dimension_numbers = #tpu.dot_dimension_numbers<[1], [0], [0], [1], [0, 0, 1, 1], [], []>} : vector<8x128xf32>, vector<128x384xf32>, vector<8x384xf32> -> vector<8x384xf32>
    %99 = vector.extract_strided_slice %97 {offsets = [0, 0], sizes = [8, 256], strides = [1, 1]} : vector<8x384xf32> to vector<8x256xf32>
    %100 = vector.extract_strided_slice %98 {offsets = [0, 0], sizes = [8, 256], strides = [1, 1]} : vector<8x384xf32> to vector<8x256xf32>
    %101 = arith.addf %99, %100 : vector<8x256xf32>
    %cst_33 = arith.constant 5.000000e-01 : f32
    %102 = vector.broadcast %cst_33 : f32 to vector<8x256xf32>
    %103 = arith.mulf %102, %101 : vector<8x256xf32>
    %104 = math.tanh %103 : vector<8x256xf32>
    %cst_34 = arith.constant 5.000000e-01 : f32
    %105 = vector.broadcast %cst_34 : f32 to vector<8x256xf32>
    %106 = arith.mulf %105, %104 : vector<8x256xf32>
    %cst_35 = arith.constant 5.000000e-01 : f32
    %107 = vector.broadcast %cst_35 : f32 to vector<8x256xf32>
    %108 = arith.addf %106, %107 : vector<8x256xf32>
    %109 = vector.extract_strided_slice %108 {offsets = [0, 0], sizes = [8, 128], strides = [1, 1]} : vector<8x256xf32> to vector<8x128xf32>
    %110 = vector.extract_strided_slice %108 {offsets = [0, 128], sizes = [8, 128], strides = [1, 1]} : vector<8x256xf32> to vector<8x128xf32>
    %111 = vector.extract_strided_slice %97 {offsets = [0, 256], sizes = [8, 128], strides = [1, 1]} : vector<8x384xf32> to vector<8x128xf32>
    %112 = vector.extract_strided_slice %98 {offsets = [0, 256], sizes = [8, 128], strides = [1, 1]} : vector<8x384xf32> to vector<8x128xf32>
    %113 = arith.addf %112, %6 : vector<8x128xf32>
    %114 = arith.mulf %109, %113 : vector<8x128xf32>
    %115 = arith.addf %111, %114 : vector<8x128xf32>
    %116 = math.tanh %115 : vector<8x128xf32>
    %117 = arith.subf %90, %116 : vector<8x128xf32>
    %118 = arith.mulf %110, %117 : vector<8x128xf32>
    %119 = arith.addf %116, %118 : vector<8x128xf32>
    %120 = arith.index_cast %c3_i32 : i32 to index
    %c0_36 = arith.constant 0 : index
    %c0_37 = arith.constant 0 : index
    %121 = vector.load %arg5[%120, %c0_36, %c0_37] : memref<8x8x128xf32, #tpu.memory_space<vmem>>, vector<1x8x128xf32>
    %122 = vector.shape_cast %121 : vector<1x8x128xf32> to vector<8x128xf32>
    %123 = vector.shape_cast %119 : vector<8x128xf32> to vector<1x8x128xf32>
    tpu.vector_store %arg5[%120, %c0_36, %c0_37], %123 {strides = array<i32>} : memref<8x8x128xf32, #tpu.memory_space<vmem>>, vector<1x8x128xf32>,
    %c4_i32 = arith.constant 4 : i32
    %124 = arith.index_cast %c4_i32 : i32 to index
    %c0_38 = arith.constant 0 : index
    %c0_39 = arith.constant 0 : index
    %125 = vector.load %arg2[%124, %c0_38, %c0_39] : memref<8x8x384xf32, #tpu.memory_space<vmem>>, vector<1x8x384xf32>
    %126 = vector.shape_cast %125 : vector<1x8x384xf32> to vector<8x384xf32>
    %cst_40 = arith.constant dense<0.000000e+00> : vector<8x384xf32>
    %127 = tpu.matmul %119, %3, %cst_40 {dimension_numbers = #tpu.dot_dimension_numbers<[1], [0], [0], [1], [0, 0, 1, 1], [], []>} : vector<8x128xf32>, vector<128x384xf32>, vector<8x384xf32> -> vector<8x384xf32>
    %128 = vector.extract_strided_slice %126 {offsets = [0, 0], sizes = [8, 256], strides = [1, 1]} : vector<8x384xf32> to vector<8x256xf32>
    %129 = vector.extract_strided_slice %127 {offsets = [0, 0], sizes = [8, 256], strides = [1, 1]} : vector<8x384xf32> to vector<8x256xf32>
    %130 = arith.addf %128, %129 : vector<8x256xf32>
    %cst_41 = arith.constant 5.000000e-01 : f32
    %131 = vector.broadcast %cst_41 : f32 to vector<8x256xf32>
    %132 = arith.mulf %131, %130 : vector<8x256xf32>
    %133 = math.tanh %132 : vector<8x256xf32>
    %cst_42 = arith.constant 5.000000e-01 : f32
    %134 = vector.broadcast %cst_42 : f32 to vector<8x256xf32>
    %135 = arith.mulf %134, %133 : vector<8x256xf32>
    %cst_43 = arith.constant 5.000000e-01 : f32
    %136 = vector.broadcast %cst_43 : f32 to vector<8x256xf32>
    %137 = arith.addf %135, %136 : vector<8x256xf32>
    %138 = vector.extract_strided_slice %137 {offsets = [0, 0], sizes = [8, 128], strides = [1, 1]} : vector<8x256xf32> to vector<8x128xf32>
    %139 = vector.extract_strided_slice %137 {offsets = [0, 128], sizes = [8, 128], strides = [1, 1]} : vector<8x256xf32> to vector<8x128xf32>
    %140 = vector.extract_strided_slice %126 {offsets = [0, 256], sizes = [8, 128], strides = [1, 1]} : vector<8x384xf32> to vector<8x128xf32>
    %141 = vector.extract_strided_slice %127 {offsets = [0, 256], sizes = [8, 128], strides = [1, 1]} : vector<8x384xf32> to vector<8x128xf32>
    %142 = arith.addf %141, %6 : vector<8x128xf32>
    %143 = arith.mulf %138, %142 : vector<8x128xf32>
    %144 = arith.addf %140, %143 : vector<8x128xf32>
    %145 = math.tanh %144 : vector<8x128xf32>
    %146 = arith.subf %119, %145 : vector<8x128xf32>
    %147 = arith.mulf %139, %146 : vector<8x128xf32>
    %148 = arith.addf %145, %147 : vector<8x128xf32>
    %149 = arith.index_cast %c4_i32 : i32 to index
    %c0_44 = arith.constant 0 : index
    %c0_45 = arith.constant 0 : index
    %150 = vector.load %arg5[%149, %c0_44, %c0_45] : memref<8x8x128xf32, #tpu.memory_space<vmem>>, vector<1x8x128xf32>
    %151 = vector.shape_cast %150 : vector<1x8x128xf32> to vector<8x128xf32>
    %152 = vector.shape_cast %148 : vector<8x128xf32> to vector<1x8x128xf32>
    tpu.vector_store %arg5[%149, %c0_44, %c0_45], %152 {strides = array<i32>} : memref<8x8x128xf32, #tpu.memory_space<vmem>>, vector<1x8x128xf32>,
    %c5_i32 = arith.constant 5 : i32
    %153 = arith.index_cast %c5_i32 : i32 to index
    %c0_46 = arith.constant 0 : index
    %c0_47 = arith.constant 0 : index
    %154 = vector.load %arg2[%153, %c0_46, %c0_47] : memref<8x8x384xf32, #tpu.memory_space<vmem>>, vector<1x8x384xf32>
    %155 = vector.shape_cast %154 : vector<1x8x384xf32> to vector<8x384xf32>
    %cst_48 = arith.constant dense<0.000000e+00> : vector<8x384xf32>
    %156 = tpu.matmul %148, %3, %cst_48 {dimension_numbers = #tpu.dot_dimension_numbers<[1], [0], [0], [1], [0, 0, 1, 1], [], []>} : vector<8x128xf32>, vector<128x384xf32>, vector<8x384xf32> -> vector<8x384xf32>
    %157 = vector.extract_strided_slice %155 {offsets = [0, 0], sizes = [8, 256], strides = [1, 1]} : vector<8x384xf32> to vector<8x256xf32>
    %158 = vector.extract_strided_slice %156 {offsets = [0, 0], sizes = [8, 256], strides = [1, 1]} : vector<8x384xf32> to vector<8x256xf32>
    %159 = arith.addf %157, %158 : vector<8x256xf32>
    %cst_49 = arith.constant 5.000000e-01 : f32
    %160 = vector.broadcast %cst_49 : f32 to vector<8x256xf32>
    %161 = arith.mulf %160, %159 : vector<8x256xf32>
    %162 = math.tanh %161 : vector<8x256xf32>
    %cst_50 = arith.constant 5.000000e-01 : f32
    %163 = vector.broadcast %cst_50 : f32 to vector<8x256xf32>
    %164 = arith.mulf %163, %162 : vector<8x256xf32>
    %cst_51 = arith.constant 5.000000e-01 : f32
    %165 = vector.broadcast %cst_51 : f32 to vector<8x256xf32>
    %166 = arith.addf %164, %165 : vector<8x256xf32>
    %167 = vector.extract_strided_slice %166 {offsets = [0, 0], sizes = [8, 128], strides = [1, 1]} : vector<8x256xf32> to vector<8x128xf32>
    %168 = vector.extract_strided_slice %166 {offsets = [0, 128], sizes = [8, 128], strides = [1, 1]} : vector<8x256xf32> to vector<8x128xf32>
    %169 = vector.extract_strided_slice %155 {offsets = [0, 256], sizes = [8, 128], strides = [1, 1]} : vector<8x384xf32> to vector<8x128xf32>
    %170 = vector.extract_strided_slice %156 {offsets = [0, 256], sizes = [8, 128], strides = [1, 1]} : vector<8x384xf32> to vector<8x128xf32>
    %171 = arith.addf %170, %6 : vector<8x128xf32>
    %172 = arith.mulf %167, %171 : vector<8x128xf32>
    %173 = arith.addf %169, %172 : vector<8x128xf32>
    %174 = math.tanh %173 : vector<8x128xf32>
    %175 = arith.subf %148, %174 : vector<8x128xf32>
    %176 = arith.mulf %168, %175 : vector<8x128xf32>
    %177 = arith.addf %174, %176 : vector<8x128xf32>
    %178 = arith.index_cast %c5_i32 : i32 to index
    %c0_52 = arith.constant 0 : index
    %c0_53 = arith.constant 0 : index
    %179 = vector.load %arg5[%178, %c0_52, %c0_53] : memref<8x8x128xf32, #tpu.memory_space<vmem>>, vector<1x8x128xf32>
    %180 = vector.shape_cast %179 : vector<1x8x128xf32> to vector<8x128xf32>
    %181 = vector.shape_cast %177 : vector<8x128xf32> to vector<1x8x128xf32>
    tpu.vector_store %arg5[%178, %c0_52, %c0_53], %181 {strides = array<i32>} : memref<8x8x128xf32, #tpu.memory_space<vmem>>, vector<1x8x128xf32>,
    %c6_i32 = arith.constant 6 : i32
    %182 = arith.index_cast %c6_i32 : i32 to index
    %c0_54 = arith.constant 0 : index
    %c0_55 = arith.constant 0 : index
    %183 = vector.load %arg2[%182, %c0_54, %c0_55] : memref<8x8x384xf32, #tpu.memory_space<vmem>>, vector<1x8x384xf32>
    %184 = vector.shape_cast %183 : vector<1x8x384xf32> to vector<8x384xf32>
    %cst_56 = arith.constant dense<0.000000e+00> : vector<8x384xf32>
    %185 = tpu.matmul %177, %3, %cst_56 {dimension_numbers = #tpu.dot_dimension_numbers<[1], [0], [0], [1], [0, 0, 1, 1], [], []>} : vector<8x128xf32>, vector<128x384xf32>, vector<8x384xf32> -> vector<8x384xf32>
    %186 = vector.extract_strided_slice %184 {offsets = [0, 0], sizes = [8, 256], strides = [1, 1]} : vector<8x384xf32> to vector<8x256xf32>
    %187 = vector.extract_strided_slice %185 {offsets = [0, 0], sizes = [8, 256], strides = [1, 1]} : vector<8x384xf32> to vector<8x256xf32>
    %188 = arith.addf %186, %187 : vector<8x256xf32>
    %cst_57 = arith.constant 5.000000e-01 : f32
    %189 = vector.broadcast %cst_57 : f32 to vector<8x256xf32>
    %190 = arith.mulf %189, %188 : vector<8x256xf32>
    %191 = math.tanh %190 : vector<8x256xf32>
    %cst_58 = arith.constant 5.000000e-01 : f32
    %192 = vector.broadcast %cst_58 : f32 to vector<8x256xf32>
    %193 = arith.mulf %192, %191 : vector<8x256xf32>
    %cst_59 = arith.constant 5.000000e-01 : f32
    %194 = vector.broadcast %cst_59 : f32 to vector<8x256xf32>
    %195 = arith.addf %193, %194 : vector<8x256xf32>
    %196 = vector.extract_strided_slice %195 {offsets = [0, 0], sizes = [8, 128], strides = [1, 1]} : vector<8x256xf32> to vector<8x128xf32>
    %197 = vector.extract_strided_slice %195 {offsets = [0, 128], sizes = [8, 128], strides = [1, 1]} : vector<8x256xf32> to vector<8x128xf32>
    %198 = vector.extract_strided_slice %184 {offsets = [0, 256], sizes = [8, 128], strides = [1, 1]} : vector<8x384xf32> to vector<8x128xf32>
    %199 = vector.extract_strided_slice %185 {offsets = [0, 256], sizes = [8, 128], strides = [1, 1]} : vector<8x384xf32> to vector<8x128xf32>
    %200 = arith.addf %199, %6 : vector<8x128xf32>
    %201 = arith.mulf %196, %200 : vector<8x128xf32>
    %202 = arith.addf %198, %201 : vector<8x128xf32>
    %203 = math.tanh %202 : vector<8x128xf32>
    %204 = arith.subf %177, %203 : vector<8x128xf32>
    %205 = arith.mulf %197, %204 : vector<8x128xf32>
    %206 = arith.addf %203, %205 : vector<8x128xf32>
    %207 = arith.index_cast %c6_i32 : i32 to index
    %c0_60 = arith.constant 0 : index
    %c0_61 = arith.constant 0 : index
    %208 = vector.load %arg5[%207, %c0_60, %c0_61] : memref<8x8x128xf32, #tpu.memory_space<vmem>>, vector<1x8x128xf32>
    %209 = vector.shape_cast %208 : vector<1x8x128xf32> to vector<8x128xf32>
    %210 = vector.shape_cast %206 : vector<8x128xf32> to vector<1x8x128xf32>
    tpu.vector_store %arg5[%207, %c0_60, %c0_61], %210 {strides = array<i32>} : memref<8x8x128xf32, #tpu.memory_space<vmem>>, vector<1x8x128xf32>,
    %c7_i32 = arith.constant 7 : i32
    %211 = arith.index_cast %c7_i32 : i32 to index
    %c0_62 = arith.constant 0 : index
    %c0_63 = arith.constant 0 : index
    %212 = vector.load %arg2[%211, %c0_62, %c0_63] : memref<8x8x384xf32, #tpu.memory_space<vmem>>, vector<1x8x384xf32>
    %213 = vector.shape_cast %212 : vector<1x8x384xf32> to vector<8x384xf32>
    %cst_64 = arith.constant dense<0.000000e+00> : vector<8x384xf32>
    %214 = tpu.matmul %206, %3, %cst_64 {dimension_numbers = #tpu.dot_dimension_numbers<[1], [0], [0], [1], [0, 0, 1, 1], [], []>} : vector<8x128xf32>, vector<128x384xf32>, vector<8x384xf32> -> vector<8x384xf32>
    %215 = vector.extract_strided_slice %213 {offsets = [0, 0], sizes = [8, 256], strides = [1, 1]} : vector<8x384xf32> to vector<8x256xf32>
    %216 = vector.extract_strided_slice %214 {offsets = [0, 0], sizes = [8, 256], strides = [1, 1]} : vector<8x384xf32> to vector<8x256xf32>
    %217 = arith.addf %215, %216 : vector<8x256xf32>
    %cst_65 = arith.constant 5.000000e-01 : f32
    %218 = vector.broadcast %cst_65 : f32 to vector<8x256xf32>
    %219 = arith.mulf %218, %217 : vector<8x256xf32>
    %220 = math.tanh %219 : vector<8x256xf32>
    %cst_66 = arith.constant 5.000000e-01 : f32
    %221 = vector.broadcast %cst_66 : f32 to vector<8x256xf32>
    %222 = arith.mulf %221, %220 : vector<8x256xf32>
    %cst_67 = arith.constant 5.000000e-01 : f32
    %223 = vector.broadcast %cst_67 : f32 to vector<8x256xf32>
    %224 = arith.addf %222, %223 : vector<8x256xf32>
    %225 = vector.extract_strided_slice %224 {offsets = [0, 0], sizes = [8, 128], strides = [1, 1]} : vector<8x256xf32> to vector<8x128xf32>
    %226 = vector.extract_strided_slice %224 {offsets = [0, 128], sizes = [8, 128], strides = [1, 1]} : vector<8x256xf32> to vector<8x128xf32>
    %227 = vector.extract_strided_slice %213 {offsets = [0, 256], sizes = [8, 128], strides = [1, 1]} : vector<8x384xf32> to vector<8x128xf32>
    %228 = vector.extract_strided_slice %214 {offsets = [0, 256], sizes = [8, 128], strides = [1, 1]} : vector<8x384xf32> to vector<8x128xf32>
    %229 = arith.addf %228, %6 : vector<8x128xf32>
    %230 = arith.mulf %225, %229 : vector<8x128xf32>
    %231 = arith.addf %227, %230 : vector<8x128xf32>
    %232 = math.tanh %231 : vector<8x128xf32>
    %233 = arith.subf %206, %232 : vector<8x128xf32>
    %234 = arith.mulf %226, %233 : vector<8x128xf32>
    %235 = arith.addf %232, %234 : vector<8x128xf32>
    %236 = arith.index_cast %c7_i32 : i32 to index
    %c0_68 = arith.constant 0 : index
    %c0_69 = arith.constant 0 : index
    %237 = vector.load %arg5[%236, %c0_68, %c0_69] : memref<8x8x128xf32, #tpu.memory_space<vmem>>, vector<1x8x128xf32>
    %238 = vector.shape_cast %237 : vector<1x8x128xf32> to vector<8x128xf32>
    %239 = vector.shape_cast %235 : vector<8x128xf32> to vector<1x8x128xf32>
    tpu.vector_store %arg5[%236, %c0_68, %c0_69], %239 {strides = array<i32>} : memref<8x8x128xf32, #tpu.memory_space<vmem>>, vector<1x8x128xf32>,
    %c8_i32 = arith.constant 8 : i32
    %c0_70 = arith.constant 0 : index
    %c0_71 = arith.constant 0 : index
    %240 = vector.load %arg6[%c0_70, %c0_71] : memref<8x128xf32, #tpu.memory_space<vmem>>, vector<8x128xf32>
    tpu.vector_store %arg6[%c0_70, %c0_71], %235 {strides = array<i32>} : memref<8x128xf32, #tpu.memory_space<vmem>>, vector<8x128xf32>,
    return
  }
  func.func @transform_0(%arg0: i32, %arg1: i32) -> (i32, i32, i32) {
    %c0_i32 = arith.constant 0 : i32
    %c0_i32_0 = arith.constant 0 : i32
    return %arg1, %arg0, %c0_i32 : i32, i32, i32
  }
  func.func @transform_1(%arg0: i32, %arg1: i32) -> (i32, i32) {
    %c0_i32 = arith.constant 0 : i32
    %c0_i32_0 = arith.constant 0 : i32
    %c0_i32_1 = arith.constant 0 : i32
    return %c0_i32, %c0_i32_0 : i32, i32
  }
  func.func @transform_2(%arg0: i32, %arg1: i32) -> (i32, i32) {
    %c0_i32 = arith.constant 0 : i32
    %c0_i32_0 = arith.constant 0 : i32
    %c0_i32_1 = arith.constant 0 : i32
    return %c0_i32, %c0_i32_0 : i32, i32
  }
  func.func @transform_3(%arg0: i32, %arg1: i32) -> (i32, i32, i32) {
    %c0_i32 = arith.constant 0 : i32
    %c0_i32_0 = arith.constant 0 : i32
    return %arg1, %arg0, %c0_i32 : i32, i32, i32
  }
}

module attributes {stable_mosaic.version = 11 : i64} {
  func.func @_gru_kernel(%arg0: i32, %arg1: i32, %arg2: memref<8x8x384xf32, #tpu.memory_space<vmem>>, %arg3: memref<128x384xf32, #tpu.memory_space<vmem>>, %arg4: memref<1x128xf32, #tpu.memory_space<vmem>>, %arg5: memref<8x8x128xf32, #tpu.memory_space<vmem>>, %arg6: memref<8x128xf32, #tpu.memory_space<vmem>>) attributes {dimension_semantics = [#tpu.dimension_semantics<parallel>, #tpu.dimension_semantics<arbitrary>], iteration_bounds = array<i64: 1, 1>, scalar_prefetch = 0 : i64, scratch_operands = 1 : i64, tpu.core_type = #tpu.core_type<tc>, window_params = [{transform_indices = @transform_0, window_bounds = array<i64: 8, 8, 384>}, {pipeline_mode = #tpu.pipeline_mode<synchronous>, transform_indices = @transform_1, window_bounds = array<i64: 128, 384>}, {pipeline_mode = #tpu.pipeline_mode<synchronous>, transform_indices = @transform_2, window_bounds = array<i64: 1, 128>}, {transform_indices = @transform_3, window_bounds = array<i64: 8, 8, 128>}]} {
    %c0_i32 = arith.constant 0 : i32
    %0 = arith.cmpi eq, %arg1, %c0_i32 : i32
    %1 = arith.extui %0 : i1 to i32
    %c0_i32_0 = arith.constant 0 : i32
    %2 = arith.cmpi ne, %1, %c0_i32_0 : i32
    scf.if %2 {
      %cst_72 = arith.constant 0.000000e+00 : f32
      %241 = vector.broadcast %cst_72 : f32 to vector<8x128xf32>
      %c0_73 = arith.constant 0 : index
      %c0_74 = arith.constant 0 : index
      %242 = vector.load %arg6[%c0_73, %c0_74] : memref<8x128xf32, #tpu.memory_space<vmem>>, vector<8x128xf32>
      tpu.vector_store %arg6[%c0_73, %c0_74], %241 {strides = array<i32>} : memref<8x128xf32, #tpu.memory_space<vmem>>, vector<8x128xf32>,
    } else {
    }
    %c0 = arith.constant 0 : index
    %c0_1 = arith.constant 0 : index
    %3 = vector.load %arg3[%c0, %c0_1] : memref<128x384xf32, #tpu.memory_space<vmem>>, vector<128x384xf32>
    %c0_2 = arith.constant 0 : index
    %c0_3 = arith.constant 0 : index
    %4 = vector.load %arg4[%c0_2, %c0_3] : memref<1x128xf32, #tpu.memory_space<vmem>>, vector<1x128xf32>
    %5 = vector.shape_cast %4 : vector<1x128xf32> to vector<1x128xf32>
    %6 = vector.broadcast %5 : vector<1x128xf32> to vector<8x128xf32>
    %c0_4 = arith.constant 0 : index
    %c0_5 = arith.constant 0 : index
    %7 = vector.load %arg6[%c0_4, %c0_5] : memref<8x128xf32, #tpu.memory_space<vmem>>, vector<8x128xf32>
    %c0_i32_6 = arith.constant 0 : i32
    %8 = arith.index_cast %c0_i32_6 : i32 to index
    %c0_7 = arith.constant 0 : index
    %c0_8 = arith.constant 0 : index
    %9 = vector.load %arg2[%8, %c0_7, %c0_8] : memref<8x8x384xf32, #tpu.memory_space<vmem>>, vector<1x8x384xf32>
    %10 = vector.shape_cast %9 : vector<1x8x384xf32> to vector<8x384xf32>
    %cst = arith.constant dense<0.000000e+00> : vector<8x384xf32>
    %11 = tpu.matmul %7, %3, %cst {dimension_numbers = #tpu.dot_dimension_numbers<[1], [0], [0], [1], [0, 0, 1, 1], [], []>} : vector<8x128xf32>, vector<128x384xf32>, vector<8x384xf32> -> vector<8x384xf32>
    %12 = vector.extract_strided_slice %10 {offsets = [0, 0], sizes = [8, 256], strides = [1, 1]} : vector<8x384xf32> to vector<8x256xf32>
    %13 = vector.extract_strided_slice %11 {offsets = [0, 0], sizes = [8, 256], strides = [1, 1]} : vector<8x384xf32> to vector<8x256xf32>
    %14 = arith.addf %12, %13 : vector<8x256xf32>
    %cst_9 = arith.constant 5.000000e-01 : f32
    %15 = vector.broadcast %cst_9 : f32 to vector<8x256xf32>
    %16 = arith.mulf %15, %14 : vector<8x256xf32>
    %17 = math.tanh %16 : vector<8x256xf32>
    %cst_10 = arith.constant 5.000000e-01 : f32
    %18 = vector.broadcast %cst_10 : f32 to vector<8x256xf32>
    %19 = arith.mulf %18, %17 : vector<8x256xf32>
    %cst_11 = arith.constant 5.000000e-01 : f32
    %20 = vector.broadcast %cst_11 : f32 to vector<8x256xf32>
    %21 = arith.addf %19, %20 : vector<8x256xf32>
    %22 = vector.extract_strided_slice %21 {offsets = [0, 0], sizes = [8, 128], strides = [1, 1]} : vector<8x256xf32> to vector<8x128xf32>
    %23 = vector.extract_strided_slice %21 {offsets = [0, 128], sizes = [8, 128], strides = [1, 1]} : vector<8x256xf32> to vector<8x128xf32>
    %24 = vector.extract_strided_slice %10 {offsets = [0, 256], sizes = [8, 128], strides = [1, 1]} : vector<8x384xf32> to vector<8x128xf32>
    %25 = vector.extract_strided_slice %11 {offsets = [0, 256], sizes = [8, 128], strides = [1, 1]} : vector<8x384xf32> to vector<8x128xf32>
    %26 = arith.addf %25, %6 : vector<8x128xf32>
    %27 = arith.mulf %22, %26 : vector<8x128xf32>
    %28 = arith.addf %24, %27 : vector<8x128xf32>
    %29 = math.tanh %28 : vector<8x128xf32>
    %30 = arith.subf %7, %29 : vector<8x128xf32>
    %31 = arith.mulf %23, %30 : vector<8x128xf32>
    %32 = arith.addf %29, %31 : vector<8x128xf32>
    %33 = arith.index_cast %c0_i32_6 : i32 to index
    %c0_12 = arith.constant 0 : index
    %c0_13 = arith.constant 0 : index
    %34 = vector.load %arg5[%33, %c0_12, %c0_13] : memref<8x8x128xf32, #tpu.memory_space<vmem>>, vector<1x8x128xf32>
    %35 = vector.shape_cast %34 : vector<1x8x128xf32> to vector<8x128xf32>
    %36 = vector.shape_cast %32 : vector<8x128xf32> to vector<1x8x128xf32>
    tpu.vector_store %arg5[%33, %c0_12, %c0_13], %36 {strides = array<i32>} : memref<8x8x128xf32, #tpu.memory_space<vmem>>, vector<1x8x128xf32>,
    %c1_i32 = arith.constant 1 : i32
    %37 = arith.index_cast %c1_i32 : i32 to index
    %c0_14 = arith.constant 0 : index
    %c0_15 = arith.constant 0 : index
    %38 = vector.load %arg2[%37, %c0_14, %c0_15] : memref<8x8x384xf32, #tpu.memory_space<vmem>>, vector<1x8x384xf32>
    %39 = vector.shape_cast %38 : vector<1x8x384xf32> to vector<8x384xf32>
    %cst_16 = arith.constant dense<0.000000e+00> : vector<8x384xf32>
    %40 = tpu.matmul %32, %3, %cst_16 {dimension_numbers = #tpu.dot_dimension_numbers<[1], [0], [0], [1], [0, 0, 1, 1], [], []>} : vector<8x128xf32>, vector<128x384xf32>, vector<8x384xf32> -> vector<8x384xf32>
    %41 = vector.extract_strided_slice %39 {offsets = [0, 0], sizes = [8, 256], strides = [1, 1]} : vector<8x384xf32> to vector<8x256xf32>
    %42 = vector.extract_strided_slice %40 {offsets = [0, 0], sizes = [8, 256], strides = [1, 1]} : vector<8x384xf32> to vector<8x256xf32>
    %43 = arith.addf %41, %42 : vector<8x256xf32>
    %cst_17 = arith.constant 5.000000e-01 : f32
    %44 = vector.broadcast %cst_17 : f32 to vector<8x256xf32>
    %45 = arith.mulf %44, %43 : vector<8x256xf32>
    %46 = math.tanh %45 : vector<8x256xf32>
    %cst_18 = arith.constant 5.000000e-01 : f32
    %47 = vector.broadcast %cst_18 : f32 to vector<8x256xf32>
    %48 = arith.mulf %47, %46 : vector<8x256xf32>
    %cst_19 = arith.constant 5.000000e-01 : f32
    %49 = vector.broadcast %cst_19 : f32 to vector<8x256xf32>
    %50 = arith.addf %48, %49 : vector<8x256xf32>
    %51 = vector.extract_strided_slice %50 {offsets = [0, 0], sizes = [8, 128], strides = [1, 1]} : vector<8x256xf32> to vector<8x128xf32>
    %52 = vector.extract_strided_slice %50 {offsets = [0, 128], sizes = [8, 128], strides = [1, 1]} : vector<8x256xf32> to vector<8x128xf32>
    %53 = vector.extract_strided_slice %39 {offsets = [0, 256], sizes = [8, 128], strides = [1, 1]} : vector<8x384xf32> to vector<8x128xf32>
    %54 = vector.extract_strided_slice %40 {offsets = [0, 256], sizes = [8, 128], strides = [1, 1]} : vector<8x384xf32> to vector<8x128xf32>
    %55 = arith.addf %54, %6 : vector<8x128xf32>
    %56 = arith.mulf %51, %55 : vector<8x128xf32>
    %57 = arith.addf %53, %56 : vector<8x128xf32>
    %58 = math.tanh %57 : vector<8x128xf32>
    %59 = arith.subf %32, %58 : vector<8x128xf32>
    %60 = arith.mulf %52, %59 : vector<8x128xf32>
    %61 = arith.addf %58, %60 : vector<8x128xf32>
    %62 = arith.index_cast %c1_i32 : i32 to index
    %c0_20 = arith.constant 0 : index
    %c0_21 = arith.constant 0 : index
    %63 = vector.load %arg5[%62, %c0_20, %c0_21] : memref<8x8x128xf32, #tpu.memory_space<vmem>>, vector<1x8x128xf32>
    %64 = vector.shape_cast %63 : vector<1x8x128xf32> to vector<8x128xf32>
    %65 = vector.shape_cast %61 : vector<8x128xf32> to vector<1x8x128xf32>
    tpu.vector_store %arg5[%62, %c0_20, %c0_21], %65 {strides = array<i32>} : memref<8x8x128xf32, #tpu.memory_space<vmem>>, vector<1x8x128xf32>,
    %c2_i32 = arith.constant 2 : i32
    %66 = arith.index_cast %c2_i32 : i32 to index
    %c0_22 = arith.constant 0 : index
    %c0_23 = arith.constant 0 : index
    %67 = vector.load %arg2[%66, %c0_22, %c0_23] : memref<8x8x384xf32, #tpu.memory_space<vmem>>, vector<1x8x384xf32>
    %68 = vector.shape_cast %67 : vector<1x8x384xf32> to vector<8x384xf32>
    %cst_24 = arith.constant dense<0.000000e+00> : vector<8x384xf32>
    %69 = tpu.matmul %61, %3, %cst_24 {dimension_numbers = #tpu.dot_dimension_numbers<[1], [0], [0], [1], [0, 0, 1, 1], [], []>} : vector<8x128xf32>, vector<128x384xf32>, vector<8x384xf32> -> vector<8x384xf32>
    %70 = vector.extract_strided_slice %68 {offsets = [0, 0], sizes = [8, 256], strides = [1, 1]} : vector<8x384xf32> to vector<8x256xf32>
    %71 = vector.extract_strided_slice %69 {offsets = [0, 0], sizes = [8, 256], strides = [1, 1]} : vector<8x384xf32> to vector<8x256xf32>
    %72 = arith.addf %70, %71 : vector<8x256xf32>
    %cst_25 = arith.constant 5.000000e-01 : f32
    %73 = vector.broadcast %cst_25 : f32 to vector<8x256xf32>
    %74 = arith.mulf %73, %72 : vector<8x256xf32>
    %75 = math.tanh %74 : vector<8x256xf32>
    %cst_26 = arith.constant 5.000000e-01 : f32
    %76 = vector.broadcast %cst_26 : f32 to vector<8x256xf32>
    %77 = arith.mulf %76, %75 : vector<8x256xf32>
    %cst_27 = arith.constant 5.000000e-01 : f32
    %78 = vector.broadcast %cst_27 : f32 to vector<8x256xf32>
    %79 = arith.addf %77, %78 : vector<8x256xf32>
    %80 = vector.extract_strided_slice %79 {offsets = [0, 0], sizes = [8, 128], strides = [1, 1]} : vector<8x256xf32> to vector<8x128xf32>
    %81 = vector.extract_strided_slice %79 {offsets = [0, 128], sizes = [8, 128], strides = [1, 1]} : vector<8x256xf32> to vector<8x128xf32>
    %82 = vector.extract_strided_slice %68 {offsets = [0, 256], sizes = [8, 128], strides = [1, 1]} : vector<8x384xf32> to vector<8x128xf32>
    %83 = vector.extract_strided_slice %69 {offsets = [0, 256], sizes = [8, 128], strides = [1, 1]} : vector<8x384xf32> to vector<8x128xf32>
    %84 = arith.addf %83, %6 : vector<8x128xf32>
    %85 = arith.mulf %80, %84 : vector<8x128xf32>
    %86 = arith.addf %82, %85 : vector<8x128xf32>
    %87 = math.tanh %86 : vector<8x128xf32>
    %88 = arith.subf %61, %87 : vector<8x128xf32>
    %89 = arith.mulf %81, %88 : vector<8x128xf32>
    %90 = arith.addf %87, %89 : vector<8x128xf32>
    %91 = arith.index_cast %c2_i32 : i32 to index
    %c0_28 = arith.constant 0 : index
    %c0_29 = arith.constant 0 : index
    %92 = vector.load %arg5[%91, %c0_28, %c0_29] : memref<8x8x128xf32, #tpu.memory_space<vmem>>, vector<1x8x128xf32>
    %93 = vector.shape_cast %92 : vector<1x8x128xf32> to vector<8x128xf32>
    %94 = vector.shape_cast %90 : vector<8x128xf32> to vector<1x8x128xf32>
    tpu.vector_store %arg5[%91, %c0_28, %c0_29], %94 {strides = array<i32>} : memref<8x8x128xf32, #tpu.memory_space<vmem>>, vector<1x8x128xf32>,
    %c3_i32 = arith.constant 3 : i32
    %95 = arith.index_cast %c3_i32 : i32 to index
    %c0_30 = arith.constant 0 : index
    %c0_31 = arith.constant 0 : index
    %96 = vector.load %arg2[%95, %c0_30, %c0_31] : memref<8x8x384xf32, #tpu.memory_space<vmem>>, vector<1x8x384xf32>
    %97 = vector.shape_cast %96 : vector<1x8x384xf32> to vector<8x384xf32>
    %cst_32 = arith.constant dense<0.000000e+00> : vector<8x384xf32>
    %98 = tpu.matmul %90, %3, %cst_32 {dimension_numbers = #tpu.dot_dimension_numbers<[1], [0], [0], [1], [0, 0, 1, 1], [], []>} : vector<8x128xf32>, vector<128x384xf32>, vector<8x384xf32> -> vector<8x384xf32>
    %99 = vector.extract_strided_slice %97 {offsets = [0, 0], sizes = [8, 256], strides = [1, 1]} : vector<8x384xf32> to vector<8x256xf32>
    %100 = vector.extract_strided_slice %98 {offsets = [0, 0], sizes = [8, 256], strides = [1, 1]} : vector<8x384xf32> to vector<8x256xf32>
    %101 = arith.addf %99, %100 : vector<8x256xf32>
    %cst_33 = arith.constant 5.000000e-01 : f32
    %102 = vector.broadcast %cst_33 : f32 to vector<8x256xf32>
    %103 = arith.mulf %102, %101 : vector<8x256xf32>
    %104 = math.tanh %103 : vector<8x256xf32>
    %cst_34 = arith.constant 5.000000e-01 : f32
    %105 = vector.broadcast %cst_34 : f32 to vector<8x256xf32>
    %106 = arith.mulf %105, %104 : vector<8x256xf32>
    %cst_35 = arith.constant 5.000000e-01 : f32
    %107 = vector.broadcast %cst_35 : f32 to vector<8x256xf32>
    %108 = arith.addf %106, %107 : vector<8x256xf32>
    %109 = vector.extract_strided_slice %108 {offsets = [0, 0], sizes = [8, 128], strides = [1, 1]} : vector<8x256xf32> to vector<8x128xf32>
    %110 = vector.extract_strided_slice %108 {offsets = [0, 128], sizes = [8, 128], strides = [1, 1]} : vector<8x256xf32> to vector<8x128xf32>
    %111 = vector.extract_strided_slice %97 {offsets = [0, 256], sizes = [8, 128], strides = [1, 1]} : vector<8x384xf32> to vector<8x128xf32>
    %112 = vector.extract_strided_slice %98 {offsets = [0, 256], sizes = [8, 128], strides = [1, 1]} : vector<8x384xf32> to vector<8x128xf32>
    %113 = arith.addf %112, %6 : vector<8x128xf32>
    %114 = arith.mulf %109, %113 : vector<8x128xf32>
    %115 = arith.addf %111, %114 : vector<8x128xf32>
    %116 = math.tanh %115 : vector<8x128xf32>
    %117 = arith.subf %90, %116 : vector<8x128xf32>
    %118 = arith.mulf %110, %117 : vector<8x128xf32>
    %119 = arith.addf %116, %118 : vector<8x128xf32>
    %120 = arith.index_cast %c3_i32 : i32 to index
    %c0_36 = arith.constant 0 : index
    %c0_37 = arith.constant 0 : index
    %121 = vector.load %arg5[%120, %c0_36, %c0_37] : memref<8x8x128xf32, #tpu.memory_space<vmem>>, vector<1x8x128xf32>
    %122 = vector.shape_cast %121 : vector<1x8x128xf32> to vector<8x128xf32>
    %123 = vector.shape_cast %119 : vector<8x128xf32> to vector<1x8x128xf32>
    tpu.vector_store %arg5[%120, %c0_36, %c0_37], %123 {strides = array<i32>} : memref<8x8x128xf32, #tpu.memory_space<vmem>>, vector<1x8x128xf32>,
    %c4_i32 = arith.constant 4 : i32
    %124 = arith.index_cast %c4_i32 : i32 to index
    %c0_38 = arith.constant 0 : index
    %c0_39 = arith.constant 0 : index
    %125 = vector.load %arg2[%124, %c0_38, %c0_39] : memref<8x8x384xf32, #tpu.memory_space<vmem>>, vector<1x8x384xf32>
    %126 = vector.shape_cast %125 : vector<1x8x384xf32> to vector<8x384xf32>
    %cst_40 = arith.constant dense<0.000000e+00> : vector<8x384xf32>
    %127 = tpu.matmul %119, %3, %cst_40 {dimension_numbers = #tpu.dot_dimension_numbers<[1], [0], [0], [1], [0, 0, 1, 1], [], []>} : vector<8x128xf32>, vector<128x384xf32>, vector<8x384xf32> -> vector<8x384xf32>
    %128 = vector.extract_strided_slice %126 {offsets = [0, 0], sizes = [8, 256], strides = [1, 1]} : vector<8x384xf32> to vector<8x256xf32>
    %129 = vector.extract_strided_slice %127 {offsets = [0, 0], sizes = [8, 256], strides = [1, 1]} : vector<8x384xf32> to vector<8x256xf32>
    %130 = arith.addf %128, %129 : vector<8x256xf32>
    %cst_41 = arith.constant 5.000000e-01 : f32
    %131 = vector.broadcast %cst_41 : f32 to vector<8x256xf32>
    %132 = arith.mulf %131, %130 : vector<8x256xf32>
    %133 = math.tanh %132 : vector<8x256xf32>
    %cst_42 = arith.constant 5.000000e-01 : f32
    %134 = vector.broadcast %cst_42 : f32 to vector<8x256xf32>
    %135 = arith.mulf %134, %133 : vector<8x256xf32>
    %cst_43 = arith.constant 5.000000e-01 : f32
    %136 = vector.broadcast %cst_43 : f32 to vector<8x256xf32>
    %137 = arith.addf %135, %136 : vector<8x256xf32>
    %138 = vector.extract_strided_slice %137 {offsets = [0, 0], sizes = [8, 128], strides = [1, 1]} : vector<8x256xf32> to vector<8x128xf32>
    %139 = vector.extract_strided_slice %137 {offsets = [0, 128], sizes = [8, 128], strides = [1, 1]} : vector<8x256xf32> to vector<8x128xf32>
    %140 = vector.extract_strided_slice %126 {offsets = [0, 256], sizes = [8, 128], strides = [1, 1]} : vector<8x384xf32> to vector<8x128xf32>
    %141 = vector.extract_strided_slice %127 {offsets = [0, 256], sizes = [8, 128], strides = [1, 1]} : vector<8x384xf32> to vector<8x128xf32>
    %142 = arith.addf %141, %6 : vector<8x128xf32>
    %143 = arith.mulf %138, %142 : vector<8x128xf32>
    %144 = arith.addf %140, %143 : vector<8x128xf32>
    %145 = math.tanh %144 : vector<8x128xf32>
    %146 = arith.subf %119, %145 : vector<8x128xf32>
    %147 = arith.mulf %139, %146 : vector<8x128xf32>
    %148 = arith.addf %145, %147 : vector<8x128xf32>
    %149 = arith.index_cast %c4_i32 : i32 to index
    %c0_44 = arith.constant 0 : index
    %c0_45 = arith.constant 0 : index
    %150 = vector.load %arg5[%149, %c0_44, %c0_45] : memref<8x8x128xf32, #tpu.memory_space<vmem>>, vector<1x8x128xf32>
    %151 = vector.shape_cast %150 : vector<1x8x128xf32> to vector<8x128xf32>
    %152 = vector.shape_cast %148 : vector<8x128xf32> to vector<1x8x128xf32>
    tpu.vector_store %arg5[%149, %c0_44, %c0_45], %152 {strides = array<i32>} : memref<8x8x128xf32, #tpu.memory_space<vmem>>, vector<1x8x128xf32>,
    %c5_i32 = arith.constant 5 : i32
    %153 = arith.index_cast %c5_i32 : i32 to index
    %c0_46 = arith.constant 0 : index
    %c0_47 = arith.constant 0 : index
    %154 = vector.load %arg2[%153, %c0_46, %c0_47] : memref<8x8x384xf32, #tpu.memory_space<vmem>>, vector<1x8x384xf32>
    %155 = vector.shape_cast %154 : vector<1x8x384xf32> to vector<8x384xf32>
    %cst_48 = arith.constant dense<0.000000e+00> : vector<8x384xf32>
    %156 = tpu.matmul %148, %3, %cst_48 {dimension_numbers = #tpu.dot_dimension_numbers<[1], [0], [0], [1], [0, 0, 1, 1], [], []>} : vector<8x128xf32>, vector<128x384xf32>, vector<8x384xf32> -> vector<8x384xf32>
    %157 = vector.extract_strided_slice %155 {offsets = [0, 0], sizes = [8, 256], strides = [1, 1]} : vector<8x384xf32> to vector<8x256xf32>
    %158 = vector.extract_strided_slice %156 {offsets = [0, 0], sizes = [8, 256], strides = [1, 1]} : vector<8x384xf32> to vector<8x256xf32>
    %159 = arith.addf %157, %158 : vector<8x256xf32>
    %cst_49 = arith.constant 5.000000e-01 : f32
    %160 = vector.broadcast %cst_49 : f32 to vector<8x256xf32>
    %161 = arith.mulf %160, %159 : vector<8x256xf32>
    %162 = math.tanh %161 : vector<8x256xf32>
    %cst_50 = arith.constant 5.000000e-01 : f32
    %163 = vector.broadcast %cst_50 : f32 to vector<8x256xf32>
    %164 = arith.mulf %163, %162 : vector<8x256xf32>
    %cst_51 = arith.constant 5.000000e-01 : f32
    %165 = vector.broadcast %cst_51 : f32 to vector<8x256xf32>
    %166 = arith.addf %164, %165 : vector<8x256xf32>
    %167 = vector.extract_strided_slice %166 {offsets = [0, 0], sizes = [8, 128], strides = [1, 1]} : vector<8x256xf32> to vector<8x128xf32>
    %168 = vector.extract_strided_slice %166 {offsets = [0, 128], sizes = [8, 128], strides = [1, 1]} : vector<8x256xf32> to vector<8x128xf32>
    %169 = vector.extract_strided_slice %155 {offsets = [0, 256], sizes = [8, 128], strides = [1, 1]} : vector<8x384xf32> to vector<8x128xf32>
    %170 = vector.extract_strided_slice %156 {offsets = [0, 256], sizes = [8, 128], strides = [1, 1]} : vector<8x384xf32> to vector<8x128xf32>
    %171 = arith.addf %170, %6 : vector<8x128xf32>
    %172 = arith.mulf %167, %171 : vector<8x128xf32>
    %173 = arith.addf %169, %172 : vector<8x128xf32>
    %174 = math.tanh %173 : vector<8x128xf32>
    %175 = arith.subf %148, %174 : vector<8x128xf32>
    %176 = arith.mulf %168, %175 : vector<8x128xf32>
    %177 = arith.addf %174, %176 : vector<8x128xf32>
    %178 = arith.index_cast %c5_i32 : i32 to index
    %c0_52 = arith.constant 0 : index
    %c0_53 = arith.constant 0 : index
    %179 = vector.load %arg5[%178, %c0_52, %c0_53] : memref<8x8x128xf32, #tpu.memory_space<vmem>>, vector<1x8x128xf32>
    %180 = vector.shape_cast %179 : vector<1x8x128xf32> to vector<8x128xf32>
    %181 = vector.shape_cast %177 : vector<8x128xf32> to vector<1x8x128xf32>
    tpu.vector_store %arg5[%178, %c0_52, %c0_53], %181 {strides = array<i32>} : memref<8x8x128xf32, #tpu.memory_space<vmem>>, vector<1x8x128xf32>,
    %c6_i32 = arith.constant 6 : i32
    %182 = arith.index_cast %c6_i32 : i32 to index
    %c0_54 = arith.constant 0 : index
    %c0_55 = arith.constant 0 : index
    %183 = vector.load %arg2[%182, %c0_54, %c0_55] : memref<8x8x384xf32, #tpu.memory_space<vmem>>, vector<1x8x384xf32>
    %184 = vector.shape_cast %183 : vector<1x8x384xf32> to vector<8x384xf32>
    %cst_56 = arith.constant dense<0.000000e+00> : vector<8x384xf32>
    %185 = tpu.matmul %177, %3, %cst_56 {dimension_numbers = #tpu.dot_dimension_numbers<[1], [0], [0], [1], [0, 0, 1, 1], [], []>} : vector<8x128xf32>, vector<128x384xf32>, vector<8x384xf32> -> vector<8x384xf32>
    %186 = vector.extract_strided_slice %184 {offsets = [0, 0], sizes = [8, 256], strides = [1, 1]} : vector<8x384xf32> to vector<8x256xf32>
    %187 = vector.extract_strided_slice %185 {offsets = [0, 0], sizes = [8, 256], strides = [1, 1]} : vector<8x384xf32> to vector<8x256xf32>
    %188 = arith.addf %186, %187 : vector<8x256xf32>
    %cst_57 = arith.constant 5.000000e-01 : f32
    %189 = vector.broadcast %cst_57 : f32 to vector<8x256xf32>
    %190 = arith.mulf %189, %188 : vector<8x256xf32>
    %191 = math.tanh %190 : vector<8x256xf32>
    %cst_58 = arith.constant 5.000000e-01 : f32
    %192 = vector.broadcast %cst_58 : f32 to vector<8x256xf32>
    %193 = arith.mulf %192, %191 : vector<8x256xf32>
    %cst_59 = arith.constant 5.000000e-01 : f32
    %194 = vector.broadcast %cst_59 : f32 to vector<8x256xf32>
    %195 = arith.addf %193, %194 : vector<8x256xf32>
    %196 = vector.extract_strided_slice %195 {offsets = [0, 0], sizes = [8, 128], strides = [1, 1]} : vector<8x256xf32> to vector<8x128xf32>
    %197 = vector.extract_strided_slice %195 {offsets = [0, 128], sizes = [8, 128], strides = [1, 1]} : vector<8x256xf32> to vector<8x128xf32>
    %198 = vector.extract_strided_slice %184 {offsets = [0, 256], sizes = [8, 128], strides = [1, 1]} : vector<8x384xf32> to vector<8x128xf32>
    %199 = vector.extract_strided_slice %185 {offsets = [0, 256], sizes = [8, 128], strides = [1, 1]} : vector<8x384xf32> to vector<8x128xf32>
    %200 = arith.addf %199, %6 : vector<8x128xf32>
    %201 = arith.mulf %196, %200 : vector<8x128xf32>
    %202 = arith.addf %198, %201 : vector<8x128xf32>
    %203 = math.tanh %202 : vector<8x128xf32>
    %204 = arith.subf %177, %203 : vector<8x128xf32>
    %205 = arith.mulf %197, %204 : vector<8x128xf32>
    %206 = arith.addf %203, %205 : vector<8x128xf32>
    %207 = arith.index_cast %c6_i32 : i32 to index
    %c0_60 = arith.constant 0 : index
    %c0_61 = arith.constant 0 : index
    %208 = vector.load %arg5[%207, %c0_60, %c0_61] : memref<8x8x128xf32, #tpu.memory_space<vmem>>, vector<1x8x128xf32>
    %209 = vector.shape_cast %208 : vector<1x8x128xf32> to vector<8x128xf32>
    %210 = vector.shape_cast %206 : vector<8x128xf32> to vector<1x8x128xf32>
    tpu.vector_store %arg5[%207, %c0_60, %c0_61], %210 {strides = array<i32>} : memref<8x8x128xf32, #tpu.memory_space<vmem>>, vector<1x8x128xf32>,
    %c7_i32 = arith.constant 7 : i32
    %211 = arith.index_cast %c7_i32 : i32 to index
    %c0_62 = arith.constant 0 : index
    %c0_63 = arith.constant 0 : index
    %212 = vector.load %arg2[%211, %c0_62, %c0_63] : memref<8x8x384xf32, #tpu.memory_space<vmem>>, vector<1x8x384xf32>
    %213 = vector.shape_cast %212 : vector<1x8x384xf32> to vector<8x384xf32>
    %cst_64 = arith.constant dense<0.000000e+00> : vector<8x384xf32>
    %214 = tpu.matmul %206, %3, %cst_64 {dimension_numbers = #tpu.dot_dimension_numbers<[1], [0], [0], [1], [0, 0, 1, 1], [], []>} : vector<8x128xf32>, vector<128x384xf32>, vector<8x384xf32> -> vector<8x384xf32>
    %215 = vector.extract_strided_slice %213 {offsets = [0, 0], sizes = [8, 256], strides = [1, 1]} : vector<8x384xf32> to vector<8x256xf32>
    %216 = vector.extract_strided_slice %214 {offsets = [0, 0], sizes = [8, 256], strides = [1, 1]} : vector<8x384xf32> to vector<8x256xf32>
    %217 = arith.addf %215, %216 : vector<8x256xf32>
    %cst_65 = arith.constant 5.000000e-01 : f32
    %218 = vector.broadcast %cst_65 : f32 to vector<8x256xf32>
    %219 = arith.mulf %218, %217 : vector<8x256xf32>
    %220 = math.tanh %219 : vector<8x256xf32>
    %cst_66 = arith.constant 5.000000e-01 : f32
    %221 = vector.broadcast %cst_66 : f32 to vector<8x256xf32>
    %222 = arith.mulf %221, %220 : vector<8x256xf32>
    %cst_67 = arith.constant 5.000000e-01 : f32
    %223 = vector.broadcast %cst_67 : f32 to vector<8x256xf32>
    %224 = arith.addf %222, %223 : vector<8x256xf32>
    %225 = vector.extract_strided_slice %224 {offsets = [0, 0], sizes = [8, 128], strides = [1, 1]} : vector<8x256xf32> to vector<8x128xf32>
    %226 = vector.extract_strided_slice %224 {offsets = [0, 128], sizes = [8, 128], strides = [1, 1]} : vector<8x256xf32> to vector<8x128xf32>
    %227 = vector.extract_strided_slice %213 {offsets = [0, 256], sizes = [8, 128], strides = [1, 1]} : vector<8x384xf32> to vector<8x128xf32>
    %228 = vector.extract_strided_slice %214 {offsets = [0, 256], sizes = [8, 128], strides = [1, 1]} : vector<8x384xf32> to vector<8x128xf32>
    %229 = arith.addf %228, %6 : vector<8x128xf32>
    %230 = arith.mulf %225, %229 : vector<8x128xf32>
    %231 = arith.addf %227, %230 : vector<8x128xf32>
    %232 = math.tanh %231 : vector<8x128xf32>
    %233 = arith.subf %206, %232 : vector<8x128xf32>
    %234 = arith.mulf %226, %233 : vector<8x128xf32>
    %235 = arith.addf %232, %234 : vector<8x128xf32>
    %236 = arith.index_cast %c7_i32 : i32 to index
    %c0_68 = arith.constant 0 : index
    %c0_69 = arith.constant 0 : index
    %237 = vector.load %arg5[%236, %c0_68, %c0_69] : memref<8x8x128xf32, #tpu.memory_space<vmem>>, vector<1x8x128xf32>
    %238 = vector.shape_cast %237 : vector<1x8x128xf32> to vector<8x128xf32>
    %239 = vector.shape_cast %235 : vector<8x128xf32> to vector<1x8x128xf32>
    tpu.vector_store %arg5[%236, %c0_68, %c0_69], %239 {strides = array<i32>} : memref<8x8x128xf32, #tpu.memory_space<vmem>>, vector<1x8x128xf32>,
    %c8_i32 = arith.constant 8 : i32
    %c0_70 = arith.constant 0 : index
    %c0_71 = arith.constant 0 : index
    %240 = vector.load %arg6[%c0_70, %c0_71] : memref<8x128xf32, #tpu.memory_space<vmem>>, vector<8x128xf32>
    tpu.vector_store %arg6[%c0_70, %c0_71], %235 {strides = array<i32>} : memref<8x128xf32, #tpu.memory_space<vmem>>, vector<8x128xf32>,
    return
  }
  func.func @transform_0(%arg0: i32, %arg1: i32) -> (i32, i32, i32) {
    %c0_i32 = arith.constant 0 : i32
    %c0_i32_0 = arith.constant 0 : i32
    return %arg1, %arg0, %c0_i32 : i32, i32, i32
  }
  func.func @transform_1(%arg0: i32, %arg1: i32) -> (i32, i32) {
    %c0_i32 = arith.constant 0 : i32
    %c0_i32_0 = arith.constant 0 : i32
    %c0_i32_1 = arith.constant 0 : i32
    return %c0_i32, %c0_i32_0 : i32, i32
  }
  func.func @transform_2(%arg0: i32, %arg1: i32) -> (i32, i32) {
    %c0_i32 = arith.constant 0 : i32
    %c0_i32_0 = arith.constant 0 : i32
    %c0_i32_1 = arith.constant 0 : i32
    return %c0_i32, %c0_i32_0 : i32, i32
  }
  func.func @transform_3(%arg0: i32, %arg1: i32) -> (i32, i32, i32) {
    %c0_i32 = arith.constant 0 : i32
    %c0_i32_0 = arith.constant 0 : i32
    return %arg1, %arg0, %c0_i32 : i32, i32, i32
  }
}

</mosaic_0001>

<llo_original>
// kernel: tpu_custom_call.1
$region0: #{tpu_custom_call.1}
  #allocation0 [shape = 'u32[]', space=smem, size = 0x4, offset = 0x4, fixed_abs, tag = 'smem constant byte address 0x4 - core index']
  #allocation1 [shape = 'u32[144,128]{1,0:T(1,128)}', space=vmem, size = 0x12000, scoped, tag = 'internal scratch']
  #allocation2 [shape = 'f32[8,128]{1,0:T(8,128)}', space=vmem, size = 0x1000, scoped, tag = 'scratch operand']
  %s0 = inlined_call_operand.hbm [shape: f32[8,8,384], index: 0, kind: input, shape index: {}]
  %s1 = inlined_call_operand.hbm [shape: f32[128,384], index: 1, kind: input, shape index: {}]
  %s2 = inlined_call_operand.vmem [shape: f32[1,128], index: 2, kind: input, shape index: {}]
  %s3 = inlined_call_operand.hbm [shape: f32[8,8,128], index: 3, kind: output, shape index: {}]
  %s4 = sld [smem:[#allocation0]]
  $region34: #{tpu_custom_call.1} parent=0
    _
  %s6 = ssub.s32 1, %s4
  %s7 = scalar_select 0, %s6, %s4
  $region1: #{tpu_custom_call.1} parent=0
    #allocation3 [shape = 'u8[98304]{0}', space=vmem, size = 0x18000, scoped, tag = 'input window, operand 0, single buffered']
    #allocation4 [shape = 's32[1]{0}', space=sflag, size = 0x4, scoped, tag = 'scoped memory for tpu_custom_call.1']
    #allocation5 [shape = 's32[1]{0}', space=sflag, size = 0x4, scoped, tag = 'scoped memory for tpu_custom_call.1']
    #allocation6 [shape = 'u8[196608]{0}', space=vmem, size = 0x30000, scoped, tag = 'input window, operand 1, single buffered']
    #allocation7 [shape = 's32[1]{0}', space=sflag, size = 0x4, scoped, tag = 'scoped memory for tpu_custom_call.1']
    #allocation8 [shape = 'u8[32768]{0}', space=vmem, size = 0x8000, scoped, tag = 'output window, operand 0, single buffered']
    %8 = vsyncpa [#allocation4], 0
    %9 = vsyncpa [#allocation7], 0
    %10 = vsyncpa [#allocation5], 0
    // Predicated region
    $region2: #{tpu_custom_call.1} parent=1 // pred_check
      _
    $region3: #{tpu_custom_call.1} parent=1 // pred_check_branch
      %12 = sbr.rel (0) target = $region5
    $region4: #{tpu_custom_call.1} parent=1 // pred_region
      %s14 = ssub.s32 3072, 3072
      %15 = vsyncadd [#allocation4], %s14
      %s16 = sshll.u32 [#allocation3], 4
      %s17 = int_to_ptr.vmem [resolvable:$true] %s16
      %22 = dma.hbm_to_vmem [thread:$0]  %s0, 3072, %s17, [#allocation4], 384, 384, 24
    $region5: #{tpu_custom_call.1} parent=1 // pred_fallthru
      _
    // Predicated region
    $region6: #{tpu_custom_call.1} parent=1 // pred_check
      _
    $region7: #{tpu_custom_call.1} parent=1 // pred_check_branch
      %24 = sbr.rel (0) target = $region9
    $region8: #{tpu_custom_call.1} parent=1 // pred_region
      %s26 = ssub.s32 6144, 6144
      %27 = vsyncadd [#allocation7], %s26
      %s28 = sshll.u32 [#allocation6], 4
      %s29 = int_to_ptr.vmem [resolvable:$true] %s28
      %34 = dma.hbm_to_vmem [thread:$0]  %s1, 6144, %s29, [#allocation7], 384, 384, 24
    $region9: #{tpu_custom_call.1} parent=1 // pred_fallthru
      _
    // Predicated region
    $region10: #{tpu_custom_call.1} parent=1 // pred_check
      _
    $region11: #{tpu_custom_call.1} parent=1 // pred_check_branch
      %36 = sbr.rel (0) target = $region13
    $region12: #{tpu_custom_call.1} parent=1 // pred_region
      _
    $region13: #{tpu_custom_call.1} parent=1 // pred_fallthru
      _
    // Predicated region
    $region14: #{tpu_custom_call.1} parent=1 // pred_check
      _
    $region15: #{tpu_custom_call.1} parent=1 // pred_check_branch
      %38 = sbr.rel (0) target = $region17
    $region16: #{tpu_custom_call.1} parent=1 // pred_region
      %39 = dma.done [#allocation4], 3072
    $region17: #{tpu_custom_call.1} parent=1 // pred_fallthru
      _
    // Predicated region
    $region18: #{tpu_custom_call.1} parent=1 // pred_check
      _
    $region19: #{tpu_custom_call.1} parent=1 // pred_check_branch
      %41 = sbr.rel (0) target = $region21
    $region20: #{tpu_custom_call.1} parent=1 // pred_region
      %42 = dma.done [#allocation7], 6144
    $region21: #{tpu_custom_call.1} parent=1 // pred_fallthru
      _
    %p43 = scmp.eq.s32.totalorder 0, 0
    // Predicated region
    $region22: #{tpu_custom_call.1} parent=1 // pred_check
      %p44 = pneg %p43
    $region23: #{tpu_custom_call.1} parent=1 // pred_check_branch
      %46 = sbr.rel (%p44) target = $region25
    $region24: #{tpu_custom_call.1} parent=1 // pred_region
      %47 = vst [vmem:[#allocation2] sm:$0xff] 0.0
    $region25: #{tpu_custom_call.1} parent=1 // pred_fallthru
      _
    %v48 = vld [vmem:[#allocation6] sm:$0xff]
    %v49 = vld [vmem:[#allocation6 + $0x8] sm:$0xff]
    %v50 = vld [vmem:[#allocation6 + $0x10] sm:$0xff]
    %v51 = vld [vmem:[#allocation6 + $0x18] sm:$0xff]
    %v52 = vld [vmem:[#allocation6 + $0x20] sm:$0xff]
    %v53 = vld [vmem:[#allocation6 + $0x28] sm:$0xff]
    %v54 = vld [vmem:[#allocation6 + $0x30] sm:$0xff]
    %v55 = vld [vmem:[#allocation6 + $0x38] sm:$0xff]
    %v56 = vld [vmem:[#allocation6 + $0x40] sm:$0xff]
    %v57 = vld [vmem:[#allocation6 + $0x48] sm:$0xff]
    %v58 = vld [vmem:[#allocation6 + $0x50] sm:$0xff]
    %v59 = vld [vmem:[#allocation6 + $0x58] sm:$0xff]
    %v60 = vld [vmem:[#allocation6 + $0x60] sm:$0xff]
    %v61 = vld [vmem:[#allocation6 + $0x68] sm:$0xff]
    %v62 = vld [vmem:[#allocation6 + $0x70] sm:$0xff]
    %v63 = vld [vmem:[#allocation6 + $0x78] sm:$0xff]
    %v64 = vld [vmem:[#allocation6 + $0x80] sm:$0xff]
    %v65 = vld [vmem:[#allocation6 + $0x88] sm:$0xff]
    %v66 = vld [vmem:[#allocation6 + $0x90] sm:$0xff]
    %v67 = vld [vmem:[#allocation6 + $0x98] sm:$0xff]
    %v68 = vld [vmem:[#allocation6 + $0xa0] sm:$0xff]
    %v69 = vld [vmem:[#allocation6 + $0xa8] sm:$0xff]
    %v70 = vld [vmem:[#allocation6 + $0xb0] sm:$0xff]
    %v71 = vld [vmem:[#allocation6 + $0xb8] sm:$0xff]
    %v72 = vld [vmem:[#allocation6 + $0xc0] sm:$0xff]
    %v73 = vld [vmem:[#allocation6 + $0xc8] sm:$0xff]
    %v74 = vld [vmem:[#allocation6 + $0xd0] sm:$0xff]
    %v75 = vld [vmem:[#allocation6 + $0xd8] sm:$0xff]
    %v76 = vld [vmem:[#allocation6 + $0xe0] sm:$0xff]
    %v77 = vld [vmem:[#allocation6 + $0xe8] sm:$0xff]
    %v78 = vld [vmem:[#allocation6 + $0xf0] sm:$0xff]
    %v79 = vld [vmem:[#allocation6 + $0xf8] sm:$0xff]
    %v80 = vld [vmem:[#allocation6 + $0x100] sm:$0xff]
    %v81 = vld [vmem:[#allocation6 + $0x108] sm:$0xff]
    %v82 = vld [vmem:[#allocation6 + $0x110] sm:$0xff]
    %v83 = vld [vmem:[#allocation6 + $0x118] sm:$0xff]
    %v84 = vld [vmem:[#allocation6 + $0x120] sm:$0xff]
    %v85 = vld [vmem:[#allocation6 + $0x128] sm:$0xff]
    %v86 = vld [vmem:[#allocation6 + $0x130] sm:$0xff]
    %v87 = vld [vmem:[#allocation6 + $0x138] sm:$0xff]
    %v88 = vld [vmem:[#allocation6 + $0x140] sm:$0xff]
    %v89 = vld [vmem:[#allocation6 + $0x148] sm:$0xff]
    %v90 = vld [vmem:[#allocation6 + $0x150] sm:$0xff]
    %v91 = vld [vmem:[#allocation6 + $0x158] sm:$0xff]
    %v92 = vld [vmem:[#allocation6 + $0x160] sm:$0xff]
    %v93 = vld [vmem:[#allocation6 + $0x168] sm:$0xff]
    %v94 = vld [vmem:[#allocation6 + $0x170] sm:$0xff]
    %v95 = vld [vmem:[#allocation6 + $0x178] sm:$0xff]
    %v96 = vld [vmem:[%s2] sm:$0x1]
    %v98 = vlaneseq
    %v99 = vshrl.u32 %v98, 7
    %v100 = vsub.s32 0, %v99
    %v101 = vrot.slane %v96, %v100
    %v103 = vld [vmem:[#allocation2] sm:$0xff]
    %v104 = vld [vmem:[#allocation3] sm:$0xff]
    %v105 = vld [vmem:[#allocation3 + $0x8] sm:$0xff]
    %v106 = vld [vmem:[#allocation3 + $0x10] sm:$0xff]
    %107 = vmatprep.subr.mxu0 %v49
    %108 = vmatpush1.msra.mxu0 %v48
    %109 = vmatprep.subr.mxu0 %v52
    %110 = vmatpush1.msra.mxu0 %v51
    %111 = vmatprep.subr.mxu0 %v55
    %112 = vmatpush1.msra.mxu0 %v54
    %113 = vmatprep.subr.mxu0 %v58
    %114 = vmatpush1.msra.mxu0 %v57
    %115 = vmatprep.subr.mxu0 %v61
    %116 = vmatpush1.msra.mxu0 %v60
    %117 = vmatprep.subr.mxu0 %v64
    %118 = vmatpush1.msra.mxu0 %v63
    %119 = vmatprep.subr.mxu0 %v67
    %120 = vmatpush1.msra.mxu0 %v66
    %121 = vmatprep.subr.mxu0 %v70
    %122 = vmatpush1.msra.mxu0 %v69
    %123 = vmatprep.subr.mxu0 %v73
    %124 = vmatpush1.msra.mxu0 %v72
    %125 = vmatprep.subr.mxu0 %v76
    %126 = vmatpush1.msra.mxu0 %v75
    %127 = vmatprep.subr.mxu0 %v79
    %128 = vmatpush1.msra.mxu0 %v78
    %129 = vmatprep.subr.mxu0 %v82
    %130 = vmatpush1.msra.mxu0 %v81
    %131 = vmatprep.subr.mxu0 %v85
    %132 = vmatpush1.msra.mxu0 %v84
    %133 = vmatprep.subr.mxu0 %v88
    %134 = vmatpush1.msra.mxu0 %v87
    %135 = vmatprep.subr.mxu0 %v91
    %136 = vmatpush1.msra.mxu0 %v90
    %137 = vmatprep.subr.mxu0 %v94
    %138 = vmatpush1.msra.mxu0 %v93
    %139 = vmatprep.subr.mxu0 0.0
    %140 = vmatpush1.msra.mxu0 0.0
    %141 = vmatprep.subr.mxu0 0.0
    %142 = vmatpush1.msra.mxu0 0.0
    %143 = vmatprep.subr.mxu0 0.0
    %144 = vmatpush1.msra.mxu0 0.0
    %145 = vmatprep.subr.mxu0 0.0
    %146 = vmatpush1.msra.mxu0 0.0
    %147 = vmatprep.subr.mxu0 0.0
    %148 = vmatpush1.msra.mxu0 0.0
    %149 = vmatprep.subr.mxu0 0.0
    %150 = vmatpush1.msra.mxu0 0.0
    %151 = vmatprep.subr.mxu0 0.0
    %152 = vmatpush1.msra.mxu0 0.0
    %153 = vmatprep.subr.mxu0 0.0
    %154 = vmatpush1.msra.mxu0 0.0
    %155 = vmatprep.subr.mxu0 0.0
    %156 = vmatpush1.msra.mxu0 0.0
    %157 = vmatprep.subr.mxu0 0.0
    %158 = vmatpush1.msra.mxu0 0.0
    %159 = vmatprep.subr.mxu0 0.0
    %160 = vmatpush1.msra.mxu0 0.0
    %161 = vmatprep.subr.mxu0 0.0
    %162 = vmatpush1.msra.mxu0 0.0
    %163 = vmatprep.subr.mxu0 0.0
    %164 = vmatpush1.msra.mxu0 0.0
    %165 = vmatprep.subr.mxu0 0.0
    %166 = vmatpush1.msra.mxu0 0.0
    %167 = vmatprep.subr.mxu0 0.0
    %168 = vmatpush1.msra.mxu0 0.0
    %169 = vmatprep.subr.mxu0 0.0
    %170 = vmatpush1.msra.mxu0 0.0
    %171 = vmatprep.mubr.f32.mxu0 0.0
    %172 = vmatmul.mubr.f32.gmra.mrb[0].mxu0 %v103
    %v173 = vpop.f32.mrb[0].mxu0
    %v174 = vadd.f32 0.0, %v173
    %v175 = vpop.f32.mrb[0].mxu0
    %v176 = vadd.f32 0.0, %v175
    %177 = vdwg.mxu0
    %178 = vmatprep.subr.mxu0 0.0
    %179 = vmatpush1.msra.mxu0 %v50
    %180 = vmatprep.subr.mxu0 0.0
    %181 = vmatpush1.msra.mxu0 %v53
    %182 = vmatprep.subr.mxu0 0.0
    %183 = vmatpush1.msra.mxu0 %v56
    %184 = vmatprep.subr.mxu0 0.0
    %185 = vmatpush1.msra.mxu0 %v59
    %186 = vmatprep.subr.mxu0 0.0
    %187 = vmatpush1.msra.mxu0 %v62
    %188 = vmatprep.subr.mxu0 0.0
    %189 = vmatpush1.msra.mxu0 %v65
    %190 = vmatprep.subr.mxu0 0.0
    %191 = vmatpush1.msra.mxu0 %v68
    %192 = vmatprep.subr.mxu0 0.0
    %193 = vmatpush1.msra.mxu0 %v71
    %194 = vmatprep.subr.mxu0 0.0
    %195 = vmatpush1.msra.mxu0 %v74
    %196 = vmatprep.subr.mxu0 0.0
    %197 = vmatpush1.msra.mxu0 %v77
    %198 = vmatprep.subr.mxu0 0.0
    %199 = vmatpush1.msra.mxu0 %v80
    %200 = vmatprep.subr.mxu0 0.0
    %201 = vmatpush1.msra.mxu0 %v83
    %202 = vmatprep.subr.mxu0 0.0
    %203 = vmatpush1.msra.mxu0 %v86
    %204 = vmatprep.subr.mxu0 0.0
    %205 = vmatpush1.msra.mxu0 %v89
    %206 = vmatprep.subr.mxu0 0.0
    %207 = vmatpush1.msra.mxu0 %v92
    %208 = vmatprep.subr.mxu0 0.0
    %209 = vmatpush1.msra.mxu0 %v95
    %210 = vmatprep.subr.mxu0 0.0
    %211 = vmatpush1.msra.mxu0 0.0
    %212 = vmatprep.subr.mxu0 0.0
    %213 = vmatpush1.msra.mxu0 0.0
    %214 = vmatprep.subr.mxu0 0.0
    %215 = vmatpush1.msra.mxu0 0.0
    %216 = vmatprep.subr.mxu0 0.0
    %217 = vmatpush1.msra.mxu0 0.0
    %218 = vmatprep.subr.mxu0 0.0
    %219 = vmatpush1.msra.mxu0 0.0
    %220 = vmatprep.subr.mxu0 0.0
    %221 = vmatpush1.msra.mxu0 0.0
    %222 = vmatprep.subr.mxu0 0.0
    %223 = vmatpush1.msra.mxu0 0.0
    %224 = vmatprep.subr.mxu0 0.0
    %225 = vmatpush1.msra.mxu0 0.0
    %226 = vmatprep.subr.mxu0 0.0
    %227 = vmatpush1.msra.mxu0 0.0
    %228 = vmatprep.subr.mxu0 0.0
    %229 = vmatpush1.msra.mxu0 0.0
    %230 = vmatprep.subr.mxu0 0.0
    %231 = vmatpush1.msra.mxu0 0.0
    %232 = vmatprep.subr.mxu0 0.0
    %233 = vmatpush1.msra.mxu0 0.0
    %234 = vmatprep.subr.mxu0 0.0
    %235 = vmatpush1.msra.mxu0 0.0
    %236 = vmatprep.subr.mxu0 0.0
    %237 = vmatpush1.msra.mxu0 0.0
    %238 = vmatprep.subr.mxu0 0.0
    %239 = vmatpush1.msra.mxu0 0.0
    %240 = vmatprep.subr.mxu0 0.0
    %241 = vmatpush1.msra.mxu0 0.0
    %242 = vmatprep.mubr.f32.mxu0 0.0
    %243 = vmatmul.mubr.f32.gmra.mrb[0].mxu0 %v103
    %v244 = vpop.f32.mrb[0].mxu0
    %v245 = vadd.f32 0.0, %v244
    %v246 = vpop.f32.mrb[0].mxu0
    %247 = vdwg.mxu0
    %v248 = vadd.f32 %v104, %v174
    %v249 = vadd.f32 %v105, %v176
    %v250 = vmul.f32 %v248, 0.5
    %v251 = vmul.f32 %v249, 0.5
    %v252 = vtanh.pop %v250
    %v253 = vtanh.pop %v251
    %v254 = vmul.f32 %v252, 0.5
    %v255 = vmul.f32 %v253, 0.5
    %v256 = vadd.f32 %v254, 0.5
    %v257 = vadd.f32 %v255, 0.5
    %v258 = vadd.f32 %v245, %v101
    %v259 = vmul.f32 %v256, %v258
    %v260 = vadd.f32 %v106, %v259
    %v261 = vtanh.pop %v260
    %v262 = vsub.f32 %v103, %v261
    %v263 = vmul.f32 %v257, %v262
    %v264 = vadd.f32 %v261, %v263
    %265 = vst [vmem:[#allocation8] sm:$0xff] %v264
    %s266 = scalar_lea.vmem [#allocation3], 24
    %v267 = vld [vmem:[%s266] sm:$0xff]
    %v268 = vld [vmem:[%s266 + $0x8] sm:$0xff]
    %v269 = vld [vmem:[%s266 + $0x10] sm:$0xff]
    %270 = vmatprep.subr.mxu0 %v49
    %271 = vmatpush1.msra.mxu0 %v48
    %272 = vmatprep.subr.mxu0 %v52
    %273 = vmatpush1.msra.mxu0 %v51
    %274 = vmatprep.subr.mxu0 %v55
    %275 = vmatpush1.msra.mxu0 %v54
    %276 = vmatprep.subr.mxu0 %v58
    %277 = vmatpush1.msra.mxu0 %v57
    %278 = vmatprep.subr.mxu0 %v61
    %279 = vmatpush1.msra.mxu0 %v60
    %280 = vmatprep.subr.mxu0 %v64
    %281 = vmatpush1.msra.mxu0 %v63
    %282 = vmatprep.subr.mxu0 %v67
    %283 = vmatpush1.msra.mxu0 %v66
    %284 = vmatprep.subr.mxu0 %v70
    %285 = vmatpush1.msra.mxu0 %v69
    %286 = vmatprep.subr.mxu0 %v73
    %287 = vmatpush1.msra.mxu0 %v72
    %288 = vmatprep.subr.mxu0 %v76
    %289 = vmatpush1.msra.mxu0 %v75
    %290 = vmatprep.subr.mxu0 %v79
    %291 = vmatpush1.msra.mxu0 %v78
    %292 = vmatprep.subr.mxu0 %v82
    %293 = vmatpush1.msra.mxu0 %v81
    %294 = vmatprep.subr.mxu0 %v85
    %295 = vmatpush1.msra.mxu0 %v84
    %296 = vmatprep.subr.mxu0 %v88
    %297 = vmatpush1.msra.mxu0 %v87
    %298 = vmatprep.subr.mxu0 %v91
    %299 = vmatpush1.msra.mxu0 %v90
    %300 = vmatprep.subr.mxu0 %v94
    %301 = vmatpush1.msra.mxu0 %v93
    %302 = vmatprep.subr.mxu0 0.0
    %303 = vmatpush1.msra.mxu0 0.0
    %304 = vmatprep.subr.mxu0 0.0
    %305 = vmatpush1.msra.mxu0 0.0
    %306 = vmatprep.subr.mxu0 0.0
    %307 = vmatpush1.msra.mxu0 0.0
    %308 = vmatprep.subr.mxu0 0.0
    %309 = vmatpush1.msra.mxu0 0.0
    %310 = vmatprep.subr.mxu0 0.0
    %311 = vmatpush1.msra.mxu0 0.0
    %312 = vmatprep.subr.mxu0 0.0
    %313 = vmatpush1.msra.mxu0 0.0
    %314 = vmatprep.subr.mxu0 0.0
    %315 = vmatpush1.msra.mxu0 0.0
    %316 = vmatprep.subr.mxu0 0.0
    %317 = vmatpush1.msra.mxu0 0.0
    %318 = vmatprep.subr.mxu0 0.0
    %319 = vmatpush1.msra.mxu0 0.0
    %320 = vmatprep.subr.mxu0 0.0
    %321 = vmatpush1.msra.mxu0 0.0
    %322 = vmatprep.subr.mxu0 0.0
    %323 = vmatpush1.msra.mxu0 0.0
    %324 = vmatprep.subr.mxu0 0.0
    %325 = vmatpush1.msra.mxu0 0.0
    %326 = vmatprep.subr.mxu0 0.0
    %327 = vmatpush1.msra.mxu0 0.0
    %328 = vmatprep.subr.mxu0 0.0
    %329 = vmatpush1.msra.mxu0 0.0
    %330 = vmatprep.subr.mxu0 0.0
    %331 = vmatpush1.msra.mxu0 0.0
    %332 = vmatprep.subr.mxu0 0.0
    %333 = vmatpush1.msra.mxu0 0.0
    %334 = vmatprep.mubr.f32.mxu0 0.0
    %335 = vmatmul.mubr.f32.gmra.mrb[0].mxu0 %v264
    %v336 = vpop.f32.mrb[0].mxu0
    %v337 = vadd.f32 0.0, %v336
    %v338 = vpop.f32.mrb[0].mxu0
    %v339 = vadd.f32 0.0, %v338
    %340 = vdwg.mxu0
    %341 = vmatprep.subr.mxu0 0.0
    %342 = vmatpush1.msra.mxu0 %v50
    %343 = vmatprep.subr.mxu0 0.0
    %344 = vmatpush1.msra.mxu0 %v53
    %345 = vmatprep.subr.mxu0 0.0
    %346 = vmatpush1.msra.mxu0 %v56
    %347 = vmatprep.subr.mxu0 0.0
    %348 = vmatpush1.msra.mxu0 %v59
    %349 = vmatprep.subr.mxu0 0.0
    %350 = vmatpush1.msra.mxu0 %v62
    %351 = vmatprep.subr.mxu0 0.0
    %352 = vmatpush1.msra.mxu0 %v65
    %353 = vmatprep.subr.mxu0 0.0
    %354 = vmatpush1.msra.mxu0 %v68
    %355 = vmatprep.subr.mxu0 0.0
    %356 = vmatpush1.msra.mxu0 %v71
    %357 = vmatprep.subr.mxu0 0.0
    %358 = vmatpush1.msra.mxu0 %v74
    %359 = vmatprep.subr.mxu0 0.0
    %360 = vmatpush1.msra.mxu0 %v77
    %361 = vmatprep.subr.mxu0 0.0
    %362 = vmatpush1.msra.mxu0 %v80
    %363 = vmatprep.subr.mxu0 0.0
    %364 = vmatpush1.msra.mxu0 %v83
    %365 = vmatprep.subr.mxu0 0.0
    %366 = vmatpush1.msra.mxu0 %v86
    %367 = vmatprep.subr.mxu0 0.0
    %368 = vmatpush1.msra.mxu0 %v89
    %369 = vmatprep.subr.mxu0 0.0
    %370 = vmatpush1.msra.mxu0 %v92
    %371 = vmatprep.subr.mxu0 0.0
    %372 = vmatpush1.msra.mxu0 %v95
    %373 = vmatprep.subr.mxu0 0.0
    %374 = vmatpush1.msra.mxu0 0.0
    %375 = vmatprep.subr.mxu0 0.0
    %376 = vmatpush1.msra.mxu0 0.0
    %377 = vmatprep.subr.mxu0 0.0
    %378 = vmatpush1.msra.mxu0 0.0
    %379 = vmatprep.subr.mxu0 0.0
    %380 = vmatpush1.msra.mxu0 0.0
    %381 = vmatprep.subr.mxu0 0.0
    %382 = vmatpush1.msra.mxu0 0.0
    %383 = vmatprep.subr.mxu0 0.0
    %384 = vmatpush1.msra.mxu0 0.0
    %385 = vmatprep.subr.mxu0 0.0
    %386 = vmatpush1.msra.mxu0 0.0
    %387 = vmatprep.subr.mxu0 0.0
    %388 = vmatpush1.msra.mxu0 0.0
    %389 = vmatprep.subr.mxu0 0.0
    %390 = vmatpush1.msra.mxu0 0.0
    %391 = vmatprep.subr.mxu0 0.0
    %392 = vmatpush1.msra.mxu0 0.0
    %393 = vmatprep.subr.mxu0 0.0
    %394 = vmatpush1.msra.mxu0 0.0
    %395 = vmatprep.subr.mxu0 0.0
    %396 = vmatpush1.msra.mxu0 0.0
    %397 = vmatprep.subr.mxu0 0.0
    %398 = vmatpush1.msra.mxu0 0.0
    %399 = vmatprep.subr.mxu0 0.0
    %400 = vmatpush1.msra.mxu0 0.0
    %401 = vmatprep.subr.mxu0 0.0
    %402 = vmatpush1.msra.mxu0 0.0
    %403 = vmatprep.subr.mxu0 0.0
    %404 = vmatpush1.msra.mxu0 0.0
    %405 = vmatprep.mubr.f32.mxu0 0.0
    %406 = vmatmul.mubr.f32.gmra.mrb[0].mxu0 %v264
    %v407 = vpop.f32.mrb[0].mxu0
    %v408 = vadd.f32 0.0, %v407
    %v409 = vpop.f32.mrb[0].mxu0
    %410 = vdwg.mxu0
    %v411 = vadd.f32 %v267, %v337
    %v412 = vadd.f32 %v268, %v339
    %v413 = vmul.f32 %v411, 0.5
    %v414 = vmul.f32 %v412, 0.5
    %v415 = vtanh.pop %v413
    %v416 = vtanh.pop %v414
    %v417 = vmul.f32 %v415, 0.5
    %v418 = vmul.f32 %v416, 0.5
    %v419 = vadd.f32 %v417, 0.5
    %v420 = vadd.f32 %v418, 0.5
    %v421 = vadd.f32 %v408, %v101
    %v422 = vmul.f32 %v419, %v421
    %v423 = vadd.f32 %v269, %v422
    %v424 = vtanh.pop %v423
    %v425 = vsub.f32 %v264, %v424
    %v426 = vmul.f32 %v420, %v425
    %v427 = vadd.f32 %v424, %v426
    %s428 = scalar_lea.vmem [#allocation8], 8
    %429 = vst [vmem:[%s428] sm:$0xff] %v427
    %s430 = scalar_lea.vmem [#allocation3], 48
    %v431 = vld [vmem:[%s430] sm:$0xff]
    %v432 = vld [vmem:[%s430 + $0x8] sm:$0xff]
    %v433 = vld [vmem:[%s430 + $0x10] sm:$0xff]
    %434 = vmatprep.subr.mxu0 %v49
    %435 = vmatpush1.msra.mxu0 %v48
    %436 = vmatprep.subr.mxu0 %v52
    %437 = vmatpush1.msra.mxu0 %v51
    %438 = vmatprep.subr.mxu0 %v55
    %439 = vmatpush1.msra.mxu0 %v54
    %440 = vmatprep.subr.mxu0 %v58
    %441 = vmatpush1.msra.mxu0 %v57
    %442 = vmatprep.subr.mxu0 %v61
    %443 = vmatpush1.msra.mxu0 %v60
    %444 = vmatprep.subr.mxu0 %v64
    %445 = vmatpush1.msra.mxu0 %v63
    %446 = vmatprep.subr.mxu0 %v67
    %447 = vmatpush1.msra.mxu0 %v66
    %448 = vmatprep.subr.mxu0 %v70
    %449 = vmatpush1.msra.mxu0 %v69
    %450 = vmatprep.subr.mxu0 %v73
    %451 = vmatpush1.msra.mxu0 %v72
    %452 = vmatprep.subr.mxu0 %v76
    %453 = vmatpush1.msra.mxu0 %v75
    %454 = vmatprep.subr.mxu0 %v79
    %455 = vmatpush1.msra.mxu0 %v78
    %456 = vmatprep.subr.mxu0 %v82
    %457 = vmatpush1.msra.mxu0 %v81
    %458 = vmatprep.subr.mxu0 %v85
    %459 = vmatpush1.msra.mxu0 %v84
    %460 = vmatprep.subr.mxu0 %v88
    %461 = vmatpush1.msra.mxu0 %v87
    %462 = vmatprep.subr.mxu0 %v91
    %463 = vmatpush1.msra.mxu0 %v90
    %464 = vmatprep.subr.mxu0 %v94
    %465 = vmatpush1.msra.mxu0 %v93
    %466 = vmatprep.subr.mxu0 0.0
    %467 = vmatpush1.msra.mxu0 0.0
    %468 = vmatprep.subr.mxu0 0.0
    %469 = vmatpush1.msra.mxu0 0.0
    %470 = vmatprep.subr.mxu0 0.0
    %471 = vmatpush1.msra.mxu0 0.0
    %472 = vmatprep.subr.mxu0 0.0
    %473 = vmatpush1.msra.mxu0 0.0
    %474 = vmatprep.subr.mxu0 0.0
    %475 = vmatpush1.msra.mxu0 0.0
    %476 = vmatprep.subr.mxu0 0.0
    %477 = vmatpush1.msra.mxu0 0.0
    %478 = vmatprep.subr.mxu0 0.0
    %479 = vmatpush1.msra.mxu0 0.0
    %480 = vmatprep.subr.mxu0 0.0
    %481 = vmatpush1.msra.mxu0 0.0
    %482 = vmatprep.subr.mxu0 0.0
    %483 = vmatpush1.msra.mxu0 0.0
    %484 = vmatprep.subr.mxu0 0.0
    %485 = vmatpush1.msra.mxu0 0.0
    %486 = vmatprep.subr.mxu0 0.0
    %487 = vmatpush1.msra.mxu0 0.0
    %488 = vmatprep.subr.mxu0 0.0
    %489 = vmatpush1.msra.mxu0 0.0
    %490 = vmatprep.subr.mxu0 0.0
    %491 = vmatpush1.msra.mxu0 0.0
    %492 = vmatprep.subr.mxu0 0.0
    %493 = vmatpush1.msra.mxu0 0.0
    %494 = vmatprep.subr.mxu0 0.0
    %495 = vmatpush1.msra.mxu0 0.0
    %496 = vmatprep.subr.mxu0 0.0
    %497 = vmatpush1.msra.mxu0 0.0
    %498 = vmatprep.mubr.f32.mxu0 0.0
    %499 = vmatmul.mubr.f32.gmra.mrb[0].mxu0 %v427
    %v500 = vpop.f32.mrb[0].mxu0
    %v501 = vadd.f32 0.0, %v500
    %v502 = vpop.f32.mrb[0].mxu0
    %v503 = vadd.f32 0.0, %v502
    %504 = vdwg.mxu0
    %505 = vmatprep.subr.mxu0 0.0
    %506 = vmatpush1.msra.mxu0 %v50
    %507 = vmatprep.subr.mxu0 0.0
    %508 = vmatpush1.msra.mxu0 %v53
    %509 = vmatprep.subr.mxu0 0.0
    %510 = vmatpush1.msra.mxu0 %v56
    %511 = vmatprep.subr.mxu0 0.0
    %512 = vmatpush1.msra.mxu0 %v59
    %513 = vmatprep.subr.mxu0 0.0
    %514 = vmatpush1.msra.mxu0 %v62
    %515 = vmatprep.subr.mxu0 0.0
    %516 = vmatpush1.msra.mxu0 %v65
    %517 = vmatprep.subr.mxu0 0.0
    %518 = vmatpush1.msra.mxu0 %v68
    %519 = vmatprep.subr.mxu0 0.0
    %520 = vmatpush1.msra.mxu0 %v71
    %521 = vmatprep.subr.mxu0 0.0
    %522 = vmatpush1.msra.mxu0 %v74
    %523 = vmatprep.subr.mxu0 0.0
    %524 = vmatpush1.msra.mxu0 %v77
    %525 = vmatprep.subr.mxu0 0.0
    %526 = vmatpush1.msra.mxu0 %v80
    %527 = vmatprep.subr.mxu0 0.0
    %528 = vmatpush1.msra.mxu0 %v83
    %529 = vmatprep.subr.mxu0 0.0
    %530 = vmatpush1.msra.mxu0 %v86
    %531 = vmatprep.subr.mxu0 0.0
    %532 = vmatpush1.msra.mxu0 %v89
    %533 = vmatprep.subr.mxu0 0.0
    %534 = vmatpush1.msra.mxu0 %v92
    %535 = vmatprep.subr.mxu0 0.0
    %536 = vmatpush1.msra.mxu0 %v95
    %537 = vmatprep.subr.mxu0 0.0
    %538 = vmatpush1.msra.mxu0 0.0
    %539 = vmatprep.subr.mxu0 0.0
    %540 = vmatpush1.msra.mxu0 0.0
    %541 = vmatprep.subr.mxu0 0.0
    %542 = vmatpush1.msra.mxu0 0.0
    %543 = vmatprep.subr.mxu0 0.0
    %544 = vmatpush1.msra.mxu0 0.0
    %545 = vmatprep.subr.mxu0 0.0
    %546 = vmatpush1.msra.mxu0 0.0
    %547 = vmatprep.subr.mxu0 0.0
    %548 = vmatpush1.msra.mxu0 0.0
    %549 = vmatprep.subr.mxu0 0.0
    %550 = vmatpush1.msra.mxu0 0.0
    %551 = vmatprep.subr.mxu0 0.0
    %552 = vmatpush1.msra.mxu0 0.0
    %553 = vmatprep.subr.mxu0 0.0
    %554 = vmatpush1.msra.mxu0 0.0
    %555 = vmatprep.subr.mxu0 0.0
    %556 = vmatpush1.msra.mxu0 0.0
    %557 = vmatprep.subr.mxu0 0.0
    %558 = vmatpush1.msra.mxu0 0.0
    %559 = vmatprep.subr.mxu0 0.0
    %560 = vmatpush1.msra.mxu0 0.0
    %561 = vmatprep.subr.mxu0 0.0
    %562 = vmatpush1.msra.mxu0 0.0
    %563 = vmatprep.subr.mxu0 0.0
    %564 = vmatpush1.msra.mxu0 0.0
    %565 = vmatprep.subr.mxu0 0.0
    %566 = vmatpush1.msra.mxu0 0.0
    %567 = vmatprep.subr.mxu0 0.0
    %568 = vmatpush1.msra.mxu0 0.0
    %569 = vmatprep.mubr.f32.mxu0 0.0
    %570 = vmatmul.mubr.f32.gmra.mrb[0].mxu0 %v427
    %v571 = vpop.f32.mrb[0].mxu0
    %v572 = vadd.f32 0.0, %v571
    %v573 = vpop.f32.mrb[0].mxu0
    %574 = vdwg.mxu0
    %v575 = vadd.f32 %v431, %v501
    %v576 = vadd.f32 %v432, %v503
    %v577 = vmul.f32 %v575, 0.5
    %v578 = vmul.f32 %v576, 0.5
    %v579 = vtanh.pop %v577
    %v580 = vtanh.pop %v578
    %v581 = vmul.f32 %v579, 0.5
    %v582 = vmul.f32 %v580, 0.5
    %v583 = vadd.f32 %v581, 0.5
    %v584 = vadd.f32 %v582, 0.5
    %v585 = vadd.f32 %v572, %v101
    %v586 = vmul.f32 %v583, %v585
    %v587 = vadd.f32 %v433, %v586
    %v588 = vtanh.pop %v587
    %v589 = vsub.f32 %v427, %v588
    %v590 = vmul.f32 %v584, %v589
    %v591 = vadd.f32 %v588, %v590
    %s592 = scalar_lea.vmem [#allocation8], 16
    %593 = vst [vmem:[%s592] sm:$0xff] %v591
    %s594 = scalar_lea.vmem [#allocation3], 72
    %v595 = vld [vmem:[%s594] sm:$0xff]
    %v596 = vld [vmem:[%s594 + $0x8] sm:$0xff]
    %v597 = vld [vmem:[%s594 + $0x10] sm:$0xff]
    %598 = vmatprep.subr.mxu0 %v49
    %599 = vmatpush1.msra.mxu0 %v48
    %600 = vmatprep.subr.mxu0 %v52
    %601 = vmatpush1.msra.mxu0 %v51
    %602 = vmatprep.subr.mxu0 %v55
    %603 = vmatpush1.msra.mxu0 %v54
    %604 = vmatprep.subr.mxu0 %v58
    %605 = vmatpush1.msra.mxu0 %v57
    %606 = vmatprep.subr.mxu0 %v61
    %607 = vmatpush1.msra.mxu0 %v60
    %608 = vmatprep.subr.mxu0 %v64
    %609 = vmatpush1.msra.mxu0 %v63
    %610 = vmatprep.subr.mxu0 %v67
    %611 = vmatpush1.msra.mxu0 %v66
    %612 = vmatprep.subr.mxu0 %v70
    %613 = vmatpush1.msra.mxu0 %v69
    %614 = vmatprep.subr.mxu0 %v73
    %615 = vmatpush1.msra.mxu0 %v72
    %616 = vmatprep.subr.mxu0 %v76
    %617 = vmatpush1.msra.mxu0 %v75
    %618 = vmatprep.subr.mxu0 %v79
    %619 = vmatpush1.msra.mxu0 %v78
    %620 = vmatprep.subr.mxu0 %v82
    %621 = vmatpush1.msra.mxu0 %v81
    %622 = vmatprep.subr.mxu0 %v85
    %623 = vmatpush1.msra.mxu0 %v84
    %624 = vmatprep.subr.mxu0 %v88
    %625 = vmatpush1.msra.mxu0 %v87
    %626 = vmatprep.subr.mxu0 %v91
    %627 = vmatpush1.msra.mxu0 %v90
    %628 = vmatprep.subr.mxu0 %v94
    %629 = vmatpush1.msra.mxu0 %v93
    %630 = vmatprep.subr.mxu0 0.0
    %631 = vmatpush1.msra.mxu0 0.0
    %632 = vmatprep.subr.mxu0 0.0
    %633 = vmatpush1.msra.mxu0 0.0
    %634 = vmatprep.subr.mxu0 0.0
    %635 = vmatpush1.msra.mxu0 0.0
    %636 = vmatprep.subr.mxu0 0.0
    %637 = vmatpush1.msra.mxu0 0.0
    %638 = vmatprep.subr.mxu0 0.0
    %639 = vmatpush1.msra.mxu0 0.0
    %640 = vmatprep.subr.mxu0 0.0
    %641 = vmatpush1.msra.mxu0 0.0
    %642 = vmatprep.subr.mxu0 0.0
    %643 = vmatpush1.msra.mxu0 0.0
    %644 = vmatprep.subr.mxu0 0.0
    %645 = vmatpush1.msra.mxu0 0.0
    %646 = vmatprep.subr.mxu0 0.0
    %647 = vmatpush1.msra.mxu0 0.0
    %648 = vmatprep.subr.mxu0 0.0
    %649 = vmatpush1.msra.mxu0 0.0
    %650 = vmatprep.subr.mxu0 0.0
    %651 = vmatpush1.msra.mxu0 0.0
    %652 = vmatprep.subr.mxu0 0.0
    %653 = vmatpush1.msra.mxu0 0.0
    %654 = vmatprep.subr.mxu0 0.0
    %655 = vmatpush1.msra.mxu0 0.0
    %656 = vmatprep.subr.mxu0 0.0
    %657 = vmatpush1.msra.mxu0 0.0
    %658 = vmatprep.subr.mxu0 0.0
    %659 = vmatpush1.msra.mxu0 0.0
    %660 = vmatprep.subr.mxu0 0.0
    %661 = vmatpush1.msra.mxu0 0.0
    %662 = vmatprep.mubr.f32.mxu0 0.0
    %663 = vmatmul.mubr.f32.gmra.mrb[0].mxu0 %v591
    %v664 = vpop.f32.mrb[0].mxu0
    %v665 = vadd.f32 0.0, %v664
    %v666 = vpop.f32.mrb[0].mxu0
    %v667 = vadd.f32 0.0, %v666
    %668 = vdwg.mxu0
    %669 = vmatprep.subr.mxu0 0.0
    %670 = vmatpush1.msra.mxu0 %v50
    %671 = vmatprep.subr.mxu0 0.0
    %672 = vmatpush1.msra.mxu0 %v53
    %673 = vmatprep.subr.mxu0 0.0
    %674 = vmatpush1.msra.mxu0 %v56
    %675 = vmatprep.subr.mxu0 0.0
    %676 = vmatpush1.msra.mxu0 %v59
    %677 = vmatprep.subr.mxu0 0.0
    %678 = vmatpush1.msra.mxu0 %v62
    %679 = vmatprep.subr.mxu0 0.0
    %680 = vmatpush1.msra.mxu0 %v65
    %681 = vmatprep.subr.mxu0 0.0
    %682 = vmatpush1.msra.mxu0 %v68
    %683 = vmatprep.subr.mxu0 0.0
    %684 = vmatpush1.msra.mxu0 %v71
    %685 = vmatprep.subr.mxu0 0.0
    %686 = vmatpush1.msra.mxu0 %v74
    %687 = vmatprep.subr.mxu0 0.0
    %688 = vmatpush1.msra.mxu0 %v77
    %689 = vmatprep.subr.mxu0 0.0
    %690 = vmatpush1.msra.mxu0 %v80
    %691 = vmatprep.subr.mxu0 0.0
    %692 = vmatpush1.msra.mxu0 %v83
    %693 = vmatprep.subr.mxu0 0.0
    %694 = vmatpush1.msra.mxu0 %v86
    %695 = vmatprep.subr.mxu0 0.0
    %696 = vmatpush1.msra.mxu0 %v89
    %697 = vmatprep.subr.mxu0 0.0
    %698 = vmatpush1.msra.mxu0 %v92
    %699 = vmatprep.subr.mxu0 0.0
    %700 = vmatpush1.msra.mxu0 %v95
    %701 = vmatprep.subr.mxu0 0.0
    %702 = vmatpush1.msra.mxu0 0.0
    %703 = vmatprep.subr.mxu0 0.0
    %704 = vmatpush1.msra.mxu0 0.0
    %705 = vmatprep.subr.mxu0 0.0
    %706 = vmatpush1.msra.mxu0 0.0
    %707 = vmatprep.subr.mxu0 0.0
    %708 = vmatpush1.msra.mxu0 0.0
    %709 = vmatprep.subr.mxu0 0.0
    %710 = vmatpush1.msra.mxu0 0.0
    %711 = vmatprep.subr.mxu0 0.0
    %712 = vmatpush1.msra.mxu0 0.0
    %713 = vmatprep.subr.mxu0 0.0
    %714 = vmatpush1.msra.mxu0 0.0
    %715 = vmatprep.subr.mxu0 0.0
    %716 = vmatpush1.msra.mxu0 0.0
    %717 = vmatprep.subr.mxu0 0.0
    %718 = vmatpush1.msra.mxu0 0.0
    %719 = vmatprep.subr.mxu0 0.0
    %720 = vmatpush1.msra.mxu0 0.0
    %721 = vmatprep.subr.mxu0 0.0
    %722 = vmatpush1.msra.mxu0 0.0
    %723 = vmatprep.subr.mxu0 0.0
    %724 = vmatpush1.msra.mxu0 0.0
    %725 = vmatprep.subr.mxu0 0.0
    %726 = vmatpush1.msra.mxu0 0.0
    %727 = vmatprep.subr.mxu0 0.0
    %728 = vmatpush1.msra.mxu0 0.0
    %729 = vmatprep.subr.mxu0 0.0
    %730 = vmatpush1.msra.mxu0 0.0
    %731 = vmatprep.subr.mxu0 0.0
    %732 = vmatpush1.msra.mxu0 0.0
    %733 = vmatprep.mubr.f32.mxu0 0.0
    %734 = vmatmul.mubr.f32.gmra.mrb[0].mxu0 %v591
    %v735 = vpop.f32.mrb[0].mxu0
    %v736 = vadd.f32 0.0, %v735
    %v737 = vpop.f32.mrb[0].mxu0
    %738 = vdwg.mxu0
    %v739 = vadd.f32 %v595, %v665
    %v740 = vadd.f32 %v596, %v667
    %v741 = vmul.f32 %v739, 0.5
    %v742 = vmul.f32 %v740, 0.5
    %v743 = vtanh.pop %v741
    %v744 = vtanh.pop %v742
    %v745 = vmul.f32 %v743, 0.5
    %v746 = vmul.f32 %v744, 0.5
    %v747 = vadd.f32 %v745, 0.5
    %v748 = vadd.f32 %v746, 0.5
    %v749 = vadd.f32 %v736, %v101
    %v750 = vmul.f32 %v747, %v749
    %v751 = vadd.f32 %v597, %v750
    %v752 = vtanh.pop %v751
    %v753 = vsub.f32 %v591, %v752
    %v754 = vmul.f32 %v748, %v753
    %v755 = vadd.f32 %v752, %v754
    %s756 = scalar_lea.vmem [#allocation8], 24
    %757 = vst [vmem:[%s756] sm:$0xff] %v755
    %s758 = scalar_lea.vmem [#allocation3], 96
    %v759 = vld [vmem:[%s758] sm:$0xff]
    %v760 = vld [vmem:[%s758 + $0x8] sm:$0xff]
    %v761 = vld [vmem:[%s758 + $0x10] sm:$0xff]
    %762 = vmatprep.subr.mxu0 %v49
    %763 = vmatpush1.msra.mxu0 %v48
    %764 = vmatprep.subr.mxu0 %v52
    %765 = vmatpush1.msra.mxu0 %v51
    %766 = vmatprep.subr.mxu0 %v55
    %767 = vmatpush1.msra.mxu0 %v54
    %768 = vmatprep.subr.mxu0 %v58
    %769 = vmatpush1.msra.mxu0 %v57
    %770 = vmatprep.subr.mxu0 %v61
    %771 = vmatpush1.msra.mxu0 %v60
    %772 = vmatprep.subr.mxu0 %v64
    %773 = vmatpush1.msra.mxu0 %v63
    %774 = vmatprep.subr.mxu0 %v67
    %775 = vmatpush1.msra.mxu0 %v66
    %776 = vmatprep.subr.mxu0 %v70
    %777 = vmatpush1.msra.mxu0 %v69
    %778 = vmatprep.subr.mxu0 %v73
    %779 = vmatpush1.msra.mxu0 %v72
    %780 = vmatprep.subr.mxu0 %v76
    %781 = vmatpush1.msra.mxu0 %v75
    %782 = vmatprep.subr.mxu0 %v79
    %783 = vmatpush1.msra.mxu0 %v78
    %784 = vmatprep.subr.mxu0 %v82
    %785 = vmatpush1.msra.mxu0 %v81
    %786 = vmatprep.subr.mxu0 %v85
    %787 = vmatpush1.msra.mxu0 %v84
    %788 = vmatprep.subr.mxu0 %v88
    %789 = vmatpush1.msra.mxu0 %v87
    %790 = vmatprep.subr.mxu0 %v91
    %791 = vmatpush1.msra.mxu0 %v90
    %792 = vmatprep.subr.mxu0 %v94
    %793 = vmatpush1.msra.mxu0 %v93
    %794 = vmatprep.subr.mxu0 0.0
    %795 = vmatpush1.msra.mxu0 0.0
    %796 = vmatprep.subr.mxu0 0.0
    %797 = vmatpush1.msra.mxu0 0.0
    %798 = vmatprep.subr.mxu0 0.0
    %799 = vmatpush1.msra.mxu0 0.0
    %800 = vmatprep.subr.mxu0 0.0
    %801 = vmatpush1.msra.mxu0 0.0
    %802 = vmatprep.subr.mxu0 0.0
    %803 = vmatpush1.msra.mxu0 0.0
    %804 = vmatprep.subr.mxu0 0.0
    %805 = vmatpush1.msra.mxu0 0.0
    %806 = vmatprep.subr.mxu0 0.0
    %807 = vmatpush1.msra.mxu0 0.0
    %808 = vmatprep.subr.mxu0 0.0
    %809 = vmatpush1.msra.mxu0 0.0
    %810 = vmatprep.subr.mxu0 0.0
    %811 = vmatpush1.msra.mxu0 0.0
    %812 = vmatprep.subr.mxu0 0.0
    %813 = vmatpush1.msra.mxu0 0.0
    %814 = vmatprep.subr.mxu0 0.0
    %815 = vmatpush1.msra.mxu0 0.0
    %816 = vmatprep.subr.mxu0 0.0
    %817 = vmatpush1.msra.mxu0 0.0
    %818 = vmatprep.subr.mxu0 0.0
    %819 = vmatpush1.msra.mxu0 0.0
    %820 = vmatprep.subr.mxu0 0.0
    %821 = vmatpush1.msra.mxu0 0.0
    %822 = vmatprep.subr.mxu0 0.0
    %823 = vmatpush1.msra.mxu0 0.0
    %824 = vmatprep.subr.mxu0 0.0
    %825 = vmatpush1.msra.mxu0 0.0
    %826 = vmatprep.mubr.f32.mxu0 0.0
    %827 = vmatmul.mubr.f32.gmra.mrb[0].mxu0 %v755
    %v828 = vpop.f32.mrb[0].mxu0
    %v829 = vadd.f32 0.0, %v828
    %v830 = vpop.f32.mrb[0].mxu0
    %v831 = vadd.f32 0.0, %v830
    %832 = vdwg.mxu0
    %833 = vmatprep.subr.mxu0 0.0
    %834 = vmatpush1.msra.mxu0 %v50
    %835 = vmatprep.subr.mxu0 0.0
    %836 = vmatpush1.msra.mxu0 %v53
    %837 = vmatprep.subr.mxu0 0.0
    %838 = vmatpush1.msra.mxu0 %v56
    %839 = vmatprep.subr.mxu0 0.0
    %840 = vmatpush1.msra.mxu0 %v59
    %841 = vmatprep.subr.mxu0 0.0
    %842 = vmatpush1.msra.mxu0 %v62
    %843 = vmatprep.subr.mxu0 0.0
    %844 = vmatpush1.msra.mxu0 %v65
    %845 = vmatprep.subr.mxu0 0.0
    %846 = vmatpush1.msra.mxu0 %v68
    %847 = vmatprep.subr.mxu0 0.0
    %848 = vmatpush1.msra.mxu0 %v71
    %849 = vmatprep.subr.mxu0 0.0
    %850 = vmatpush1.msra.mxu0 %v74
    %851 = vmatprep.subr.mxu0 0.0
    %852 = vmatpush1.msra.mxu0 %v77
    %853 = vmatprep.subr.mxu0 0.0
    %854 = vmatpush1.msra.mxu0 %v80
    %855 = vmatprep.subr.mxu0 0.0
    %856 = vmatpush1.msra.mxu0 %v83
    %857 = vmatprep.subr.mxu0 0.0
    %858 = vmatpush1.msra.mxu0 %v86
    %859 = vmatprep.subr.mxu0 0.0
    %860 = vmatpush1.msra.mxu0 %v89
    %861 = vmatprep.subr.mxu0 0.0
    %862 = vmatpush1.msra.mxu0 %v92
    %863 = vmatprep.subr.mxu0 0.0
    %864 = vmatpush1.msra.mxu0 %v95
    %865 = vmatprep.subr.mxu0 0.0
    %866 = vmatpush1.msra.mxu0 0.0
    %867 = vmatprep.subr.mxu0 0.0
    %868 = vmatpush1.msra.mxu0 0.0
    %869 = vmatprep.subr.mxu0 0.0
    %870 = vmatpush1.msra.mxu0 0.0
    %871 = vmatprep.subr.mxu0 0.0
    %872 = vmatpush1.msra.mxu0 0.0
    %873 = vmatprep.subr.mxu0 0.0
    %874 = vmatpush1.msra.mxu0 0.0
    %875 = vmatprep.subr.mxu0 0.0
    %876 = vmatpush1.msra.mxu0 0.0
    %877 = vmatprep.subr.mxu0 0.0
    %878 = vmatpush1.msra.mxu0 0.0
    %879 = vmatprep.subr.mxu0 0.0
    %880 = vmatpush1.msra.mxu0 0.0
    %881 = vmatprep.subr.mxu0 0.0
    %882 = vmatpush1.msra.mxu0 0.0
    %883 = vmatprep.subr.mxu0 0.0
    %884 = vmatpush1.msra.mxu0 0.0
    %885 = vmatprep.subr.mxu0 0.0
    %886 = vmatpush1.msra.mxu0 0.0
    %887 = vmatprep.subr.mxu0 0.0
    %888 = vmatpush1.msra.mxu0 0.0
    %889 = vmatprep.subr.mxu0 0.0
    %890 = vmatpush1.msra.mxu0 0.0
    %891 = vmatprep.subr.mxu0 0.0
    %892 = vmatpush1.msra.mxu0 0.0
    %893 = vmatprep.subr.mxu0 0.0
    %894 = vmatpush1.msra.mxu0 0.0
    %895 = vmatprep.subr.mxu0 0.0
    %896 = vmatpush1.msra.mxu0 0.0
    %897 = vmatprep.mubr.f32.mxu0 0.0
    %898 = vmatmul.mubr.f32.gmra.mrb[0].mxu0 %v755
    %v899 = vpop.f32.mrb[0].mxu0
    %v900 = vadd.f32 0.0, %v899
    %v901 = vpop.f32.mrb[0].mxu0
    %902 = vdwg.mxu0
    %v903 = vadd.f32 %v759, %v829
    %v904 = vadd.f32 %v760, %v831
    %v905 = vmul.f32 %v903, 0.5
    %v906 = vmul.f32 %v904, 0.5
    %v907 = vtanh.pop %v905
    %v908 = vtanh.pop %v906
    %v909 = vmul.f32 %v907, 0.5
    %v910 = vmul.f32 %v908, 0.5
    %v911 = vadd.f32 %v909, 0.5
    %v912 = vadd.f32 %v910, 0.5
    %v913 = vadd.f32 %v900, %v101
    %v914 = vmul.f32 %v911, %v913
    %v915 = vadd.f32 %v761, %v914
    %v916 = vtanh.pop %v915
    %v917 = vsub.f32 %v755, %v916
    %v918 = vmul.f32 %v912, %v917
    %v919 = vadd.f32 %v916, %v918
    %s920 = scalar_lea.vmem [#allocation8], 32
    %921 = vst [vmem:[%s920] sm:$0xff] %v919
    %s922 = scalar_lea.vmem [#allocation3], 120
    %v923 = vld [vmem:[%s922] sm:$0xff]
    %v924 = vld [vmem:[%s922 + $0x8] sm:$0xff]
    %v925 = vld [vmem:[%s922 + $0x10] sm:$0xff]
    %926 = vmatprep.subr.mxu0 %v49
    %927 = vmatpush1.msra.mxu0 %v48
    %928 = vmatprep.subr.mxu0 %v52
    %929 = vmatpush1.msra.mxu0 %v51
    %930 = vmatprep.subr.mxu0 %v55
    %931 = vmatpush1.msra.mxu0 %v54
    %932 = vmatprep.subr.mxu0 %v58
    %933 = vmatpush1.msra.mxu0 %v57
    %934 = vmatprep.subr.mxu0 %v61
    %935 = vmatpush1.msra.mxu0 %v60
    %936 = vmatprep.subr.mxu0 %v64
    %937 = vmatpush1.msra.mxu0 %v63
    %938 = vmatprep.subr.mxu0 %v67
    %939 = vmatpush1.msra.mxu0 %v66
    %940 = vmatprep.subr.mxu0 %v70
    %941 = vmatpush1.msra.mxu0 %v69
    %942 = vmatprep.subr.mxu0 %v73
    %943 = vmatpush1.msra.mxu0 %v72
    %944 = vmatprep.subr.mxu0 %v76
    %945 = vmatpush1.msra.mxu0 %v75
    %946 = vmatprep.subr.mxu0 %v79
    %947 = vmatpush1.msra.mxu0 %v78
    %948 = vmatprep.subr.mxu0 %v82
    %949 = vmatpush1.msra.mxu0 %v81
    %950 = vmatprep.subr.mxu0 %v85
    %951 = vmatpush1.msra.mxu0 %v84
    %952 = vmatprep.subr.mxu0 %v88
    %953 = vmatpush1.msra.mxu0 %v87
    %954 = vmatprep.subr.mxu0 %v91
    %955 = vmatpush1.msra.mxu0 %v90
    %956 = vmatprep.subr.mxu0 %v94
    %957 = vmatpush1.msra.mxu0 %v93
    %958 = vmatprep.subr.mxu0 0.0
    %959 = vmatpush1.msra.mxu0 0.0
    %960 = vmatprep.subr.mxu0 0.0
    %961 = vmatpush1.msra.mxu0 0.0
    %962 = vmatprep.subr.mxu0 0.0
    %963 = vmatpush1.msra.mxu0 0.0
    %964 = vmatprep.subr.mxu0 0.0
    %965 = vmatpush1.msra.mxu0 0.0
    %966 = vmatprep.subr.mxu0 0.0
    %967 = vmatpush1.msra.mxu0 0.0
    %968 = vmatprep.subr.mxu0 0.0
    %969 = vmatpush1.msra.mxu0 0.0
    %970 = vmatprep.subr.mxu0 0.0
    %971 = vmatpush1.msra.mxu0 0.0
    %972 = vmatprep.subr.mxu0 0.0
    %973 = vmatpush1.msra.mxu0 0.0
    %974 = vmatprep.subr.mxu0 0.0
    %975 = vmatpush1.msra.mxu0 0.0
    %976 = vmatprep.subr.mxu0 0.0
    %977 = vmatpush1.msra.mxu0 0.0
    %978 = vmatprep.subr.mxu0 0.0
    %979 = vmatpush1.msra.mxu0 0.0
    %980 = vmatprep.subr.mxu0 0.0
    %981 = vmatpush1.msra.mxu0 0.0
    %982 = vmatprep.subr.mxu0 0.0
    %983 = vmatpush1.msra.mxu0 0.0
    %984 = vmatprep.subr.mxu0 0.0
    %985 = vmatpush1.msra.mxu0 0.0
    %986 = vmatprep.subr.mxu0 0.0
    %987 = vmatpush1.msra.mxu0 0.0
    %988 = vmatprep.subr.mxu0 0.0
    %989 = vmatpush1.msra.mxu0 0.0
    %990 = vmatprep.mubr.f32.mxu0 0.0
    %991 = vmatmul.mubr.f32.gmra.mrb[0].mxu0 %v919
    %v992 = vpop.f32.mrb[0].mxu0
    %v993 = vadd.f32 0.0, %v992
    %v994 = vpop.f32.mrb[0].mxu0
    %v995 = vadd.f32 0.0, %v994
    %996 = vdwg.mxu0
    %997 = vmatprep.subr.mxu0 0.0
    %998 = vmatpush1.msra.mxu0 %v50
    %999 = vmatprep.subr.mxu0 0.0
    %1000 = vmatpush1.msra.mxu0 %v53
    %1001 = vmatprep.subr.mxu0 0.0
    %1002 = vmatpush1.msra.mxu0 %v56
    %1003 = vmatprep.subr.mxu0 0.0
    %1004 = vmatpush1.msra.mxu0 %v59
    %1005 = vmatprep.subr.mxu0 0.0
    %1006 = vmatpush1.msra.mxu0 %v62
    %1007 = vmatprep.subr.mxu0 0.0
    %1008 = vmatpush1.msra.mxu0 %v65
    %1009 = vmatprep.subr.mxu0 0.0
    %1010 = vmatpush1.msra.mxu0 %v68
    %1011 = vmatprep.subr.mxu0 0.0
    %1012 = vmatpush1.msra.mxu0 %v71
    %1013 = vmatprep.subr.mxu0 0.0
    %1014 = vmatpush1.msra.mxu0 %v74
    %1015 = vmatprep.subr.mxu0 0.0
    %1016 = vmatpush1.msra.mxu0 %v77
    %1017 = vmatprep.subr.mxu0 0.0
    %1018 = vmatpush1.msra.mxu0 %v80
    %1019 = vmatprep.subr.mxu0 0.0
    %1020 = vmatpush1.msra.mxu0 %v83
    %1021 = vmatprep.subr.mxu0 0.0
    %1022 = vmatpush1.msra.mxu0 %v86
    %1023 = vmatprep.subr.mxu0 0.0
    %1024 = vmatpush1.msra.mxu0 %v89
    %1025 = vmatprep.subr.mxu0 0.0
    %1026 = vmatpush1.msra.mxu0 %v92
    %1027 = vmatprep.subr.mxu0 0.0
    %1028 = vmatpush1.msra.mxu0 %v95
    %1029 = vmatprep.subr.mxu0 0.0
    %1030 = vmatpush1.msra.mxu0 0.0
    %1031 = vmatprep.subr.mxu0 0.0
    %1032 = vmatpush1.msra.mxu0 0.0
    %1033 = vmatprep.subr.mxu0 0.0
    %1034 = vmatpush1.msra.mxu0 0.0
    %1035 = vmatprep.subr.mxu0 0.0
    %1036 = vmatpush1.msra.mxu0 0.0
    %1037 = vmatprep.subr.mxu0 0.0
    %1038 = vmatpush1.msra.mxu0 0.0
    %1039 = vmatprep.subr.mxu0 0.0
    %1040 = vmatpush1.msra.mxu0 0.0
    %1041 = vmatprep.subr.mxu0 0.0
    %1042 = vmatpush1.msra.mxu0 0.0
    %1043 = vmatprep.subr.mxu0 0.0
    %1044 = vmatpush1.msra.mxu0 0.0
    %1045 = vmatprep.subr.mxu0 0.0
    %1046 = vmatpush1.msra.mxu0 0.0
    %1047 = vmatprep.subr.mxu0 0.0
    %1048 = vmatpush1.msra.mxu0 0.0
    %1049 = vmatprep.subr.mxu0 0.0
    %1050 = vmatpush1.msra.mxu0 0.0
    %1051 = vmatprep.subr.mxu0 0.0
    %1052 = vmatpush1.msra.mxu0 0.0
    %1053 = vmatprep.subr.mxu0 0.0
    %1054 = vmatpush1.msra.mxu0 0.0
    %1055 = vmatprep.subr.mxu0 0.0
    %1056 = vmatpush1.msra.mxu0 0.0
    %1057 = vmatprep.subr.mxu0 0.0
    %1058 = vmatpush1.msra.mxu0 0.0
    %1059 = vmatprep.subr.mxu0 0.0
    %1060 = vmatpush1.msra.mxu0 0.0
    %1061 = vmatprep.mubr.f32.mxu0 0.0
    %1062 = vmatmul.mubr.f32.gmra.mrb[0].mxu0 %v919
    %v1063 = vpop.f32.mrb[0].mxu0
    %v1064 = vadd.f32 0.0, %v1063
    %v1065 = vpop.f32.mrb[0].mxu0
    %1066 = vdwg.mxu0
    %v1067 = vadd.f32 %v923, %v993
    %v1068 = vadd.f32 %v924, %v995
    %v1069 = vmul.f32 %v1067, 0.5
    %v1070 = vmul.f32 %v1068, 0.5
    %v1071 = vtanh.pop %v1069
    %v1072 = vtanh.pop %v1070
    %v1073 = vmul.f32 %v1071, 0.5
    %v1074 = vmul.f32 %v1072, 0.5
    %v1075 = vadd.f32 %v1073, 0.5
    %v1076 = vadd.f32 %v1074, 0.5
    %v1077 = vadd.f32 %v1064, %v101
    %v1078 = vmul.f32 %v1075, %v1077
    %v1079 = vadd.f32 %v925, %v1078
    %v1080 = vtanh.pop %v1079
    %v1081 = vsub.f32 %v919, %v1080
    %v1082 = vmul.f32 %v1076, %v1081
    %v1083 = vadd.f32 %v1080, %v1082
    %s1084 = scalar_lea.vmem [#allocation8], 40
    %1085 = vst [vmem:[%s1084] sm:$0xff] %v1083
    %s1086 = scalar_lea.vmem [#allocation3], 144
    %v1087 = vld [vmem:[%s1086] sm:$0xff]
    %v1088 = vld [vmem:[%s1086 + $0x8] sm:$0xff]
    %v1089 = vld [vmem:[%s1086 + $0x10] sm:$0xff]
    %1090 = vmatprep.subr.mxu0 %v49
    %1091 = vmatpush1.msra.mxu0 %v48
    %1092 = vmatprep.subr.mxu0 %v52
    %1093 = vmatpush1.msra.mxu0 %v51
    %1094 = vmatprep.subr.mxu0 %v55
    %1095 = vmatpush1.msra.mxu0 %v54
    %1096 = vmatprep.subr.mxu0 %v58
    %1097 = vmatpush1.msra.mxu0 %v57
    %1098 = vmatprep.subr.mxu0 %v61
    %1099 = vmatpush1.msra.mxu0 %v60
    %1100 = vmatprep.subr.mxu0 %v64
    %1101 = vmatpush1.msra.mxu0 %v63
    %1102 = vmatprep.subr.mxu0 %v67
    %1103 = vmatpush1.msra.mxu0 %v66
    %1104 = vmatprep.subr.mxu0 %v70
    %1105 = vmatpush1.msra.mxu0 %v69
    %1106 = vmatprep.subr.mxu0 %v73
    %1107 = vmatpush1.msra.mxu0 %v72
    %1108 = vmatprep.subr.mxu0 %v76
    %1109 = vmatpush1.msra.mxu0 %v75
    %1110 = vmatprep.subr.mxu0 %v79
    %1111 = vmatpush1.msra.mxu0 %v78
    %1112 = vmatprep.subr.mxu0 %v82
    %1113 = vmatpush1.msra.mxu0 %v81
    %1114 = vmatprep.subr.mxu0 %v85
    %1115 = vmatpush1.msra.mxu0 %v84
    %1116 = vmatprep.subr.mxu0 %v88
    %1117 = vmatpush1.msra.mxu0 %v87
    %1118 = vmatprep.subr.mxu0 %v91
    %1119 = vmatpush1.msra.mxu0 %v90
    %1120 = vmatprep.subr.mxu0 %v94
    %1121 = vmatpush1.msra.mxu0 %v93
    %1122 = vmatprep.subr.mxu0 0.0
    %1123 = vmatpush1.msra.mxu0 0.0
    %1124 = vmatprep.subr.mxu0 0.0
    %1125 = vmatpush1.msra.mxu0 0.0
    %1126 = vmatprep.subr.mxu0 0.0
    %1127 = vmatpush1.msra.mxu0 0.0
    %1128 = vmatprep.subr.mxu0 0.0
    %1129 = vmatpush1.msra.mxu0 0.0
    %1130 = vmatprep.subr.mxu0 0.0
    %1131 = vmatpush1.msra.mxu0 0.0
    %1132 = vmatprep.subr.mxu0 0.0
    %1133 = vmatpush1.msra.mxu0 0.0
    %1134 = vmatprep.subr.mxu0 0.0
    %1135 = vmatpush1.msra.mxu0 0.0
    %1136 = vmatprep.subr.mxu0 0.0
    %1137 = vmatpush1.msra.mxu0 0.0
    %1138 = vmatprep.subr.mxu0 0.0
    %1139 = vmatpush1.msra.mxu0 0.0
    %1140 = vmatprep.subr.mxu0 0.0
    %1141 = vmatpush1.msra.mxu0 0.0
    %1142 = vmatprep.subr.mxu0 0.0
    %1143 = vmatpush1.msra.mxu0 0.0
    %1144 = vmatprep.subr.mxu0 0.0
    %1145 = vmatpush1.msra.mxu0 0.0
    %1146 = vmatprep.subr.mxu0 0.0
    %1147 = vmatpush1.msra.mxu0 0.0
    %1148 = vmatprep.subr.mxu0 0.0
    %1149 = vmatpush1.msra.mxu0 0.0
    %1150 = vmatprep.subr.mxu0 0.0
    %1151 = vmatpush1.msra.mxu0 0.0
    %1152 = vmatprep.subr.mxu0 0.0
    %1153 = vmatpush1.msra.mxu0 0.0
    %1154 = vmatprep.mubr.f32.mxu0 0.0
    %1155 = vmatmul.mubr.f32.gmra.mrb[0].mxu0 %v1083
    %v1156 = vpop.f32.mrb[0].mxu0
    %v1157 = vadd.f32 0.0, %v1156
    %v1158 = vpop.f32.mrb[0].mxu0
    %v1159 = vadd.f32 0.0, %v1158
    %1160 = vdwg.mxu0
    %1161 = vmatprep.subr.mxu0 0.0
    %1162 = vmatpush1.msra.mxu0 %v50
    %1163 = vmatprep.subr.mxu0 0.0
    %1164 = vmatpush1.msra.mxu0 %v53
    %1165 = vmatprep.subr.mxu0 0.0
    %1166 = vmatpush1.msra.mxu0 %v56
    %1167 = vmatprep.subr.mxu0 0.0
    %1168 = vmatpush1.msra.mxu0 %v59
    %1169 = vmatprep.subr.mxu0 0.0
    %1170 = vmatpush1.msra.mxu0 %v62
    %1171 = vmatprep.subr.mxu0 0.0
    %1172 = vmatpush1.msra.mxu0 %v65
    %1173 = vmatprep.subr.mxu0 0.0
    %1174 = vmatpush1.msra.mxu0 %v68
    %1175 = vmatprep.subr.mxu0 0.0
    %1176 = vmatpush1.msra.mxu0 %v71
    %1177 = vmatprep.subr.mxu0 0.0
    %1178 = vmatpush1.msra.mxu0 %v74
    %1179 = vmatprep.subr.mxu0 0.0
    %1180 = vmatpush1.msra.mxu0 %v77
    %1181 = vmatprep.subr.mxu0 0.0
    %1182 = vmatpush1.msra.mxu0 %v80
    %1183 = vmatprep.subr.mxu0 0.0
    %1184 = vmatpush1.msra.mxu0 %v83
    %1185 = vmatprep.subr.mxu0 0.0
    %1186 = vmatpush1.msra.mxu0 %v86
    %1187 = vmatprep.subr.mxu0 0.0
    %1188 = vmatpush1.msra.mxu0 %v89
    %1189 = vmatprep.subr.mxu0 0.0
    %1190 = vmatpush1.msra.mxu0 %v92
    %1191 = vmatprep.subr.mxu0 0.0
    %1192 = vmatpush1.msra.mxu0 %v95
    %1193 = vmatprep.subr.mxu0 0.0
    %1194 = vmatpush1.msra.mxu0 0.0
    %1195 = vmatprep.subr.mxu0 0.0
    %1196 = vmatpush1.msra.mxu0 0.0
    %1197 = vmatprep.subr.mxu0 0.0
    %1198 = vmatpush1.msra.mxu0 0.0
    %1199 = vmatprep.subr.mxu0 0.0
    %1200 = vmatpush1.msra.mxu0 0.0
    %1201 = vmatprep.subr.mxu0 0.0
    %1202 = vmatpush1.msra.mxu0 0.0
    %1203 = vmatprep.subr.mxu0 0.0
    %1204 = vmatpush1.msra.mxu0 0.0
    %1205 = vmatprep.subr.mxu0 0.0
    %1206 = vmatpush1.msra.mxu0 0.0
    %1207 = vmatprep.subr.mxu0 0.0
    %1208 = vmatpush1.msra.mxu0 0.0
    %1209 = vmatprep.subr.mxu0 0.0
    %1210 = vmatpush1.msra.mxu0 0.0
    %1211 = vmatprep.subr.mxu0 0.0
    %1212 = vmatpush1.msra.mxu0 0.0
    %1213 = vmatprep.subr.mxu0 0.0
    %1214 = vmatpush1.msra.mxu0 0.0
    %1215 = vmatprep.subr.mxu0 0.0
    %1216 = vmatpush1.msra.mxu0 0.0
    %1217 = vmatprep.subr.mxu0 0.0
    %1218 = vmatpush1.msra.mxu0 0.0
    %1219 = vmatprep.subr.mxu0 0.0
    %1220 = vmatpush1.msra.mxu0 0.0
    %1221 = vmatprep.subr.mxu0 0.0
    %1222 = vmatpush1.msra.mxu0 0.0
    %1223 = vmatprep.subr.mxu0 0.0
    %1224 = vmatpush1.msra.mxu0 0.0
    %1225 = vmatprep.mubr.f32.mxu0 0.0
    %1226 = vmatmul.mubr.f32.gmra.mrb[0].mxu0 %v1083
    %v1227 = vpop.f32.mrb[0].mxu0
    %v1228 = vadd.f32 0.0, %v1227
    %v1229 = vpop.f32.mrb[0].mxu0
    %1230 = vdwg.mxu0
    %v1231 = vadd.f32 %v1087, %v1157
    %v1232 = vadd.f32 %v1088, %v1159
    %v1233 = vmul.f32 %v1231, 0.5
    %v1234 = vmul.f32 %v1232, 0.5
    %v1235 = vtanh.pop %v1233
    %v1236 = vtanh.pop %v1234
    %v1237 = vmul.f32 %v1235, 0.5
    %v1238 = vmul.f32 %v1236, 0.5
    %v1239 = vadd.f32 %v1237, 0.5
    %v1240 = vadd.f32 %v1238, 0.5
    %v1241 = vadd.f32 %v1228, %v101
    %v1242 = vmul.f32 %v1239, %v1241
    %v1243 = vadd.f32 %v1089, %v1242
    %v1244 = vtanh.pop %v1243
    %v1245 = vsub.f32 %v1083, %v1244
    %v1246 = vmul.f32 %v1240, %v1245
    %v1247 = vadd.f32 %v1244, %v1246
    %s1248 = scalar_lea.vmem [#allocation8], 48
    %1249 = vst [vmem:[%s1248] sm:$0xff] %v1247
    %s1250 = scalar_lea.vmem [#allocation3], 168
    %v1251 = vld [vmem:[%s1250] sm:$0xff]
    %v1252 = vld [vmem:[%s1250 + $0x8] sm:$0xff]
    %v1253 = vld [vmem:[%s1250 + $0x10] sm:$0xff]
    %1254 = vmatprep.subr.mxu0 %v49
    %1255 = vmatpush1.msra.mxu0 %v48
    %1256 = vmatprep.subr.mxu0 %v52
    %1257 = vmatpush1.msra.mxu0 %v51
    %1258 = vmatprep.subr.mxu0 %v55
    %1259 = vmatpush1.msra.mxu0 %v54
    %1260 = vmatprep.subr.mxu0 %v58
    %1261 = vmatpush1.msra.mxu0 %v57
    %1262 = vmatprep.subr.mxu0 %v61
    %1263 = vmatpush1.msra.mxu0 %v60
    %1264 = vmatprep.subr.mxu0 %v64
    %1265 = vmatpush1.msra.mxu0 %v63
    %1266 = vmatprep.subr.mxu0 %v67
    %1267 = vmatpush1.msra.mxu0 %v66
    %1268 = vmatprep.subr.mxu0 %v70
    %1269 = vmatpush1.msra.mxu0 %v69
    %1270 = vmatprep.subr.mxu0 %v73
    %1271 = vmatpush1.msra.mxu0 %v72
    %1272 = vmatprep.subr.mxu0 %v76
    %1273 = vmatpush1.msra.mxu0 %v75
    %1274 = vmatprep.subr.mxu0 %v79
    %1275 = vmatpush1.msra.mxu0 %v78
    %1276 = vmatprep.subr.mxu0 %v82
    %1277 = vmatpush1.msra.mxu0 %v81
    %1278 = vmatprep.subr.mxu0 %v85
    %1279 = vmatpush1.msra.mxu0 %v84
    %1280 = vmatprep.subr.mxu0 %v88
    %1281 = vmatpush1.msra.mxu0 %v87
    %1282 = vmatprep.subr.mxu0 %v91
    %1283 = vmatpush1.msra.mxu0 %v90
    %1284 = vmatprep.subr.mxu0 %v94
    %1285 = vmatpush1.msra.mxu0 %v93
    %1286 = vmatprep.subr.mxu0 0.0
    %1287 = vmatpush1.msra.mxu0 0.0
    %1288 = vmatprep.subr.mxu0 0.0
    %1289 = vmatpush1.msra.mxu0 0.0
    %1290 = vmatprep.subr.mxu0 0.0
    %1291 = vmatpush1.msra.mxu0 0.0
    %1292 = vmatprep.subr.mxu0 0.0
    %1293 = vmatpush1.msra.mxu0 0.0
    %1294 = vmatprep.subr.mxu0 0.0
    %1295 = vmatpush1.msra.mxu0 0.0
    %1296 = vmatprep.subr.mxu0 0.0
    %1297 = vmatpush1.msra.mxu0 0.0
    %1298 = vmatprep.subr.mxu0 0.0
    %1299 = vmatpush1.msra.mxu0 0.0
    %1300 = vmatprep.subr.mxu0 0.0
    %1301 = vmatpush1.msra.mxu0 0.0
    %1302 = vmatprep.subr.mxu0 0.0
    %1303 = vmatpush1.msra.mxu0 0.0
    %1304 = vmatprep.subr.mxu0 0.0
    %1305 = vmatpush1.msra.mxu0 0.0
    %1306 = vmatprep.subr.mxu0 0.0
    %1307 = vmatpush1.msra.mxu0 0.0
    %1308 = vmatprep.subr.mxu0 0.0
    %1309 = vmatpush1.msra.mxu0 0.0
    %1310 = vmatprep.subr.mxu0 0.0
    %1311 = vmatpush1.msra.mxu0 0.0
    %1312 = vmatprep.subr.mxu0 0.0
    %1313 = vmatpush1.msra.mxu0 0.0
    %1314 = vmatprep.subr.mxu0 0.0
    %1315 = vmatpush1.msra.mxu0 0.0
    %1316 = vmatprep.subr.mxu0 0.0
    %1317 = vmatpush1.msra.mxu0 0.0
    %1318 = vmatprep.mubr.f32.mxu0 0.0
    %1319 = vmatmul.mubr.f32.gmra.mrb[0].mxu0 %v1247
    %v1320 = vpop.f32.mrb[0].mxu0
    %v1321 = vadd.f32 0.0, %v1320
    %v1322 = vpop.f32.mrb[0].mxu0
    %v1323 = vadd.f32 0.0, %v1322
    %1324 = vdwg.mxu0
    %1325 = vmatprep.subr.mxu0 0.0
    %1326 = vmatpush1.msra.mxu0 %v50
    %1327 = vmatprep.subr.mxu0 0.0
    %1328 = vmatpush1.msra.mxu0 %v53
    %1329 = vmatprep.subr.mxu0 0.0
    %1330 = vmatpush1.msra.mxu0 %v56
    %1331 = vmatprep.subr.mxu0 0.0
    %1332 = vmatpush1.msra.mxu0 %v59
    %1333 = vmatprep.subr.mxu0 0.0
    %1334 = vmatpush1.msra.mxu0 %v62
    %1335 = vmatprep.subr.mxu0 0.0
    %1336 = vmatpush1.msra.mxu0 %v65
    %1337 = vmatprep.subr.mxu0 0.0
    %1338 = vmatpush1.msra.mxu0 %v68
    %1339 = vmatprep.subr.mxu0 0.0
    %1340 = vmatpush1.msra.mxu0 %v71
    %1341 = vmatprep.subr.mxu0 0.0
    %1342 = vmatpush1.msra.mxu0 %v74
    %1343 = vmatprep.subr.mxu0 0.0
    %1344 = vmatpush1.msra.mxu0 %v77
    %1345 = vmatprep.subr.mxu0 0.0
    %1346 = vmatpush1.msra.mxu0 %v80
    %1347 = vmatprep.subr.mxu0 0.0
    %1348 = vmatpush1.msra.mxu0 %v83
    %1349 = vmatprep.subr.mxu0 0.0
    %1350 = vmatpush1.msra.mxu0 %v86
    %1351 = vmatprep.subr.mxu0 0.0
    %1352 = vmatpush1.msra.mxu0 %v89
    %1353 = vmatprep.subr.mxu0 0.0
    %1354 = vmatpush1.msra.mxu0 %v92
    %1355 = vmatprep.subr.mxu0 0.0
    %1356 = vmatpush1.msra.mxu0 %v95
    %1357 = vmatprep.subr.mxu0 0.0
    %1358 = vmatpush1.msra.mxu0 0.0
    %1359 = vmatprep.subr.mxu0 0.0
    %1360 = vmatpush1.msra.mxu0 0.0
    %1361 = vmatprep.subr.mxu0 0.0
    %1362 = vmatpush1.msra.mxu0 0.0
    %1363 = vmatprep.subr.mxu0 0.0
    %1364 = vmatpush1.msra.mxu0 0.0
    %1365 = vmatprep.subr.mxu0 0.0
    %1366 = vmatpush1.msra.mxu0 0.0
    %1367 = vmatprep.subr.mxu0 0.0
    %1368 = vmatpush1.msra.mxu0 0.0
    %1369 = vmatprep.subr.mxu0 0.0
    %1370 = vmatpush1.msra.mxu0 0.0
    %1371 = vmatprep.subr.mxu0 0.0
    %1372 = vmatpush1.msra.mxu0 0.0
    %1373 = vmatprep.subr.mxu0 0.0
    %1374 = vmatpush1.msra.mxu0 0.0
    %1375 = vmatprep.subr.mxu0 0.0
    %1376 = vmatpush1.msra.mxu0 0.0
    %1377 = vmatprep.subr.mxu0 0.0
    %1378 = vmatpush1.msra.mxu0 0.0
    %1379 = vmatprep.subr.mxu0 0.0
    %1380 = vmatpush1.msra.mxu0 0.0
    %1381 = vmatprep.subr.mxu0 0.0
    %1382 = vmatpush1.msra.mxu0 0.0
    %1383 = vmatprep.subr.mxu0 0.0
    %1384 = vmatpush1.msra.mxu0 0.0
    %1385 = vmatprep.subr.mxu0 0.0
    %1386 = vmatpush1.msra.mxu0 0.0
    %1387 = vmatprep.subr.mxu0 0.0
    %1388 = vmatpush1.msra.mxu0 0.0
    %1389 = vmatprep.mubr.f32.mxu0 0.0
    %1390 = vmatmul.mubr.f32.gmra.mrb[0].mxu0 %v1247
    %v1391 = vpop.f32.mrb[0].mxu0
    %v1392 = vadd.f32 0.0, %v1391
    %v1393 = vpop.f32.mrb[0].mxu0
    %1394 = vdwg.mxu0
    %v1395 = vadd.f32 %v1251, %v1321
    %v1396 = vadd.f32 %v1252, %v1323
    %v1397 = vmul.f32 %v1395, 0.5
    %v1398 = vmul.f32 %v1396, 0.5
    %v1399 = vtanh.pop %v1397
    %v1400 = vtanh.pop %v1398
    %v1401 = vmul.f32 %v1399, 0.5
    %v1402 = vmul.f32 %v1400, 0.5
    %v1403 = vadd.f32 %v1401, 0.5
    %v1404 = vadd.f32 %v1402, 0.5
    %v1405 = vadd.f32 %v1392, %v101
    %v1406 = vmul.f32 %v1403, %v1405
    %v1407 = vadd.f32 %v1253, %v1406
    %v1408 = vtanh.pop %v1407
    %v1409 = vsub.f32 %v1247, %v1408
    %v1410 = vmul.f32 %v1404, %v1409
    %v1411 = vadd.f32 %v1408, %v1410
    %s1412 = scalar_lea.vmem [#allocation8], 56
    %1413 = vst [vmem:[%s1412] sm:$0xff] %v1411
    %1414 = vst [vmem:[#allocation2] sm:$0xff] %v1411
    // Predicated region
    $region26: #{tpu_custom_call.1} parent=1 // pred_check
      _
    $region27: #{tpu_custom_call.1} parent=1 // pred_check_branch
      %1416 = sbr.rel (0) target = $region29
    $region28: #{tpu_custom_call.1} parent=1 // pred_region
      %s1418 = ssub.s32 1024, 1024
      %1419 = vsyncadd [#allocation5], %s1418
      %s1420 = sshll.u32 [#allocation8], 4
      %s1421 = int_to_ptr.vmem [resolvable:$true] %s1420
      %1426 = dma.vmem_to_hbm [thread:$0]  %s1421, 1024, %s3, [#allocation5], 128, 128, 8
    $region29: #{tpu_custom_call.1} parent=1 // pred_fallthru
      _
    // Predicated region
    $region30: #{tpu_custom_call.1} parent=1 // pred_check
      _
    $region31: #{tpu_custom_call.1} parent=1 // pred_check_branch
      %1428 = sbr.rel (0) target = $region33
    $region32: #{tpu_custom_call.1} parent=1 // pred_region
      %1429 = dma.done [#allocation5], 1024
    $region33: #{tpu_custom_call.1} parent=1 // pred_fallthru
      _
    %1430 = vsyncpa [#allocation4], 1
    %1431 = vsyncpa [#allocation7], 1
    %1432 = vsyncpa [#allocation5], 1

// kernel: tpu_custom_call.1
$region0: #{tpu_custom_call.1}
  #allocation0 [shape = 'u32[]', space=smem, size = 0x4, offset = 0x4, fixed_abs, tag = 'smem constant byte address 0x4 - core index']
  #allocation1 [shape = 'u32[144,128]{1,0:T(1,128)}', space=vmem, size = 0x12000, scoped, tag = 'internal scratch']
  #allocation2 [shape = 'f32[8,128]{1,0:T(8,128)}', space=vmem, size = 0x1000, scoped, tag = 'scratch operand']
  %s0 = inlined_call_operand.hbm [shape: f32[8,8,384], index: 0, kind: input, shape index: {}]
  %s1 = inlined_call_operand.hbm [shape: f32[128,384], index: 1, kind: input, shape index: {}]
  %s2 = inlined_call_operand.vmem [shape: f32[1,128], index: 2, kind: input, shape index: {}]
  %s3 = inlined_call_operand.hbm [shape: f32[8,8,128], index: 3, kind: output, shape index: {}]
  %s4 = sld [smem:[#allocation0]]
  $region34: #{tpu_custom_call.1} parent=0
    _
  %s6 = ssub.s32 1, %s4
  %s7 = scalar_select 0, %s6, %s4
  $region1: #{tpu_custom_call.1} parent=0
    #allocation3 [shape = 'u8[98304]{0}', space=vmem, size = 0x18000, scoped, tag = 'input window, operand 0, single buffered']
    #allocation4 [shape = 's32[1]{0}', space=sflag, size = 0x4, scoped, tag = 'scoped memory for tpu_custom_call.1']
    #allocation5 [shape = 's32[1]{0}', space=sflag, size = 0x4, scoped, tag = 'scoped memory for tpu_custom_call.1']
    #allocation6 [shape = 'u8[196608]{0}', space=vmem, size = 0x30000, scoped, tag = 'input window, operand 1, single buffered']
    #allocation7 [shape = 's32[1]{0}', space=sflag, size = 0x4, scoped, tag = 'scoped memory for tpu_custom_call.1']
    #allocation8 [shape = 'u8[32768]{0}', space=vmem, size = 0x8000, scoped, tag = 'output window, operand 0, single buffered']
    %8 = vsyncpa [#allocation4], 0
    %9 = vsyncpa [#allocation7], 0
    %10 = vsyncpa [#allocation5], 0
    // Predicated region
    $region2: #{tpu_custom_call.1} parent=1 // pred_check
      _
    $region3: #{tpu_custom_call.1} parent=1 // pred_check_branch
      %12 = sbr.rel (0) target = $region5
    $region4: #{tpu_custom_call.1} parent=1 // pred_region
      %s14 = ssub.s32 3072, 3072
      %15 = vsyncadd [#allocation4], %s14
      %s16 = sshll.u32 [#allocation3], 4
      %s17 = int_to_ptr.vmem [resolvable:$true] %s16
      %22 = dma.hbm_to_vmem [thread:$0]  %s0, 3072, %s17, [#allocation4], 384, 384, 24
    $region5: #{tpu_custom_call.1} parent=1 // pred_fallthru
      _
    // Predicated region
    $region6: #{tpu_custom_call.1} parent=1 // pred_check
      _
    $region7: #{tpu_custom_call.1} parent=1 // pred_check_branch
      %24 = sbr.rel (0) target = $region9
    $region8: #{tpu_custom_call.1} parent=1 // pred_region
      %s26 = ssub.s32 6144, 6144
      %27 = vsyncadd [#allocation7], %s26
      %s28 = sshll.u32 [#allocation6], 4
      %s29 = int_to_ptr.vmem [resolvable:$true] %s28
      %34 = dma.hbm_to_vmem [thread:$0]  %s1, 6144, %s29, [#allocation7], 384, 384, 24
    $region9: #{tpu_custom_call.1} parent=1 // pred_fallthru
      _
    // Predicated region
    $region10: #{tpu_custom_call.1} parent=1 // pred_check
      _
    $region11: #{tpu_custom_call.1} parent=1 // pred_check_branch
      %36 = sbr.rel (0) target = $region13
    $region12: #{tpu_custom_call.1} parent=1 // pred_region
      _
    $region13: #{tpu_custom_call.1} parent=1 // pred_fallthru
      _
    // Predicated region
    $region14: #{tpu_custom_call.1} parent=1 // pred_check
      _
    $region15: #{tpu_custom_call.1} parent=1 // pred_check_branch
      %38 = sbr.rel (0) target = $region17
    $region16: #{tpu_custom_call.1} parent=1 // pred_region
      %39 = dma.done [#allocation4], 3072
    $region17: #{tpu_custom_call.1} parent=1 // pred_fallthru
      _
    // Predicated region
    $region18: #{tpu_custom_call.1} parent=1 // pred_check
      _
    $region19: #{tpu_custom_call.1} parent=1 // pred_check_branch
      %41 = sbr.rel (0) target = $region21
    $region20: #{tpu_custom_call.1} parent=1 // pred_region
      %42 = dma.done [#allocation7], 6144
    $region21: #{tpu_custom_call.1} parent=1 // pred_fallthru
      _
    %p43 = scmp.eq.s32.totalorder 0, 0
    // Predicated region
    $region22: #{tpu_custom_call.1} parent=1 // pred_check
      %p44 = pneg %p43
    $region23: #{tpu_custom_call.1} parent=1 // pred_check_branch
      %46 = sbr.rel (%p44) target = $region25
    $region24: #{tpu_custom_call.1} parent=1 // pred_region
      %47 = vst [vmem:[#allocation2] sm:$0xff] 0.0
    $region25: #{tpu_custom_call.1} parent=1 // pred_fallthru
      _
    %v48 = vld [vmem:[#allocation6] sm:$0xff]
    %v49 = vld [vmem:[#allocation6 + $0x8] sm:$0xff]
    %v50 = vld [vmem:[#allocation6 + $0x10] sm:$0xff]
    %v51 = vld [vmem:[#allocation6 + $0x18] sm:$0xff]
    %v52 = vld [vmem:[#allocation6 + $0x20] sm:$0xff]
    %v53 = vld [vmem:[#allocation6 + $0x28] sm:$0xff]
    %v54 = vld [vmem:[#allocation6 + $0x30] sm:$0xff]
    %v55 = vld [vmem:[#allocation6 + $0x38] sm:$0xff]
    %v56 = vld [vmem:[#allocation6 + $0x40] sm:$0xff]
    %v57 = vld [vmem:[#allocation6 + $0x48] sm:$0xff]
    %v58 = vld [vmem:[#allocation6 + $0x50] sm:$0xff]
    %v59 = vld [vmem:[#allocation6 + $0x58] sm:$0xff]
    %v60 = vld [vmem:[#allocation6 + $0x60] sm:$0xff]
    %v61 = vld [vmem:[#allocation6 + $0x68] sm:$0xff]
    %v62 = vld [vmem:[#allocation6 + $0x70] sm:$0xff]
    %v63 = vld [vmem:[#allocation6 + $0x78] sm:$0xff]
    %v64 = vld [vmem:[#allocation6 + $0x80] sm:$0xff]
    %v65 = vld [vmem:[#allocation6 + $0x88] sm:$0xff]
    %v66 = vld [vmem:[#allocation6 + $0x90] sm:$0xff]
    %v67 = vld [vmem:[#allocation6 + $0x98] sm:$0xff]
    %v68 = vld [vmem:[#allocation6 + $0xa0] sm:$0xff]
    %v69 = vld [vmem:[#allocation6 + $0xa8] sm:$0xff]
    %v70 = vld [vmem:[#allocation6 + $0xb0] sm:$0xff]
    %v71 = vld [vmem:[#allocation6 + $0xb8] sm:$0xff]
    %v72 = vld [vmem:[#allocation6 + $0xc0] sm:$0xff]
    %v73 = vld [vmem:[#allocation6 + $0xc8] sm:$0xff]
    %v74 = vld [vmem:[#allocation6 + $0xd0] sm:$0xff]
    %v75 = vld [vmem:[#allocation6 + $0xd8] sm:$0xff]
    %v76 = vld [vmem:[#allocation6 + $0xe0] sm:$0xff]
    %v77 = vld [vmem:[#allocation6 + $0xe8] sm:$0xff]
    %v78 = vld [vmem:[#allocation6 + $0xf0] sm:$0xff]
    %v79 = vld [vmem:[#allocation6 + $0xf8] sm:$0xff]
    %v80 = vld [vmem:[#allocation6 + $0x100] sm:$0xff]
    %v81 = vld [vmem:[#allocation6 + $0x108] sm:$0xff]
    %v82 = vld [vmem:[#allocation6 + $0x110] sm:$0xff]
    %v83 = vld [vmem:[#allocation6 + $0x118] sm:$0xff]
    %v84 = vld [vmem:[#allocation6 + $0x120] sm:$0xff]
    %v85 = vld [vmem:[#allocation6 + $0x128] sm:$0xff]
    %v86 = vld [vmem:[#allocation6 + $0x130] sm:$0xff]
    %v87 = vld [vmem:[#allocation6 + $0x138] sm:$0xff]
    %v88 = vld [vmem:[#allocation6 + $0x140] sm:$0xff]
    %v89 = vld [vmem:[#allocation6 + $0x148] sm:$0xff]
    %v90 = vld [vmem:[#allocation6 + $0x150] sm:$0xff]
    %v91 = vld [vmem:[#allocation6 + $0x158] sm:$0xff]
    %v92 = vld [vmem:[#allocation6 + $0x160] sm:$0xff]
    %v93 = vld [vmem:[#allocation6 + $0x168] sm:$0xff]
    %v94 = vld [vmem:[#allocation6 + $0x170] sm:$0xff]
    %v95 = vld [vmem:[#allocation6 + $0x178] sm:$0xff]
    %v96 = vld [vmem:[%s2] sm:$0x1]
    %v98 = vlaneseq
    %v99 = vshrl.u32 %v98, 7
    %v100 = vsub.s32 0, %v99
    %v101 = vrot.slane %v96, %v100
    %v103 = vld [vmem:[#allocation2] sm:$0xff]
    %v104 = vld [vmem:[#allocation3] sm:$0xff]
    %v105 = vld [vmem:[#allocation3 + $0x8] sm:$0xff]
    %v106 = vld [vmem:[#allocation3 + $0x10] sm:$0xff]
    %107 = vmatprep.subr.mxu0 %v49
    %108 = vmatpush1.msra.mxu0 %v48
    %109 = vmatprep.subr.mxu0 %v52
    %110 = vmatpush1.msra.mxu0 %v51
    %111 = vmatprep.subr.mxu0 %v55
    %112 = vmatpush1.msra.mxu0 %v54
    %113 = vmatprep.subr.mxu0 %v58
    %114 = vmatpush1.msra.mxu0 %v57
    %115 = vmatprep.subr.mxu0 %v61
    %116 = vmatpush1.msra.mxu0 %v60
    %117 = vmatprep.subr.mxu0 %v64
    %118 = vmatpush1.msra.mxu0 %v63
    %119 = vmatprep.subr.mxu0 %v67
    %120 = vmatpush1.msra.mxu0 %v66
    %121 = vmatprep.subr.mxu0 %v70
    %122 = vmatpush1.msra.mxu0 %v69
    %123 = vmatprep.subr.mxu0 %v73
    %124 = vmatpush1.msra.mxu0 %v72
    %125 = vmatprep.subr.mxu0 %v76
    %126 = vmatpush1.msra.mxu0 %v75
    %127 = vmatprep.subr.mxu0 %v79
    %128 = vmatpush1.msra.mxu0 %v78
    %129 = vmatprep.subr.mxu0 %v82
    %130 = vmatpush1.msra.mxu0 %v81
    %131 = vmatprep.subr.mxu0 %v85
    %132 = vmatpush1.msra.mxu0 %v84
    %133 = vmatprep.subr.mxu0 %v88
    %134 = vmatpush1.msra.mxu0 %v87
    %135 = vmatprep.subr.mxu0 %v91
    %136 = vmatpush1.msra.mxu0 %v90
    %137 = vmatprep.subr.mxu0 %v94
    %138 = vmatpush1.msra.mxu0 %v93
    %139 = vmatprep.subr.mxu0 0.0
    %140 = vmatpush1.msra.mxu0 0.0
    %141 = vmatprep.subr.mxu0 0.0
    %142 = vmatpush1.msra.mxu0 0.0
    %143 = vmatprep.subr.mxu0 0.0
    %144 = vmatpush1.msra.mxu0 0.0
    %145 = vmatprep.subr.mxu0 0.0
    %146 = vmatpush1.msra.mxu0 0.0
    %147 = vmatprep.subr.mxu0 0.0
    %148 = vmatpush1.msra.mxu0 0.0
    %149 = vmatprep.subr.mxu0 0.0
    %150 = vmatpush1.msra.mxu0 0.0
    %151 = vmatprep.subr.mxu0 0.0
    %152 = vmatpush1.msra.mxu0 0.0
    %153 = vmatprep.subr.mxu0 0.0
    %154 = vmatpush1.msra.mxu0 0.0
    %155 = vmatprep.subr.mxu0 0.0
    %156 = vmatpush1.msra.mxu0 0.0
    %157 = vmatprep.subr.mxu0 0.0
    %158 = vmatpush1.msra.mxu0 0.0
    %159 = vmatprep.subr.mxu0 0.0
    %160 = vmatpush1.msra.mxu0 0.0
    %161 = vmatprep.subr.mxu0 0.0
    %162 = vmatpush1.msra.mxu0 0.0
    %163 = vmatprep.subr.mxu0 0.0
    %164 = vmatpush1.msra.mxu0 0.0
    %165 = vmatprep.subr.mxu0 0.0
    %166 = vmatpush1.msra.mxu0 0.0
    %167 = vmatprep.subr.mxu0 0.0
    %168 = vmatpush1.msra.mxu0 0.0
    %169 = vmatprep.subr.mxu0 0.0
    %170 = vmatpush1.msra.mxu0 0.0
    %171 = vmatprep.mubr.f32.mxu0 0.0
    %172 = vmatmul.mubr.f32.gmra.mrb[0].mxu0 %v103
    %v173 = vpop.f32.mrb[0].mxu0
    %v174 = vadd.f32 0.0, %v173
    %v175 = vpop.f32.mrb[0].mxu0
    %v176 = vadd.f32 0.0, %v175
    %177 = vdwg.mxu0
    %178 = vmatprep.subr.mxu0 0.0
    %179 = vmatpush1.msra.mxu0 %v50
    %180 = vmatprep.subr.mxu0 0.0
    %181 = vmatpush1.msra.mxu0 %v53
    %182 = vmatprep.subr.mxu0 0.0
    %183 = vmatpush1.msra.mxu0 %v56
    %184 = vmatprep.subr.mxu0 0.0
    %185 = vmatpush1.msra.mxu0 %v59
    %186 = vmatprep.subr.mxu0 0.0
    %187 = vmatpush1.msra.mxu0 %v62
    %188 = vmatprep.subr.mxu0 0.0
    %189 = vmatpush1.msra.mxu0 %v65
    %190 = vmatprep.subr.mxu0 0.0
    %191 = vmatpush1.msra.mxu0 %v68
    %192 = vmatprep.subr.mxu0 0.0
    %193 = vmatpush1.msra.mxu0 %v71
    %194 = vmatprep.subr.mxu0 0.0
    %195 = vmatpush1.msra.mxu0 %v74
    %196 = vmatprep.subr.mxu0 0.0
    %197 = vmatpush1.msra.mxu0 %v77
    %198 = vmatprep.subr.mxu0 0.0
    %199 = vmatpush1.msra.mxu0 %v80
    %200 = vmatprep.subr.mxu0 0.0
    %201 = vmatpush1.msra.mxu0 %v83
    %202 = vmatprep.subr.mxu0 0.0
    %203 = vmatpush1.msra.mxu0 %v86
    %204 = vmatprep.subr.mxu0 0.0
    %205 = vmatpush1.msra.mxu0 %v89
    %206 = vmatprep.subr.mxu0 0.0
    %207 = vmatpush1.msra.mxu0 %v92
    %208 = vmatprep.subr.mxu0 0.0
    %209 = vmatpush1.msra.mxu0 %v95
    %210 = vmatprep.subr.mxu0 0.0
    %211 = vmatpush1.msra.mxu0 0.0
    %212 = vmatprep.subr.mxu0 0.0
    %213 = vmatpush1.msra.mxu0 0.0
    %214 = vmatprep.subr.mxu0 0.0
    %215 = vmatpush1.msra.mxu0 0.0
    %216 = vmatprep.subr.mxu0 0.0
    %217 = vmatpush1.msra.mxu0 0.0
    %218 = vmatprep.subr.mxu0 0.0
    %219 = vmatpush1.msra.mxu0 0.0
    %220 = vmatprep.subr.mxu0 0.0
    %221 = vmatpush1.msra.mxu0 0.0
    %222 = vmatprep.subr.mxu0 0.0
    %223 = vmatpush1.msra.mxu0 0.0
    %224 = vmatprep.subr.mxu0 0.0
    %225 = vmatpush1.msra.mxu0 0.0
    %226 = vmatprep.subr.mxu0 0.0
    %227 = vmatpush1.msra.mxu0 0.0
    %228 = vmatprep.subr.mxu0 0.0
    %229 = vmatpush1.msra.mxu0 0.0
    %230 = vmatprep.subr.mxu0 0.0
    %231 = vmatpush1.msra.mxu0 0.0
    %232 = vmatprep.subr.mxu0 0.0
    %233 = vmatpush1.msra.mxu0 0.0
    %234 = vmatprep.subr.mxu0 0.0
    %235 = vmatpush1.msra.mxu0 0.0
    %236 = vmatprep.subr.mxu0 0.0
    %237 = vmatpush1.msra.mxu0 0.0
    %238 = vmatprep.subr.mxu0 0.0
    %239 = vmatpush1.msra.mxu0 0.0
    %240 = vmatprep.subr.mxu0 0.0
    %241 = vmatpush1.msra.mxu0 0.0
    %242 = vmatprep.mubr.f32.mxu0 0.0
    %243 = vmatmul.mubr.f32.gmra.mrb[0].mxu0 %v103
    %v244 = vpop.f32.mrb[0].mxu0
    %v245 = vadd.f32 0.0, %v244
    %v246 = vpop.f32.mrb[0].mxu0
    %247 = vdwg.mxu0
    %v248 = vadd.f32 %v104, %v174
    %v249 = vadd.f32 %v105, %v176
    %v250 = vmul.f32 %v248, 0.5
    %v251 = vmul.f32 %v249, 0.5
    %v252 = vtanh.pop %v250
    %v253 = vtanh.pop %v251
    %v254 = vmul.f32 %v252, 0.5
    %v255 = vmul.f32 %v253, 0.5
    %v256 = vadd.f32 %v254, 0.5
    %v257 = vadd.f32 %v255, 0.5
    %v258 = vadd.f32 %v245, %v101
    %v259 = vmul.f32 %v256, %v258
    %v260 = vadd.f32 %v106, %v259
    %v261 = vtanh.pop %v260
    %v262 = vsub.f32 %v103, %v261
    %v263 = vmul.f32 %v257, %v262
    %v264 = vadd.f32 %v261, %v263
    %265 = vst [vmem:[#allocation8] sm:$0xff] %v264
    %s266 = scalar_lea.vmem [#allocation3], 24
    %v267 = vld [vmem:[%s266] sm:$0xff]
    %v268 = vld [vmem:[%s266 + $0x8] sm:$0xff]
    %v269 = vld [vmem:[%s266 + $0x10] sm:$0xff]
    %270 = vmatprep.subr.mxu0 %v49
    %271 = vmatpush1.msra.mxu0 %v48
    %272 = vmatprep.subr.mxu0 %v52
    %273 = vmatpush1.msra.mxu0 %v51
    %274 = vmatprep.subr.mxu0 %v55
    %275 = vmatpush1.msra.mxu0 %v54
    %276 = vmatprep.subr.mxu0 %v58
    %277 = vmatpush1.msra.mxu0 %v57
    %278 = vmatprep.subr.mxu0 %v61
    %279 = vmatpush1.msra.mxu0 %v60
    %280 = vmatprep.subr.mxu0 %v64
    %281 = vmatpush1.msra.mxu0 %v63
    %282 = vmatprep.subr.mxu0 %v67
    %283 = vmatpush1.msra.mxu0 %v66
    %284 = vmatprep.subr.mxu0 %v70
    %285 = vmatpush1.msra.mxu0 %v69
    %286 = vmatprep.subr.mxu0 %v73
    %287 = vmatpush1.msra.mxu0 %v72
    %288 = vmatprep.subr.mxu0 %v76
    %289 = vmatpush1.msra.mxu0 %v75
    %290 = vmatprep.subr.mxu0 %v79
    %291 = vmatpush1.msra.mxu0 %v78
    %292 = vmatprep.subr.mxu0 %v82
    %293 = vmatpush1.msra.mxu0 %v81
    %294 = vmatprep.subr.mxu0 %v85
    %295 = vmatpush1.msra.mxu0 %v84
    %296 = vmatprep.subr.mxu0 %v88
    %297 = vmatpush1.msra.mxu0 %v87
    %298 = vmatprep.subr.mxu0 %v91
    %299 = vmatpush1.msra.mxu0 %v90
    %300 = vmatprep.subr.mxu0 %v94
    %301 = vmatpush1.msra.mxu0 %v93
    %302 = vmatprep.subr.mxu0 0.0
    %303 = vmatpush1.msra.mxu0 0.0
    %304 = vmatprep.subr.mxu0 0.0
    %305 = vmatpush1.msra.mxu0 0.0
    %306 = vmatprep.subr.mxu0 0.0
    %307 = vmatpush1.msra.mxu0 0.0
    %308 = vmatprep.subr.mxu0 0.0
    %309 = vmatpush1.msra.mxu0 0.0
    %310 = vmatprep.subr.mxu0 0.0
    %311 = vmatpush1.msra.mxu0 0.0
    %312 = vmatprep.subr.mxu0 0.0
    %313 = vmatpush1.msra.mxu0 0.0
    %314 = vmatprep.subr.mxu0 0.0
    %315 = vmatpush1.msra.mxu0 0.0
    %316 = vmatprep.subr.mxu0 0.0
    %317 = vmatpush1.msra.mxu0 0.0
    %318 = vmatprep.subr.mxu0 0.0
    %319 = vmatpush1.msra.mxu0 0.0
    %320 = vmatprep.subr.mxu0 0.0
    %321 = vmatpush1.msra.mxu0 0.0
    %322 = vmatprep.subr.mxu0 0.0
    %323 = vmatpush1.msra.mxu0 0.0
    %324 = vmatprep.subr.mxu0 0.0
    %325 = vmatpush1.msra.mxu0 0.0
    %326 = vmatprep.subr.mxu0 0.0
    %327 = vmatpush1.msra.mxu0 0.0
    %328 = vmatprep.subr.mxu0 0.0
    %329 = vmatpush1.msra.mxu0 0.0
    %330 = vmatprep.subr.mxu0 0.0
    %331 = vmatpush1.msra.mxu0 0.0
    %332 = vmatprep.subr.mxu0 0.0
    %333 = vmatpush1.msra.mxu0 0.0
    %334 = vmatprep.mubr.f32.mxu0 0.0
    %335 = vmatmul.mubr.f32.gmra.mrb[0].mxu0 %v264
    %v336 = vpop.f32.mrb[0].mxu0
    %v337 = vadd.f32 0.0, %v336
    %v338 = vpop.f32.mrb[0].mxu0
    %v339 = vadd.f32 0.0, %v338
    %340 = vdwg.mxu0
    %341 = vmatprep.subr.mxu0 0.0
    %342 = vmatpush1.msra.mxu0 %v50
    %343 = vmatprep.subr.mxu0 0.0
    %344 = vmatpush1.msra.mxu0 %v53
    %345 = vmatprep.subr.mxu0 0.0
    %346 = vmatpush1.msra.mxu0 %v56
    %347 = vmatprep.subr.mxu0 0.0
    %348 = vmatpush1.msra.mxu0 %v59
    %349 = vmatprep.subr.mxu0 0.0
    %350 = vmatpush1.msra.mxu0 %v62
    %351 = vmatprep.subr.mxu0 0.0
    %352 = vmatpush1.msra.mxu0 %v65
    %353 = vmatprep.subr.mxu0 0.0
    %354 = vmatpush1.msra.mxu0 %v68
    %355 = vmatprep.subr.mxu0 0.0
    %356 = vmatpush1.msra.mxu0 %v71
    %357 = vmatprep.subr.mxu0 0.0
    %358 = vmatpush1.msra.mxu0 %v74
    %359 = vmatprep.subr.mxu0 0.0
    %360 = vmatpush1.msra.mxu0 %v77
    %361 = vmatprep.subr.mxu0 0.0
    %362 = vmatpush1.msra.mxu0 %v80
    %363 = vmatprep.subr.mxu0 0.0
    %364 = vmatpush1.msra.mxu0 %v83
    %365 = vmatprep.subr.mxu0 0.0
    %366 = vmatpush1.msra.mxu0 %v86
    %367 = vmatprep.subr.mxu0 0.0
    %368 = vmatpush1.msra.mxu0 %v89
    %369 = vmatprep.subr.mxu0 0.0
    %370 = vmatpush1.msra.mxu0 %v92
    %371 = vmatprep.subr.mxu0 0.0
    %372 = vmatpush1.msra.mxu0 %v95
    %373 = vmatprep.subr.mxu0 0.0
    %374 = vmatpush1.msra.mxu0 0.0
    %375 = vmatprep.subr.mxu0 0.0
    %376 = vmatpush1.msra.mxu0 0.0
    %377 = vmatprep.subr.mxu0 0.0
    %378 = vmatpush1.msra.mxu0 0.0
    %379 = vmatprep.subr.mxu0 0.0
    %380 = vmatpush1.msra.mxu0 0.0
    %381 = vmatprep.subr.mxu0 0.0
    %382 = vmatpush1.msra.mxu0 0.0
    %383 = vmatprep.subr.mxu0 0.0
    %384 = vmatpush1.msra.mxu0 0.0
    %385 = vmatprep.subr.mxu0 0.0
    %386 = vmatpush1.msra.mxu0 0.0
    %387 = vmatprep.subr.mxu0 0.0
    %388 = vmatpush1.msra.mxu0 0.0
    %389 = vmatprep.subr.mxu0 0.0
    %390 = vmatpush1.msra.mxu0 0.0
    %391 = vmatprep.subr.mxu0 0.0
    %392 = vmatpush1.msra.mxu0 0.0
    %393 = vmatprep.subr.mxu0 0.0
    %394 = vmatpush1.msra.mxu0 0.0
    %395 = vmatprep.subr.mxu0 0.0
    %396 = vmatpush1.msra.mxu0 0.0
    %397 = vmatprep.subr.mxu0 0.0
    %398 = vmatpush1.msra.mxu0 0.0
    %399 = vmatprep.subr.mxu0 0.0
    %400 = vmatpush1.msra.mxu0 0.0
    %401 = vmatprep.subr.mxu0 0.0
    %402 = vmatpush1.msra.mxu0 0.0
    %403 = vmatprep.subr.mxu0 0.0
    %404 = vmatpush1.msra.mxu0 0.0
    %405 = vmatprep.mubr.f32.mxu0 0.0
    %406 = vmatmul.mubr.f32.gmra.mrb[0].mxu0 %v264
    %v407 = vpop.f32.mrb[0].mxu0
    %v408 = vadd.f32 0.0, %v407
    %v409 = vpop.f32.mrb[0].mxu0
    %410 = vdwg.mxu0
    %v411 = vadd.f32 %v267, %v337
    %v412 = vadd.f32 %v268, %v339
    %v413 = vmul.f32 %v411, 0.5
    %v414 = vmul.f32 %v412, 0.5
    %v415 = vtanh.pop %v413
    %v416 = vtanh.pop %v414
    %v417 = vmul.f32 %v415, 0.5
    %v418 = vmul.f32 %v416, 0.5
    %v419 = vadd.f32 %v417, 0.5
    %v420 = vadd.f32 %v418, 0.5
    %v421 = vadd.f32 %v408, %v101
    %v422 = vmul.f32 %v419, %v421
    %v423 = vadd.f32 %v269, %v422
    %v424 = vtanh.pop %v423
    %v425 = vsub.f32 %v264, %v424
    %v426 = vmul.f32 %v420, %v425
    %v427 = vadd.f32 %v424, %v426
    %s428 = scalar_lea.vmem [#allocation8], 8
    %429 = vst [vmem:[%s428] sm:$0xff] %v427
    %s430 = scalar_lea.vmem [#allocation3], 48
    %v431 = vld [vmem:[%s430] sm:$0xff]
    %v432 = vld [vmem:[%s430 + $0x8] sm:$0xff]
    %v433 = vld [vmem:[%s430 + $0x10] sm:$0xff]
    %434 = vmatprep.subr.mxu0 %v49
    %435 = vmatpush1.msra.mxu0 %v48
    %436 = vmatprep.subr.mxu0 %v52
    %437 = vmatpush1.msra.mxu0 %v51
    %438 = vmatprep.subr.mxu0 %v55
    %439 = vmatpush1.msra.mxu0 %v54
    %440 = vmatprep.subr.mxu0 %v58
    %441 = vmatpush1.msra.mxu0 %v57
    %442 = vmatprep.subr.mxu0 %v61
    %443 = vmatpush1.msra.mxu0 %v60
    %444 = vmatprep.subr.mxu0 %v64
    %445 = vmatpush1.msra.mxu0 %v63
    %446 = vmatprep.subr.mxu0 %v67
    %447 = vmatpush1.msra.mxu0 %v66
    %448 = vmatprep.subr.mxu0 %v70
    %449 = vmatpush1.msra.mxu0 %v69
    %450 = vmatprep.subr.mxu0 %v73
    %451 = vmatpush1.msra.mxu0 %v72
    %452 = vmatprep.subr.mxu0 %v76
    %453 = vmatpush1.msra.mxu0 %v75
    %454 = vmatprep.subr.mxu0 %v79
    %455 = vmatpush1.msra.mxu0 %v78
    %456 = vmatprep.subr.mxu0 %v82
    %457 = vmatpush1.msra.mxu0 %v81
    %458 = vmatprep.subr.mxu0 %v85
    %459 = vmatpush1.msra.mxu0 %v84
    %460 = vmatprep.subr.mxu0 %v88
    %461 = vmatpush1.msra.mxu0 %v87
    %462 = vmatprep.subr.mxu0 %v91
    %463 = vmatpush1.msra.mxu0 %v90
    %464 = vmatprep.subr.mxu0 %v94
    %465 = vmatpush1.msra.mxu0 %v93
    %466 = vmatprep.subr.mxu0 0.0
    %467 = vmatpush1.msra.mxu0 0.0
    %468 = vmatprep.subr.mxu0 0.0
    %469 = vmatpush1.msra.mxu0 0.0
    %470 = vmatprep.subr.mxu0 0.0
    %471 = vmatpush1.msra.mxu0 0.0
    %472 = vmatprep.subr.mxu0 0.0
    %473 = vmatpush1.msra.mxu0 0.0
    %474 = vmatprep.subr.mxu0 0.0
    %475 = vmatpush1.msra.mxu0 0.0
    %476 = vmatprep.subr.mxu0 0.0
    %477 = vmatpush1.msra.mxu0 0.0
    %478 = vmatprep.subr.mxu0 0.0
    %479 = vmatpush1.msra.mxu0 0.0
    %480 = vmatprep.subr.mxu0 0.0
    %481 = vmatpush1.msra.mxu0 0.0
    %482 = vmatprep.subr.mxu0 0.0
    %483 = vmatpush1.msra.mxu0 0.0
    %484 = vmatprep.subr.mxu0 0.0
    %485 = vmatpush1.msra.mxu0 0.0
    %486 = vmatprep.subr.mxu0 0.0
    %487 = vmatpush1.msra.mxu0 0.0
    %488 = vmatprep.subr.mxu0 0.0
    %489 = vmatpush1.msra.mxu0 0.0
    %490 = vmatprep.subr.mxu0 0.0
    %491 = vmatpush1.msra.mxu0 0.0
    %492 = vmatprep.subr.mxu0 0.0
    %493 = vmatpush1.msra.mxu0 0.0
    %494 = vmatprep.subr.mxu0 0.0
    %495 = vmatpush1.msra.mxu0 0.0
    %496 = vmatprep.subr.mxu0 0.0
    %497 = vmatpush1.msra.mxu0 0.0
    %498 = vmatprep.mubr.f32.mxu0 0.0
    %499 = vmatmul.mubr.f32.gmra.mrb[0].mxu0 %v427
    %v500 = vpop.f32.mrb[0].mxu0
    %v501 = vadd.f32 0.0, %v500
    %v502 = vpop.f32.mrb[0].mxu0
    %v503 = vadd.f32 0.0, %v502
    %504 = vdwg.mxu0
    %505 = vmatprep.subr.mxu0 0.0
    %506 = vmatpush1.msra.mxu0 %v50
    %507 = vmatprep.subr.mxu0 0.0
    %508 = vmatpush1.msra.mxu0 %v53
    %509 = vmatprep.subr.mxu0 0.0
    %510 = vmatpush1.msra.mxu0 %v56
    %511 = vmatprep.subr.mxu0 0.0
    %512 = vmatpush1.msra.mxu0 %v59
    %513 = vmatprep.subr.mxu0 0.0
    %514 = vmatpush1.msra.mxu0 %v62
    %515 = vmatprep.subr.mxu0 0.0
    %516 = vmatpush1.msra.mxu0 %v65
    %517 = vmatprep.subr.mxu0 0.0
    %518 = vmatpush1.msra.mxu0 %v68
    %519 = vmatprep.subr.mxu0 0.0
    %520 = vmatpush1.msra.mxu0 %v71
    %521 = vmatprep.subr.mxu0 0.0
    %522 = vmatpush1.msra.mxu0 %v74
    %523 = vmatprep.subr.mxu0 0.0
    %524 = vmatpush1.msra.mxu0 %v77
    %525 = vmatprep.subr.mxu0 0.0
    %526 = vmatpush1.msra.mxu0 %v80
    %527 = vmatprep.subr.mxu0 0.0
    %528 = vmatpush1.msra.mxu0 %v83
    %529 = vmatprep.subr.mxu0 0.0
    %530 = vmatpush1.msra.mxu0 %v86
    %531 = vmatprep.subr.mxu0 0.0
    %532 = vmatpush1.msra.mxu0 %v89
    %533 = vmatprep.subr.mxu0 0.0
    %534 = vmatpush1.msra.mxu0 %v92
    %535 = vmatprep.subr.mxu0 0.0
    %536 = vmatpush1.msra.mxu0 %v95
    %537 = vmatprep.subr.mxu0 0.0
    %538 = vmatpush1.msra.mxu0 0.0
    %539 = vmatprep.subr.mxu0 0.0
    %540 = vmatpush1.msra.mxu0 0.0
    %541 = vmatprep.subr.mxu0 0.0
    %542 = vmatpush1.msra.mxu0 0.0
    %543 = vmatprep.subr.mxu0 0.0
    %544 = vmatpush1.msra.mxu0 0.0
    %545 = vmatprep.subr.mxu0 0.0
    %546 = vmatpush1.msra.mxu0 0.0
    %547 = vmatprep.subr.mxu0 0.0
    %548 = vmatpush1.msra.mxu0 0.0
    %549 = vmatprep.subr.mxu0 0.0
    %550 = vmatpush1.msra.mxu0 0.0
    %551 = vmatprep.subr.mxu0 0.0
    %552 = vmatpush1.msra.mxu0 0.0
    %553 = vmatprep.subr.mxu0 0.0
    %554 = vmatpush1.msra.mxu0 0.0
    %555 = vmatprep.subr.mxu0 0.0
    %556 = vmatpush1.msra.mxu0 0.0
    %557 = vmatprep.subr.mxu0 0.0
    %558 = vmatpush1.msra.mxu0 0.0
    %559 = vmatprep.subr.mxu0 0.0
    %560 = vmatpush1.msra.mxu0 0.0
    %561 = vmatprep.subr.mxu0 0.0
    %562 = vmatpush1.msra.mxu0 0.0
    %563 = vmatprep.subr.mxu0 0.0
    %564 = vmatpush1.msra.mxu0 0.0
    %565 = vmatprep.subr.mxu0 0.0
    %566 = vmatpush1.msra.mxu0 0.0
    %567 = vmatprep.subr.mxu0 0.0
    %568 = vmatpush1.msra.mxu0 0.0
    %569 = vmatprep.mubr.f32.mxu0 0.0
    %570 = vmatmul.mubr.f32.gmra.mrb[0].mxu0 %v427
    %v571 = vpop.f32.mrb[0].mxu0
    %v572 = vadd.f32 0.0, %v571
    %v573 = vpop.f32.mrb[0].mxu0
    %574 = vdwg.mxu0
    %v575 = vadd.f32 %v431, %v501
    %v576 = vadd.f32 %v432, %v503
    %v577 = vmul.f32 %v575, 0.5
    %v578 = vmul.f32 %v576, 0.5
    %v579 = vtanh.pop %v577
    %v580 = vtanh.pop %v578
    %v581 = vmul.f32 %v579, 0.5
    %v582 = vmul.f32 %v580, 0.5
    %v583 = vadd.f32 %v581, 0.5
    %v584 = vadd.f32 %v582, 0.5
    %v585 = vadd.f32 %v572, %v101
    %v586 = vmul.f32 %v583, %v585
    %v587 = vadd.f32 %v433, %v586
    %v588 = vtanh.pop %v587
    %v589 = vsub.f32 %v427, %v588
    %v590 = vmul.f32 %v584, %v589
    %v591 = vadd.f32 %v588, %v590
    %s592 = scalar_lea.vmem [#allocation8], 16
    %593 = vst [vmem:[%s592] sm:$0xff] %v591
    %s594 = scalar_lea.vmem [#allocation3], 72
    %v595 = vld [vmem:[%s594] sm:$0xff]
    %v596 = vld [vmem:[%s594 + $0x8] sm:$0xff]
    %v597 = vld [vmem:[%s594 + $0x10] sm:$0xff]
    %598 = vmatprep.subr.mxu0 %v49
    %599 = vmatpush1.msra.mxu0 %v48
    %600 = vmatprep.subr.mxu0 %v52
    %601 = vmatpush1.msra.mxu0 %v51
    %602 = vmatprep.subr.mxu0 %v55
    %603 = vmatpush1.msra.mxu0 %v54
    %604 = vmatprep.subr.mxu0 %v58
    %605 = vmatpush1.msra.mxu0 %v57
    %606 = vmatprep.subr.mxu0 %v61
    %607 = vmatpush1.msra.mxu0 %v60
    %608 = vmatprep.subr.mxu0 %v64
    %609 = vmatpush1.msra.mxu0 %v63
    %610 = vmatprep.subr.mxu0 %v67
    %611 = vmatpush1.msra.mxu0 %v66
    %612 = vmatprep.subr.mxu0 %v70
    %613 = vmatpush1.msra.mxu0 %v69
    %614 = vmatprep.subr.mxu0 %v73
    %615 = vmatpush1.msra.mxu0 %v72
    %616 = vmatprep.subr.mxu0 %v76
    %617 = vmatpush1.msra.mxu0 %v75
    %618 = vmatprep.subr.mxu0 %v79
    %619 = vmatpush1.msra.mxu0 %v78
    %620 = vmatprep.subr.mxu0 %v82
    %621 = vmatpush1.msra.mxu0 %v81
    %622 = vmatprep.subr.mxu0 %v85
    %623 = vmatpush1.msra.mxu0 %v84
    %624 = vmatprep.subr.mxu0 %v88
    %625 = vmatpush1.msra.mxu0 %v87
    %626 = vmatprep.subr.mxu0 %v91
    %627 = vmatpush1.msra.mxu0 %v90
    %628 = vmatprep.subr.mxu0 %v94
    %629 = vmatpush1.msra.mxu0 %v93
    %630 = vmatprep.subr.mxu0 0.0
    %631 = vmatpush1.msra.mxu0 0.0
    %632 = vmatprep.subr.mxu0 0.0
    %633 = vmatpush1.msra.mxu0 0.0
    %634 = vmatprep.subr.mxu0 0.0
    %635 = vmatpush1.msra.mxu0 0.0
    %636 = vmatprep.subr.mxu0 0.0
    %637 = vmatpush1.msra.mxu0 0.0
    %638 = vmatprep.subr.mxu0 0.0
    %639 = vmatpush1.msra.mxu0 0.0
    %640 = vmatprep.subr.mxu0 0.0
    %641 = vmatpush1.msra.mxu0 0.0
    %642 = vmatprep.subr.mxu0 0.0
    %643 = vmatpush1.msra.mxu0 0.0
    %644 = vmatprep.subr.mxu0 0.0
    %645 = vmatpush1.msra.mxu0 0.0
    %646 = vmatprep.subr.mxu0 0.0
    %647 = vmatpush1.msra.mxu0 0.0
    %648 = vmatprep.subr.mxu0 0.0
    %649 = vmatpush1.msra.mxu0 0.0
    %650 = vmatprep.subr.mxu0 0.0
    %651 = vmatpush1.msra.mxu0 0.0
    %652 = vmatprep.subr.mxu0 0.0
    %653 = vmatpush1.msra.mxu0 0.0
    %654 = vmatprep.subr.mxu0 0.0
    %655 = vmatpush1.msra.mxu0 0.0
    %656 = vmatprep.subr.mxu0 0.0
    %657 = vmatpush1.msra.mxu0 0.0
    %658 = vmatprep.subr.mxu0 0.0
    %659 = vmatpush1.msra.mxu0 0.0
    %660 = vmatprep.subr.mxu0 0.0
    %661 = vmatpush1.msra.mxu0 0.0
    %662 = vmatprep.mubr.f32.mxu0 0.0
    %663 = vmatmul.mubr.f32.gmra.mrb[0].mxu0 %v591
    %v664 = vpop.f32.mrb[0].mxu0
    %v665 = vadd.f32 0.0, %v664
    %v666 = vpop.f32.mrb[0].mxu0
    %v667 = vadd.f32 0.0, %v666
    %668 = vdwg.mxu0
    %669 = vmatprep.subr.mxu0 0.0
    %670 = vmatpush1.msra.mxu0 %v50
    %671 = vmatprep.subr.mxu0 0.0
    %672 = vmatpush1.msra.mxu0 %v53
    %673 = vmatprep.subr.mxu0 0.0
    %674 = vmatpush1.msra.mxu0 %v56
    %675 = vmatprep.subr.mxu0 0.0
    %676 = vmatpush1.msra.mxu0 %v59
    %677 = vmatprep.subr.mxu0 0.0
    %678 = vmatpush1.msra.mxu0 %v62
    %679 = vmatprep.subr.mxu0 0.0
    %680 = vmatpush1.msra.mxu0 %v65
    %681 = vmatprep.subr.mxu0 0.0
    %682 = vmatpush1.msra.mxu0 %v68
    %683 = vmatprep.subr.mxu0 0.0
    %684 = vmatpush1.msra.mxu0 %v71
    %685 = vmatprep.subr.mxu0 0.0
    %686 = vmatpush1.msra.mxu0 %v74
    %687 = vmatprep.subr.mxu0 0.0
    %688 = vmatpush1.msra.mxu0 %v77
    %689 = vmatprep.subr.mxu0 0.0
    %690 = vmatpush1.msra.mxu0 %v80
    %691 = vmatprep.subr.mxu0 0.0
    %692 = vmatpush1.msra.mxu0 %v83
    %693 = vmatprep.subr.mxu0 0.0
    %694 = vmatpush1.msra.mxu0 %v86
    %695 = vmatprep.subr.mxu0 0.0
    %696 = vmatpush1.msra.mxu0 %v89
    %697 = vmatprep.subr.mxu0 0.0
    %698 = vmatpush1.msra.mxu0 %v92
    %699 = vmatprep.subr.mxu0 0.0
    %700 = vmatpush1.msra.mxu0 %v95
    %701 = vmatprep.subr.mxu0 0.0
    %702 = vmatpush1.msra.mxu0 0.0
    %703 = vmatprep.subr.mxu0 0.0
    %704 = vmatpush1.msra.mxu0 0.0
    %705 = vmatprep.subr.mxu0 0.0
    %706 = vmatpush1.msra.mxu0 0.0
    %707 = vmatprep.subr.mxu0 0.0
    %708 = vmatpush1.msra.mxu0 0.0
    %709 = vmatprep.subr.mxu0 0.0
    %710 = vmatpush1.msra.mxu0 0.0
    %711 = vmatprep.subr.mxu0 0.0
    %712 = vmatpush1.msra.mxu0 0.0
    %713 = vmatprep.subr.mxu0 0.0
    %714 = vmatpush1.msra.mxu0 0.0
    %715 = vmatprep.subr.mxu0 0.0
    %716 = vmatpush1.msra.mxu0 0.0
    %717 = vmatprep.subr.mxu0 0.0
    %718 = vmatpush1.msra.mxu0 0.0
    %719 = vmatprep.subr.mxu0 0.0
    %720 = vmatpush1.msra.mxu0 0.0
    %721 = vmatprep.subr.mxu0 0.0
    %722 = vmatpush1.msra.mxu0 0.0
    %723 = vmatprep.subr.mxu0 0.0
    %724 = vmatpush1.msra.mxu0 0.0
    %725 = vmatprep.subr.mxu0 0.0
    %726 = vmatpush1.msra.mxu0 0.0
    %727 = vmatprep.subr.mxu0 0.0
    %728 = vmatpush1.msra.mxu0 0.0
    %729 = vmatprep.subr.mxu0 0.0
    %730 = vmatpush1.msra.mxu0 0.0
    %731 = vmatprep.subr.mxu0 0.0
    %732 = vmatpush1.msra.mxu0 0.0
    %733 = vmatprep.mubr.f32.mxu0 0.0
    %734 = vmatmul.mubr.f32.gmra.mrb[0].mxu0 %v591
    %v735 = vpop.f32.mrb[0].mxu0
    %v736 = vadd.f32 0.0, %v735
    %v737 = vpop.f32.mrb[0].mxu0
    %738 = vdwg.mxu0
    %v739 = vadd.f32 %v595, %v665
    %v740 = vadd.f32 %v596, %v667
    %v741 = vmul.f32 %v739, 0.5
    %v742 = vmul.f32 %v740, 0.5
    %v743 = vtanh.pop %v741
    %v744 = vtanh.pop %v742
    %v745 = vmul.f32 %v743, 0.5
    %v746 = vmul.f32 %v744, 0.5
    %v747 = vadd.f32 %v745, 0.5
    %v748 = vadd.f32 %v746, 0.5
    %v749 = vadd.f32 %v736, %v101
    %v750 = vmul.f32 %v747, %v749
    %v751 = vadd.f32 %v597, %v750
    %v752 = vtanh.pop %v751
    %v753 = vsub.f32 %v591, %v752
    %v754 = vmul.f32 %v748, %v753
    %v755 = vadd.f32 %v752, %v754
    %s756 = scalar_lea.vmem [#allocation8], 24
    %757 = vst [vmem:[%s756] sm:$0xff] %v755
    %s758 = scalar_lea.vmem [#allocation3], 96
    %v759 = vld [vmem:[%s758] sm:$0xff]
    %v760 = vld [vmem:[%s758 + $0x8] sm:$0xff]
    %v761 = vld [vmem:[%s758 + $0x10] sm:$0xff]
    %762 = vmatprep.subr.mxu0 %v49
    %763 = vmatpush1.msra.mxu0 %v48
    %764 = vmatprep.subr.mxu0 %v52
    %765 = vmatpush1.msra.mxu0 %v51
    %766 = vmatprep.subr.mxu0 %v55
    %767 = vmatpush1.msra.mxu0 %v54
    %768 = vmatprep.subr.mxu0 %v58
    %769 = vmatpush1.msra.mxu0 %v57
    %770 = vmatprep.subr.mxu0 %v61
    %771 = vmatpush1.msra.mxu0 %v60
    %772 = vmatprep.subr.mxu0 %v64
    %773 = vmatpush1.msra.mxu0 %v63
    %774 = vmatprep.subr.mxu0 %v67
    %775 = vmatpush1.msra.mxu0 %v66
    %776 = vmatprep.subr.mxu0 %v70
    %777 = vmatpush1.msra.mxu0 %v69
    %778 = vmatprep.subr.mxu0 %v73
    %779 = vmatpush1.msra.mxu0 %v72
    %780 = vmatprep.subr.mxu0 %v76
    %781 = vmatpush1.msra.mxu0 %v75
    %782 = vmatprep.subr.mxu0 %v79
    %783 = vmatpush1.msra.mxu0 %v78
    %784 = vmatprep.subr.mxu0 %v82
    %785 = vmatpush1.msra.mxu0 %v81
    %786 = vmatprep.subr.mxu0 %v85
    %787 = vmatpush1.msra.mxu0 %v84
    %788 = vmatprep.subr.mxu0 %v88
    %789 = vmatpush1.msra.mxu0 %v87
    %790 = vmatprep.subr.mxu0 %v91
    %791 = vmatpush1.msra.mxu0 %v90
    %792 = vmatprep.subr.mxu0 %v94
    %793 = vmatpush1.msra.mxu0 %v93
    %794 = vmatprep.subr.mxu0 0.0
    %795 = vmatpush1.msra.mxu0 0.0
    %796 = vmatprep.subr.mxu0 0.0
    %797 = vmatpush1.msra.mxu0 0.0
    %798 = vmatprep.subr.mxu0 0.0
    %799 = vmatpush1.msra.mxu0 0.0
    %800 = vmatprep.subr.mxu0 0.0
    %801 = vmatpush1.msra.mxu0 0.0
    %802 = vmatprep.subr.mxu0 0.0
    %803 = vmatpush1.msra.mxu0 0.0
    %804 = vmatprep.subr.mxu0 0.0
    %805 = vmatpush1.msra.mxu0 0.0
    %806 = vmatprep.subr.mxu0 0.0
    %807 = vmatpush1.msra.mxu0 0.0
    %808 = vmatprep.subr.mxu0 0.0
    %809 = vmatpush1.msra.mxu0 0.0
    %810 = vmatprep.subr.mxu0 0.0
    %811 = vmatpush1.msra.mxu0 0.0
    %812 = vmatprep.subr.mxu0 0.0
    %813 = vmatpush1.msra.mxu0 0.0
    %814 = vmatprep.subr.mxu0 0.0
    %815 = vmatpush1.msra.mxu0 0.0
    %816 = vmatprep.subr.mxu0 0.0
    %817 = vmatpush1.msra.mxu0 0.0
    %818 = vmatprep.subr.mxu0 0.0
    %819 = vmatpush1.msra.mxu0 0.0
    %820 = vmatprep.subr.mxu0 0.0
    %821 = vmatpush1.msra.mxu0 0.0
    %822 = vmatprep.subr.mxu0 0.0
    %823 = vmatpush1.msra.mxu0 0.0
    %824 = vmatprep.subr.mxu0 0.0
    %825 = vmatpush1.msra.mxu0 0.0
    %826 = vmatprep.mubr.f32.mxu0 0.0
    %827 = vmatmul.mubr.f32.gmra.mrb[0].mxu0 %v755
    %v828 = vpop.f32.mrb[0].mxu0
    %v829 = vadd.f32 0.0, %v828
    %v830 = vpop.f32.mrb[0].mxu0
    %v831 = vadd.f32 0.0, %v830
    %832 = vdwg.mxu0
    %833 = vmatprep.subr.mxu0 0.0
    %834 = vmatpush1.msra.mxu0 %v50
    %835 = vmatprep.subr.mxu0 0.0
    %836 = vmatpush1.msra.mxu0 %v53
    %837 = vmatprep.subr.mxu0 0.0
    %838 = vmatpush1.msra.mxu0 %v56
    %839 = vmatprep.subr.mxu0 0.0
    %840 = vmatpush1.msra.mxu0 %v59
    %841 = vmatprep.subr.mxu0 0.0
    %842 = vmatpush1.msra.mxu0 %v62
    %843 = vmatprep.subr.mxu0 0.0
    %844 = vmatpush1.msra.mxu0 %v65
    %845 = vmatprep.subr.mxu0 0.0
    %846 = vmatpush1.msra.mxu0 %v68
    %847 = vmatprep.subr.mxu0 0.0
    %848 = vmatpush1.msra.mxu0 %v71
    %849 = vmatprep.subr.mxu0 0.0
    %850 = vmatpush1.msra.mxu0 %v74
    %851 = vmatprep.subr.mxu0 0.0
    %852 = vmatpush1.msra.mxu0 %v77
    %853 = vmatprep.subr.mxu0 0.0
    %854 = vmatpush1.msra.mxu0 %v80
    %855 = vmatprep.subr.mxu0 0.0
    %856 = vmatpush1.msra.mxu0 %v83
    %857 = vmatprep.subr.mxu0 0.0
    %858 = vmatpush1.msra.mxu0 %v86
    %859 = vmatprep.subr.mxu0 0.0
    %860 = vmatpush1.msra.mxu0 %v89
    %861 = vmatprep.subr.mxu0 0.0
    %862 = vmatpush1.msra.mxu0 %v92
    %863 = vmatprep.subr.mxu0 0.0
    %864 = vmatpush1.msra.mxu0 %v95
    %865 = vmatprep.subr.mxu0 0.0
    %866 = vmatpush1.msra.mxu0 0.0
    %867 = vmatprep.subr.mxu0 0.0
    %868 = vmatpush1.msra.mxu0 0.0
    %869 = vmatprep.subr.mxu0 0.0
    %870 = vmatpush1.msra.mxu0 0.0
    %871 = vmatprep.subr.mxu0 0.0
    %872 = vmatpush1.msra.mxu0 0.0
    %873 = vmatprep.subr.mxu0 0.0
    %874 = vmatpush1.msra.mxu0 0.0
    %875 = vmatprep.subr.mxu0 0.0
    %876 = vmatpush1.msra.mxu0 0.0
    %877 = vmatprep.subr.mxu0 0.0
    %878 = vmatpush1.msra.mxu0 0.0
    %879 = vmatprep.subr.mxu0 0.0
    %880 = vmatpush1.msra.mxu0 0.0
    %881 = vmatprep.subr.mxu0 0.0
    %882 = vmatpush1.msra.mxu0 0.0
    %883 = vmatprep.subr.mxu0 0.0
    %884 = vmatpush1.msra.mxu0 0.0
    %885 = vmatprep.subr.mxu0 0.0
    %886 = vmatpush1.msra.mxu0 0.0
    %887 = vmatprep.subr.mxu0 0.0
    %888 = vmatpush1.msra.mxu0 0.0
    %889 = vmatprep.subr.mxu0 0.0
    %890 = vmatpush1.msra.mxu0 0.0
    %891 = vmatprep.subr.mxu0 0.0
    %892 = vmatpush1.msra.mxu0 0.0
    %893 = vmatprep.subr.mxu0 0.0
    %894 = vmatpush1.msra.mxu0 0.0
    %895 = vmatprep.subr.mxu0 0.0
    %896 = vmatpush1.msra.mxu0 0.0
    %897 = vmatprep.mubr.f32.mxu0 0.0
    %898 = vmatmul.mubr.f32.gmra.mrb[0].mxu0 %v755
    %v899 = vpop.f32.mrb[0].mxu0
    %v900 = vadd.f32 0.0, %v899
    %v901 = vpop.f32.mrb[0].mxu0
    %902 = vdwg.mxu0
    %v903 = vadd.f32 %v759, %v829
    %v904 = vadd.f32 %v760, %v831
    %v905 = vmul.f32 %v903, 0.5
    %v906 = vmul.f32 %v904, 0.5
    %v907 = vtanh.pop %v905
    %v908 = vtanh.pop %v906
    %v909 = vmul.f32 %v907, 0.5
    %v910 = vmul.f32 %v908, 0.5
    %v911 = vadd.f32 %v909, 0.5
    %v912 = vadd.f32 %v910, 0.5
    %v913 = vadd.f32 %v900, %v101
    %v914 = vmul.f32 %v911, %v913
    %v915 = vadd.f32 %v761, %v914
    %v916 = vtanh.pop %v915
    %v917 = vsub.f32 %v755, %v916
    %v918 = vmul.f32 %v912, %v917
    %v919 = vadd.f32 %v916, %v918
    %s920 = scalar_lea.vmem [#allocation8], 32
    %921 = vst [vmem:[%s920] sm:$0xff] %v919
    %s922 = scalar_lea.vmem [#allocation3], 120
    %v923 = vld [vmem:[%s922] sm:$0xff]
    %v924 = vld [vmem:[%s922 + $0x8] sm:$0xff]
    %v925 = vld [vmem:[%s922 + $0x10] sm:$0xff]
    %926 = vmatprep.subr.mxu0 %v49
    %927 = vmatpush1.msra.mxu0 %v48
    %928 = vmatprep.subr.mxu0 %v52
    %929 = vmatpush1.msra.mxu0 %v51
    %930 = vmatprep.subr.mxu0 %v55
    %931 = vmatpush1.msra.mxu0 %v54
    %932 = vmatprep.subr.mxu0 %v58
    %933 = vmatpush1.msra.mxu0 %v57
    %934 = vmatprep.subr.mxu0 %v61
    %935 = vmatpush1.msra.mxu0 %v60
    %936 = vmatprep.subr.mxu0 %v64
    %937 = vmatpush1.msra.mxu0 %v63
    %938 = vmatprep.subr.mxu0 %v67
    %939 = vmatpush1.msra.mxu0 %v66
    %940 = vmatprep.subr.mxu0 %v70
    %941 = vmatpush1.msra.mxu0 %v69
    %942 = vmatprep.subr.mxu0 %v73
    %943 = vmatpush1.msra.mxu0 %v72
    %944 = vmatprep.subr.mxu0 %v76
    %945 = vmatpush1.msra.mxu0 %v75
    %946 = vmatprep.subr.mxu0 %v79
    %947 = vmatpush1.msra.mxu0 %v78
    %948 = vmatprep.subr.mxu0 %v82
    %949 = vmatpush1.msra.mxu0 %v81
    %950 = vmatprep.subr.mxu0 %v85
    %951 = vmatpush1.msra.mxu0 %v84
    %952 = vmatprep.subr.mxu0 %v88
    %953 = vmatpush1.msra.mxu0 %v87
    %954 = vmatprep.subr.mxu0 %v91
    %955 = vmatpush1.msra.mxu0 %v90
    %956 = vmatprep.subr.mxu0 %v94
    %957 = vmatpush1.msra.mxu0 %v93
    %958 = vmatprep.subr.mxu0 0.0
    %959 = vmatpush1.msra.mxu0 0.0
    %960 = vmatprep.subr.mxu0 0.0
    %961 = vmatpush1.msra.mxu0 0.0
    %962 = vmatprep.subr.mxu0 0.0
    %963 = vmatpush1.msra.mxu0 0.0
    %964 = vmatprep.subr.mxu0 0.0
    %965 = vmatpush1.msra.mxu0 0.0
    %966 = vmatprep.subr.mxu0 0.0
    %967 = vmatpush1.msra.mxu0 0.0
    %968 = vmatprep.subr.mxu0 0.0
    %969 = vmatpush1.msra.mxu0 0.0
    %970 = vmatprep.subr.mxu0 0.0
    %971 = vmatpush1.msra.mxu0 0.0
    %972 = vmatprep.subr.mxu0 0.0
    %973 = vmatpush1.msra.mxu0 0.0
    %974 = vmatprep.subr.mxu0 0.0
    %975 = vmatpush1.msra.mxu0 0.0
    %976 = vmatprep.subr.mxu0 0.0
    %977 = vmatpush1.msra.mxu0 0.0
    %978 = vmatprep.subr.mxu0 0.0
    %979 = vmatpush1.msra.mxu0 0.0
    %980 = vmatprep.subr.mxu0 0.0
    %981 = vmatpush1.msra.mxu0 0.0
    %982 = vmatprep.subr.mxu0 0.0
    %983 = vmatpush1.msra.mxu0 0.0
    %984 = vmatprep.subr.mxu0 0.0
    %985 = vmatpush1.msra.mxu0 0.0
    %986 = vmatprep.subr.mxu0 0.0
    %987 = vmatpush1.msra.mxu0 0.0
    %988 = vmatprep.subr.mxu0 0.0
    %989 = vmatpush1.msra.mxu0 0.0
    %990 = vmatprep.mubr.f32.mxu0 0.0
    %991 = vmatmul.mubr.f32.gmra.mrb[0].mxu0 %v919
    %v992 = vpop.f32.mrb[0].mxu0
    %v993 = vadd.f32 0.0, %v992
    %v994 = vpop.f32.mrb[0].mxu0
    %v995 = vadd.f32 0.0, %v994
    %996 = vdwg.mxu0
    %997 = vmatprep.subr.mxu0 0.0
    %998 = vmatpush1.msra.mxu0 %v50
    %999 = vmatprep.subr.mxu0 0.0
    %1000 = vmatpush1.msra.mxu0 %v53
    %1001 = vmatprep.subr.mxu0 0.0
    %1002 = vmatpush1.msra.mxu0 %v56
    %1003 = vmatprep.subr.mxu0 0.0
    %1004 = vmatpush1.msra.mxu0 %v59
    %1005 = vmatprep.subr.mxu0 0.0
    %1006 = vmatpush1.msra.mxu0 %v62
    %1007 = vmatprep.subr.mxu0 0.0
    %1008 = vmatpush1.msra.mxu0 %v65
    %1009 = vmatprep.subr.mxu0 0.0
    %1010 = vmatpush1.msra.mxu0 %v68
    %1011 = vmatprep.subr.mxu0 0.0
    %1012 = vmatpush1.msra.mxu0 %v71
    %1013 = vmatprep.subr.mxu0 0.0
    %1014 = vmatpush1.msra.mxu0 %v74
    %1015 = vmatprep.subr.mxu0 0.0
    %1016 = vmatpush1.msra.mxu0 %v77
    %1017 = vmatprep.subr.mxu0 0.0
    %1018 = vmatpush1.msra.mxu0 %v80
    %1019 = vmatprep.subr.mxu0 0.0
    %1020 = vmatpush1.msra.mxu0 %v83
    %1021 = vmatprep.subr.mxu0 0.0
    %1022 = vmatpush1.msra.mxu0 %v86
    %1023 = vmatprep.subr.mxu0 0.0
    %1024 = vmatpush1.msra.mxu0 %v89
    %1025 = vmatprep.subr.mxu0 0.0
    %1026 = vmatpush1.msra.mxu0 %v92
    %1027 = vmatprep.subr.mxu0 0.0
    %1028 = vmatpush1.msra.mxu0 %v95
    %1029 = vmatprep.subr.mxu0 0.0
    %1030 = vmatpush1.msra.mxu0 0.0
    %1031 = vmatprep.subr.mxu0 0.0
    %1032 = vmatpush1.msra.mxu0 0.0
    %1033 = vmatprep.subr.mxu0 0.0
    %1034 = vmatpush1.msra.mxu0 0.0
    %1035 = vmatprep.subr.mxu0 0.0
    %1036 = vmatpush1.msra.mxu0 0.0
    %1037 = vmatprep.subr.mxu0 0.0
    %1038 = vmatpush1.msra.mxu0 0.0
    %1039 = vmatprep.subr.mxu0 0.0
    %1040 = vmatpush1.msra.mxu0 0.0
    %1041 = vmatprep.subr.mxu0 0.0
    %1042 = vmatpush1.msra.mxu0 0.0
    %1043 = vmatprep.subr.mxu0 0.0
    %1044 = vmatpush1.msra.mxu0 0.0
    %1045 = vmatprep.subr.mxu0 0.0
    %1046 = vmatpush1.msra.mxu0 0.0
    %1047 = vmatprep.subr.mxu0 0.0
    %1048 = vmatpush1.msra.mxu0 0.0
    %1049 = vmatprep.subr.mxu0 0.0
    %1050 = vmatpush1.msra.mxu0 0.0
    %1051 = vmatprep.subr.mxu0 0.0
    %1052 = vmatpush1.msra.mxu0 0.0
    %1053 = vmatprep.subr.mxu0 0.0
    %1054 = vmatpush1.msra.mxu0 0.0
    %1055 = vmatprep.subr.mxu0 0.0
    %1056 = vmatpush1.msra.mxu0 0.0
    %1057 = vmatprep.subr.mxu0 0.0
    %1058 = vmatpush1.msra.mxu0 0.0
    %1059 = vmatprep.subr.mxu0 0.0
    %1060 = vmatpush1.msra.mxu0 0.0
    %1061 = vmatprep.mubr.f32.mxu0 0.0
    %1062 = vmatmul.mubr.f32.gmra.mrb[0].mxu0 %v919
    %v1063 = vpop.f32.mrb[0].mxu0
    %v1064 = vadd.f32 0.0, %v1063
    %v1065 = vpop.f32.mrb[0].mxu0
    %1066 = vdwg.mxu0
    %v1067 = vadd.f32 %v923, %v993
    %v1068 = vadd.f32 %v924, %v995
    %v1069 = vmul.f32 %v1067, 0.5
    %v1070 = vmul.f32 %v1068, 0.5
    %v1071 = vtanh.pop %v1069
    %v1072 = vtanh.pop %v1070
    %v1073 = vmul.f32 %v1071, 0.5
    %v1074 = vmul.f32 %v1072, 0.5
    %v1075 = vadd.f32 %v1073, 0.5
    %v1076 = vadd.f32 %v1074, 0.5
    %v1077 = vadd.f32 %v1064, %v101
    %v1078 = vmul.f32 %v1075, %v1077
    %v1079 = vadd.f32 %v925, %v1078
    %v1080 = vtanh.pop %v1079
    %v1081 = vsub.f32 %v919, %v1080
    %v1082 = vmul.f32 %v1076, %v1081
    %v1083 = vadd.f32 %v1080, %v1082
    %s1084 = scalar_lea.vmem [#allocation8], 40
    %1085 = vst [vmem:[%s1084] sm:$0xff] %v1083
    %s1086 = scalar_lea.vmem [#allocation3], 144
    %v1087 = vld [vmem:[%s1086] sm:$0xff]
    %v1088 = vld [vmem:[%s1086 + $0x8] sm:$0xff]
    %v1089 = vld [vmem:[%s1086 + $0x10] sm:$0xff]
    %1090 = vmatprep.subr.mxu0 %v49
    %1091 = vmatpush1.msra.mxu0 %v48
    %1092 = vmatprep.subr.mxu0 %v52
    %1093 = vmatpush1.msra.mxu0 %v51
    %1094 = vmatprep.subr.mxu0 %v55
    %1095 = vmatpush1.msra.mxu0 %v54
    %1096 = vmatprep.subr.mxu0 %v58
    %1097 = vmatpush1.msra.mxu0 %v57
    %1098 = vmatprep.subr.mxu0 %v61
    %1099 = vmatpush1.msra.mxu0 %v60
    %1100 = vmatprep.subr.mxu0 %v64
    %1101 = vmatpush1.msra.mxu0 %v63
    %1102 = vmatprep.subr.mxu0 %v67
    %1103 = vmatpush1.msra.mxu0 %v66
    %1104 = vmatprep.subr.mxu0 %v70
    %1105 = vmatpush1.msra.mxu0 %v69
    %1106 = vmatprep.subr.mxu0 %v73
    %1107 = vmatpush1.msra.mxu0 %v72
    %1108 = vmatprep.subr.mxu0 %v76
    %1109 = vmatpush1.msra.mxu0 %v75
    %1110 = vmatprep.subr.mxu0 %v79
    %1111 = vmatpush1.msra.mxu0 %v78
    %1112 = vmatprep.subr.mxu0 %v82
    %1113 = vmatpush1.msra.mxu0 %v81
    %1114 = vmatprep.subr.mxu0 %v85
    %1115 = vmatpush1.msra.mxu0 %v84
    %1116 = vmatprep.subr.mxu0 %v88
    %1117 = vmatpush1.msra.mxu0 %v87
    %1118 = vmatprep.subr.mxu0 %v91
    %1119 = vmatpush1.msra.mxu0 %v90
    %1120 = vmatprep.subr.mxu0 %v94
    %1121 = vmatpush1.msra.mxu0 %v93
    %1122 = vmatprep.subr.mxu0 0.0
    %1123 = vmatpush1.msra.mxu0 0.0
    %1124 = vmatprep.subr.mxu0 0.0
    %1125 = vmatpush1.msra.mxu0 0.0
    %1126 = vmatprep.subr.mxu0 0.0
    %1127 = vmatpush1.msra.mxu0 0.0
    %1128 = vmatprep.subr.mxu0 0.0
    %1129 = vmatpush1.msra.mxu0 0.0
    %1130 = vmatprep.subr.mxu0 0.0
    %1131 = vmatpush1.msra.mxu0 0.0
    %1132 = vmatprep.subr.mxu0 0.0
    %1133 = vmatpush1.msra.mxu0 0.0
    %1134 = vmatprep.subr.mxu0 0.0
    %1135 = vmatpush1.msra.mxu0 0.0
    %1136 = vmatprep.subr.mxu0 0.0
    %1137 = vmatpush1.msra.mxu0 0.0
    %1138 = vmatprep.subr.mxu0 0.0
    %1139 = vmatpush1.msra.mxu0 0.0
    %1140 = vmatprep.subr.mxu0 0.0
    %1141 = vmatpush1.msra.mxu0 0.0
    %1142 = vmatprep.subr.mxu0 0.0
    %1143 = vmatpush1.msra.mxu0 0.0
    %1144 = vmatprep.subr.mxu0 0.0
    %1145 = vmatpush1.msra.mxu0 0.0
    %1146 = vmatprep.subr.mxu0 0.0
    %1147 = vmatpush1.msra.mxu0 0.0
    %1148 = vmatprep.subr.mxu0 0.0
    %1149 = vmatpush1.msra.mxu0 0.0
    %1150 = vmatprep.subr.mxu0 0.0
    %1151 = vmatpush1.msra.mxu0 0.0
    %1152 = vmatprep.subr.mxu0 0.0
    %1153 = vmatpush1.msra.mxu0 0.0
    %1154 = vmatprep.mubr.f32.mxu0 0.0
    %1155 = vmatmul.mubr.f32.gmra.mrb[0].mxu0 %v1083
    %v1156 = vpop.f32.mrb[0].mxu0
    %v1157 = vadd.f32 0.0, %v1156
    %v1158 = vpop.f32.mrb[0].mxu0
    %v1159 = vadd.f32 0.0, %v1158
    %1160 = vdwg.mxu0
    %1161 = vmatprep.subr.mxu0 0.0
    %1162 = vmatpush1.msra.mxu0 %v50
    %1163 = vmatprep.subr.mxu0 0.0
    %1164 = vmatpush1.msra.mxu0 %v53
    %1165 = vmatprep.subr.mxu0 0.0
    %1166 = vmatpush1.msra.mxu0 %v56
    %1167 = vmatprep.subr.mxu0 0.0
    %1168 = vmatpush1.msra.mxu0 %v59
    %1169 = vmatprep.subr.mxu0 0.0
    %1170 = vmatpush1.msra.mxu0 %v62
    %1171 = vmatprep.subr.mxu0 0.0
    %1172 = vmatpush1.msra.mxu0 %v65
    %1173 = vmatprep.subr.mxu0 0.0
    %1174 = vmatpush1.msra.mxu0 %v68
    %1175 = vmatprep.subr.mxu0 0.0
    %1176 = vmatpush1.msra.mxu0 %v71
    %1177 = vmatprep.subr.mxu0 0.0
    %1178 = vmatpush1.msra.mxu0 %v74
    %1179 = vmatprep.subr.mxu0 0.0
    %1180 = vmatpush1.msra.mxu0 %v77
    %1181 = vmatprep.subr.mxu0 0.0
    %1182 = vmatpush1.msra.mxu0 %v80
    %1183 = vmatprep.subr.mxu0 0.0
    %1184 = vmatpush1.msra.mxu0 %v83
    %1185 = vmatprep.subr.mxu0 0.0
    %1186 = vmatpush1.msra.mxu0 %v86
    %1187 = vmatprep.subr.mxu0 0.0
    %1188 = vmatpush1.msra.mxu0 %v89
    %1189 = vmatprep.subr.mxu0 0.0
    %1190 = vmatpush1.msra.mxu0 %v92
    %1191 = vmatprep.subr.mxu0 0.0
    %1192 = vmatpush1.msra.mxu0 %v95
    %1193 = vmatprep.subr.mxu0 0.0
    %1194 = vmatpush1.msra.mxu0 0.0
    %1195 = vmatprep.subr.mxu0 0.0
    %1196 = vmatpush1.msra.mxu0 0.0
    %1197 = vmatprep.subr.mxu0 0.0
    %1198 = vmatpush1.msra.mxu0 0.0
    %1199 = vmatprep.subr.mxu0 0.0
    %1200 = vmatpush1.msra.mxu0 0.0
    %1201 = vmatprep.subr.mxu0 0.0
    %1202 = vmatpush1.msra.mxu0 0.0
    %1203 = vmatprep.subr.mxu0 0.0
    %1204 = vmatpush1.msra.mxu0 0.0
    %1205 = vmatprep.subr.mxu0 0.0
    %1206 = vmatpush1.msra.mxu0 0.0
    %1207 = vmatprep.subr.mxu0 0.0
    %1208 = vmatpush1.msra.mxu0 0.0
    %1209 = vmatprep.subr.mxu0 0.0
    %1210 = vmatpush1.msra.mxu0 0.0
    %1211 = vmatprep.subr.mxu0 0.0
    %1212 = vmatpush1.msra.mxu0 0.0
    %1213 = vmatprep.subr.mxu0 0.0
    %1214 = vmatpush1.msra.mxu0 0.0
    %1215 = vmatprep.subr.mxu0 0.0
    %1216 = vmatpush1.msra.mxu0 0.0
    %1217 = vmatprep.subr.mxu0 0.0
    %1218 = vmatpush1.msra.mxu0 0.0
    %1219 = vmatprep.subr.mxu0 0.0
    %1220 = vmatpush1.msra.mxu0 0.0
    %1221 = vmatprep.subr.mxu0 0.0
    %1222 = vmatpush1.msra.mxu0 0.0
    %1223 = vmatprep.subr.mxu0 0.0
    %1224 = vmatpush1.msra.mxu0 0.0
    %1225 = vmatprep.mubr.f32.mxu0 0.0
    %1226 = vmatmul.mubr.f32.gmra.mrb[0].mxu0 %v1083
    %v1227 = vpop.f32.mrb[0].mxu0
    %v1228 = vadd.f32 0.0, %v1227
    %v1229 = vpop.f32.mrb[0].mxu0
    %1230 = vdwg.mxu0
    %v1231 = vadd.f32 %v1087, %v1157
    %v1232 = vadd.f32 %v1088, %v1159
    %v1233 = vmul.f32 %v1231, 0.5
    %v1234 = vmul.f32 %v1232, 0.5
    %v1235 = vtanh.pop %v1233
    %v1236 = vtanh.pop %v1234
    %v1237 = vmul.f32 %v1235, 0.5
    %v1238 = vmul.f32 %v1236, 0.5
    %v1239 = vadd.f32 %v1237, 0.5
    %v1240 = vadd.f32 %v1238, 0.5
    %v1241 = vadd.f32 %v1228, %v101
    %v1242 = vmul.f32 %v1239, %v1241
    %v1243 = vadd.f32 %v1089, %v1242
    %v1244 = vtanh.pop %v1243
    %v1245 = vsub.f32 %v1083, %v1244
    %v1246 = vmul.f32 %v1240, %v1245
    %v1247 = vadd.f32 %v1244, %v1246
    %s1248 = scalar_lea.vmem [#allocation8], 48
    %1249 = vst [vmem:[%s1248] sm:$0xff] %v1247
    %s1250 = scalar_lea.vmem [#allocation3], 168
    %v1251 = vld [vmem:[%s1250] sm:$0xff]
    %v1252 = vld [vmem:[%s1250 + $0x8] sm:$0xff]
    %v1253 = vld [vmem:[%s1250 + $0x10] sm:$0xff]
    %1254 = vmatprep.subr.mxu0 %v49
    %1255 = vmatpush1.msra.mxu0 %v48
    %1256 = vmatprep.subr.mxu0 %v52
    %1257 = vmatpush1.msra.mxu0 %v51
    %1258 = vmatprep.subr.mxu0 %v55
    %1259 = vmatpush1.msra.mxu0 %v54
    %1260 = vmatprep.subr.mxu0 %v58
    %1261 = vmatpush1.msra.mxu0 %v57
    %1262 = vmatprep.subr.mxu0 %v61
    %1263 = vmatpush1.msra.mxu0 %v60
    %1264 = vmatprep.subr.mxu0 %v64
    %1265 = vmatpush1.msra.mxu0 %v63
    %1266 = vmatprep.subr.mxu0 %v67
    %1267 = vmatpush1.msra.mxu0 %v66
    %1268 = vmatprep.subr.mxu0 %v70
    %1269 = vmatpush1.msra.mxu0 %v69
    %1270 = vmatprep.subr.mxu0 %v73
    %1271 = vmatpush1.msra.mxu0 %v72
    %1272 = vmatprep.subr.mxu0 %v76
    %1273 = vmatpush1.msra.mxu0 %v75
    %1274 = vmatprep.subr.mxu0 %v79
    %1275 = vmatpush1.msra.mxu0 %v78
    %1276 = vmatprep.subr.mxu0 %v82
    %1277 = vmatpush1.msra.mxu0 %v81
    %1278 = vmatprep.subr.mxu0 %v85
    %1279 = vmatpush1.msra.mxu0 %v84
    %1280 = vmatprep.subr.mxu0 %v88
    %1281 = vmatpush1.msra.mxu0 %v87
    %1282 = vmatprep.subr.mxu0 %v91
    %1283 = vmatpush1.msra.mxu0 %v90
    %1284 = vmatprep.subr.mxu0 %v94
    %1285 = vmatpush1.msra.mxu0 %v93
    %1286 = vmatprep.subr.mxu0 0.0
    %1287 = vmatpush1.msra.mxu0 0.0
    %1288 = vmatprep.subr.mxu0 0.0
    %1289 = vmatpush1.msra.mxu0 0.0
    %1290 = vmatprep.subr.mxu0 0.0
    %1291 = vmatpush1.msra.mxu0 0.0
    %1292 = vmatprep.subr.mxu0 0.0
    %1293 = vmatpush1.msra.mxu0 0.0
    %1294 = vmatprep.subr.mxu0 0.0
    %1295 = vmatpush1.msra.mxu0 0.0
    %1296 = vmatprep.subr.mxu0 0.0
    %1297 = vmatpush1.msra.mxu0 0.0
    %1298 = vmatprep.subr.mxu0 0.0
    %1299 = vmatpush1.msra.mxu0 0.0
    %1300 = vmatprep.subr.mxu0 0.0
    %1301 = vmatpush1.msra.mxu0 0.0
    %1302 = vmatprep.subr.mxu0 0.0
    %1303 = vmatpush1.msra.mxu0 0.0
    %1304 = vmatprep.subr.mxu0 0.0
    %1305 = vmatpush1.msra.mxu0 0.0
    %1306 = vmatprep.subr.mxu0 0.0
    %1307 = vmatpush1.msra.mxu0 0.0
    %1308 = vmatprep.subr.mxu0 0.0
    %1309 = vmatpush1.msra.mxu0 0.0
    %1310 = vmatprep.subr.mxu0 0.0
    %1311 = vmatpush1.msra.mxu0 0.0
    %1312 = vmatprep.subr.mxu0 0.0
    %1313 = vmatpush1.msra.mxu0 0.0
    %1314 = vmatprep.subr.mxu0 0.0
    %1315 = vmatpush1.msra.mxu0 0.0
    %1316 = vmatprep.subr.mxu0 0.0
    %1317 = vmatpush1.msra.mxu0 0.0
    %1318 = vmatprep.mubr.f32.mxu0 0.0
    %1319 = vmatmul.mubr.f32.gmra.mrb[0].mxu0 %v1247
    %v1320 = vpop.f32.mrb[0].mxu0
    %v1321 = vadd.f32 0.0, %v1320
    %v1322 = vpop.f32.mrb[0].mxu0
    %v1323 = vadd.f32 0.0, %v1322
    %1324 = vdwg.mxu0
    %1325 = vmatprep.subr.mxu0 0.0
    %1326 = vmatpush1.msra.mxu0 %v50
    %1327 = vmatprep.subr.mxu0 0.0
    %1328 = vmatpush1.msra.mxu0 %v53
    %1329 = vmatprep.subr.mxu0 0.0
    %1330 = vmatpush1.msra.mxu0 %v56
    %1331 = vmatprep.subr.mxu0 0.0
    %1332 = vmatpush1.msra.mxu0 %v59
    %1333 = vmatprep.subr.mxu0 0.0
    %1334 = vmatpush1.msra.mxu0 %v62
    %1335 = vmatprep.subr.mxu0 0.0
    %1336 = vmatpush1.msra.mxu0 %v65
    %1337 = vmatprep.subr.mxu0 0.0
    %1338 = vmatpush1.msra.mxu0 %v68
    %1339 = vmatprep.subr.mxu0 0.0
    %1340 = vmatpush1.msra.mxu0 %v71
    %1341 = vmatprep.subr.mxu0 0.0
    %1342 = vmatpush1.msra.mxu0 %v74
    %1343 = vmatprep.subr.mxu0 0.0
    %1344 = vmatpush1.msra.mxu0 %v77
    %1345 = vmatprep.subr.mxu0 0.0
    %1346 = vmatpush1.msra.mxu0 %v80
    %1347 = vmatprep.subr.mxu0 0.0
    %1348 = vmatpush1.msra.mxu0 %v83
    %1349 = vmatprep.subr.mxu0 0.0
    %1350 = vmatpush1.msra.mxu0 %v86
    %1351 = vmatprep.subr.mxu0 0.0
    %1352 = vmatpush1.msra.mxu0 %v89
    %1353 = vmatprep.subr.mxu0 0.0
    %1354 = vmatpush1.msra.mxu0 %v92
    %1355 = vmatprep.subr.mxu0 0.0
    %1356 = vmatpush1.msra.mxu0 %v95
    %1357 = vmatprep.subr.mxu0 0.0
    %1358 = vmatpush1.msra.mxu0 0.0
    %1359 = vmatprep.subr.mxu0 0.0
    %1360 = vmatpush1.msra.mxu0 0.0
    %1361 = vmatprep.subr.mxu0 0.0
    %1362 = vmatpush1.msra.mxu0 0.0
    %1363 = vmatprep.subr.mxu0 0.0
    %1364 = vmatpush1.msra.mxu0 0.0
    %1365 = vmatprep.subr.mxu0 0.0
    %1366 = vmatpush1.msra.mxu0 0.0
    %1367 = vmatprep.subr.mxu0 0.0
    %1368 = vmatpush1.msra.mxu0 0.0
    %1369 = vmatprep.subr.mxu0 0.0
    %1370 = vmatpush1.msra.mxu0 0.0
    %1371 = vmatprep.subr.mxu0 0.0
    %1372 = vmatpush1.msra.mxu0 0.0
    %1373 = vmatprep.subr.mxu0 0.0
    %1374 = vmatpush1.msra.mxu0 0.0
    %1375 = vmatprep.subr.mxu0 0.0
    %1376 = vmatpush1.msra.mxu0 0.0
    %1377 = vmatprep.subr.mxu0 0.0
    %1378 = vmatpush1.msra.mxu0 0.0
    %1379 = vmatprep.subr.mxu0 0.0
    %1380 = vmatpush1.msra.mxu0 0.0
    %1381 = vmatprep.subr.mxu0 0.0
    %1382 = vmatpush1.msra.mxu0 0.0
    %1383 = vmatprep.subr.mxu0 0.0
    %1384 = vmatpush1.msra.mxu0 0.0
    %1385 = vmatprep.subr.mxu0 0.0
    %1386 = vmatpush1.msra.mxu0 0.0
    %1387 = vmatprep.subr.mxu0 0.0
    %1388 = vmatpush1.msra.mxu0 0.0
    %1389 = vmatprep.mubr.f32.mxu0 0.0
    %1390 = vmatmul.mubr.f32.gmra.mrb[0].mxu0 %v1247
    %v1391 = vpop.f32.mrb[0].mxu0
    %v1392 = vadd.f32 0.0, %v1391
    %v1393 = vpop.f32.mrb[0].mxu0
    %1394 = vdwg.mxu0
    %v1395 = vadd.f32 %v1251, %v1321
    %v1396 = vadd.f32 %v1252, %v1323
    %v1397 = vmul.f32 %v1395, 0.5
    %v1398 = vmul.f32 %v1396, 0.5
    %v1399 = vtanh.pop %v1397
    %v1400 = vtanh.pop %v1398
    %v1401 = vmul.f32 %v1399, 0.5
    %v1402 = vmul.f32 %v1400, 0.5
    %v1403 = vadd.f32 %v1401, 0.5
    %v1404 = vadd.f32 %v1402, 0.5
    %v1405 = vadd.f32 %v1392, %v101
    %v1406 = vmul.f32 %v1403, %v1405
    %v1407 = vadd.f32 %v1253, %v1406
    %v1408 = vtanh.pop %v1407
    %v1409 = vsub.f32 %v1247, %v1408
    %v1410 = vmul.f32 %v1404, %v1409
    %v1411 = vadd.f32 %v1408, %v1410
    %s1412 = scalar_lea.vmem [#allocation8], 56
    %1413 = vst [vmem:[%s1412] sm:$0xff] %v1411
    %1414 = vst [vmem:[#allocation2] sm:$0xff] %v1411
    // Predicated region
    $region26: #{tpu_custom_call.1} parent=1 // pred_check
      _
    $region27: #{tpu_custom_call.1} parent=1 // pred_check_branch
      %1416 = sbr.rel (0) target = $region29
    $region28: #{tpu_custom_call.1} parent=1 // pred_region
      %s1418 = ssub.s32 1024, 1024
      %1419 = vsyncadd [#allocation5], %s1418
      %s1420 = sshll.u32 [#allocation8], 4
      %s1421 = int_to_ptr.vmem [resolvable:$true] %s1420
      %1426 = dma.vmem_to_hbm [thread:$0]  %s1421, 1024, %s3, [#allocation5], 128, 128, 8
    $region29: #{tpu_custom_call.1} parent=1 // pred_fallthru
      _
    // Predicated region
    $region30: #{tpu_custom_call.1} parent=1 // pred_check
      _
    $region31: #{tpu_custom_call.1} parent=1 // pred_check_branch
      %1428 = sbr.rel (0) target = $region33
    $region32: #{tpu_custom_call.1} parent=1 // pred_region
      %1429 = dma.done [#allocation5], 1024
    $region33: #{tpu_custom_call.1} parent=1 // pred_fallthru
      _
    %1430 = vsyncpa [#allocation4], 1
    %1431 = vsyncpa [#allocation7], 1
    %1432 = vsyncpa [#allocation5], 1

</llo_original>
